<compile_context>
chip_gen: v5e
topology: v5e:2x2
jax: 0.10.0
libtpu: 0.0.40
codegen_flags: <defaults>
</compile_context>

<pallas_src>
import numpy as np

import jax
import jax.numpy as jnp
from jax.experimental import pallas as pl
from jax.experimental.pallas import tpu as pltpu


_COL0 = 8  # sublane-tile-aligned column offset of the conv interior inside the VMEM scratch


# ----------------------------------------------------------------------------- in-kernel helpers

def _gn_silu_2d(x2d, A_ref, g_ref, b_ref, eps):
    """GroupNorm + SiLU on an (M, C) f32 tile.

    A_ref is a (C, C) group-averaging matrix: A[i, j] = [group(i)==group(j)] / (M * cg),
    so `sums @ A` gives the per-channel group mean/var in one tiny MXU matmul
    (no per-group slicing, no concatenate copy).
    """
    s1 = jnp.sum(x2d, axis=0, keepdims=True)                              # (1, C)
    mean_c = jnp.dot(s1, A_ref[...], preferred_element_type=jnp.float32)  # (1, C)
    xc = x2d - mean_c
    s2 = jnp.sum(xc * xc, axis=0, keepdims=True)                          # (1, C)
    var_c = jnp.dot(s2, A_ref[...], preferred_element_type=jnp.float32)   # (1, C)
    y = xc * jax.lax.rsqrt(var_c + eps)
    y = y * g_ref[...].astype(jnp.float32) + b_ref[...].astype(jnp.float32)
    return y * jax.nn.sigmoid(y)                                          # SiLU


def _conv3x3_im2col(pad_ref, w_ref, b_ref, H, W, C):
    """3x3 stride-1 conv over the zero-padded scratch as ONE im2col matmul (K = 9*C)."""
    taps = []
    for dy in range(3):
        for dx in range(3):
            c0 = _COL0 - 1 + dx
            taps.append(pad_ref[dy:dy + H, c0:c0 + W, :].reshape(H * W, C))
    patches = jnp.concatenate(taps, axis=-1)                              # (H*W, 9*C)
    return (jnp.dot(patches, w_ref[...].astype(jnp.float32),
                    preferred_element_type=jnp.float32)
            + b_ref[...].astype(jnp.float32))


# ----------------------------------------------------------------------------- fused resnet kernel

def _make_resnet_kernel(H, W, Cin, Cout, eps, inv_scale, has_shortcut):
    def kernel(*refs):
        if has_shortcut:
            (x_ref, A1_ref, g1_ref, b1_ref, w1_ref, c1b_ref,
             A2_ref, g2_ref, b2_ref, w2_ref, c2b_ref,
             ws_ref, bs_ref, o_ref, pad1_ref, pad2_ref) = refs
        else:
            (x_ref, A1_ref, g1_ref, b1_ref, w1_ref, c1b_ref,
             A2_ref, g2_ref, b2_ref, w2_ref, c2b_ref,
             o_ref, pad1_ref, pad2_ref) = refs
            ws_ref = bs_ref = None

        # Zero the halo scratch buffers (VMEM-only, tiny); the interior is overwritten.
        pad1_ref[...] = jnp.zeros_like(pad1_ref)
        pad2_ref[...] = jnp.zeros_like(pad2_ref)

        x2d = x_ref[0].astype(jnp.float32).reshape(H * W, Cin)

        # --- GN1 + SiLU -> conv1 (3x3, s1, p1) ---
        h = _gn_silu_2d(x2d, A1_ref, g1_ref, b1_ref, eps)
        pad1_ref[1:H + 1, _COL0:_COL0 + W, :] = h.reshape(H, W, Cin)
        h = _conv3x3_im2col(pad1_ref, w1_ref, c1b_ref, H, W, Cin)         # (H*W, Cout)

        # --- GN2 + SiLU (dropout = 0.0 -> identity) -> conv2 ---
        h = _gn_silu_2d(h, A2_ref, g2_ref, b2_ref, eps)
        pad2_ref[1:H + 1, _COL0:_COL0 + W, :] = h.reshape(H, W, Cout)
        h = _conv3x3_im2col(pad2_ref, w2_ref, c2b_ref, H, W, Cout)        # (H*W, Cout)

        # --- fused 1x1 shortcut + residual add + 1/output_scale_factor ---
        if has_shortcut:
            sc = (jnp.dot(x2d, ws_ref[...].astype(jnp.float32),
                          preferred_element_type=jnp.float32)
                  + bs_ref[...].astype(jnp.float32))
        else:
            sc = x2d
        out = (sc + h) * inv_scale
        o_ref[...] = out.reshape(1, H, W, Cout).astype(o_ref.dtype)

    return kernel


def _gn_matrix(C, groups, hw):
    cg = C // groups
    gid = np.arange(C) // cg
    A = (gid[:, None] == gid[None, :]).astype(np.float32) / float(hw * cg)
    return jnp.asarray(A)


def resnet_block(x, p, groups, eps, output_scale_factor):
    """PareResnetBlock2D (temb=None) as a single fused pallas_call per batch element."""
    N, H, W, Cin = x.shape
    Cout = p['conv1_b'].shape[0]
    has_shortcut = 'short_w' in p

    w1 = p['conv1_w'].reshape(9 * Cin, Cout)      # HWIO (3,3,Cin,Cout) -> (9*Cin, Cout)
    w2 = p['conv2_w'].reshape(9 * Cout, Cout)
    A1 = _gn_matrix(Cin, groups, H * W)
    A2 = _gn_matrix(Cout, groups, H * W)

    args = [x, A1, p['gn1_g'].reshape(1, Cin), p['gn1_b'].reshape(1, Cin), w1,
            p['conv1_b'].reshape(1, Cout),
            A2, p['gn2_g'].reshape(1, Cout), p['gn2_b'].reshape(1, Cout), w2,
            p['conv2_b'].reshape(1, Cout)]
    in_specs = [
        pl.BlockSpec((1, H, W, Cin), lambda n: (n, 0, 0, 0)),
        pl.BlockSpec((Cin, Cin), lambda n: (0, 0)),
        pl.BlockSpec((1, Cin), lambda n: (0, 0)),
        pl.BlockSpec((1, Cin), lambda n: (0, 0)),
        pl.BlockSpec((9 * Cin, Cout), lambda n: (0, 0)),
        pl.BlockSpec((1, Cout), lambda n: (0, 0)),
        pl.BlockSpec((Cout, Cout), lambda n: (0, 0)),
        pl.BlockSpec((1, Cout), lambda n: (0, 0)),
        pl.BlockSpec((1, Cout), lambda n: (0, 0)),
        pl.BlockSpec((9 * Cout, Cout), lambda n: (0, 0)),
        pl.BlockSpec((1, Cout), lambda n: (0, 0)),
    ]
    if has_shortcut:
        args += [p['short_w'], p['short_b'].reshape(1, Cout)]
        in_specs += [pl.BlockSpec((Cin, Cout), lambda n: (0, 0)),
                     pl.BlockSpec((1, Cout), lambda n: (0, 0))]

    kern = _make_resnet_kernel(H, W, Cin, Cout, float(eps),
                               float(1.0 / output_scale_factor), has_shortcut)
    return pl.pallas_call(
        kern,
        out_shape=jax.ShapeDtypeStruct((N, H, W, Cout), x.dtype),
        grid=(N,),
        in_specs=in_specs,
        out_specs=pl.BlockSpec((1, H, W, Cout), lambda n: (n, 0, 0, 0)),
        scratch_shapes=[pltpu.VMEM((H + 2, W + 9, Cin), jnp.float32),
                        pltpu.VMEM((H + 2, W + 9, Cout), jnp.float32)],
        compiler_params=pltpu.CompilerParams(dimension_semantics=("parallel",)),
    )(*args)


# ----------------------------------------------------------------------------- stride-2 downsample

def _make_downsample_kernel(Ho, Wo, C4, Cout):
    def kernel(x_ref, w_ref, b_ref, o_ref, pad_ref):
        pad_ref[...] = jnp.zeros_like(pad_ref)
        pad_ref[1:Ho + 1, _COL0:_COL0 + Wo, :] = x_ref[0].astype(jnp.float32)
        taps = []
        for oy in (0, 1):
            for ox in (0, 1):
                c0 = _COL0 - 1 + ox
                taps.append(pad_ref[oy:oy + Ho, c0:c0 + Wo, :].reshape(Ho * Wo, C4))
        patches = jnp.concatenate(taps, axis=-1)                          # (Ho*Wo, 4*C4)
        y = (jnp.dot(patches, w_ref[...].astype(jnp.float32),
                     preferred_element_type=jnp.float32)
             + b_ref[...].astype(jnp.float32))
        o_ref[...] = y.reshape(1, Ho, Wo, Cout).astype(o_ref.dtype)
    return kernel


def _pack_s2_weight(w):
    """Pack a (3,3,Cin,Cout) HWIO stride-2 conv weight for the space-to-depth formulation.

    Returns (16*Cin, Cout) with K index ordered (window offset o, input parity plane p, cin).
    Kernel tap index d in {0,1,2} maps to (offset, parity): 0 -> (0,1), 1 -> (1,0), 2 -> (1,1);
    the 7 unused (offset, parity) combinations stay zero.
    """
    C, Cout = w.shape[2], w.shape[3]
    omap = {0: (0, 1), 1: (1, 0), 2: (1, 1)}
    w16 = jnp.zeros((4, 4, C, Cout), w.dtype)
    for dy in range(3):
        for dx in range(3):
            oy, py = omap[dy]
            ox, px = omap[dx]
            w16 = w16.at[oy * 2 + ox, py * 2 + px].set(w[dy, dx])
    return w16.reshape(16 * C, Cout)


def downsample_conv_s2(x, w, b):
    """PareDownsample2D (use_conv=True, k=3, stride=2, pad=1)."""
    N, H, W, C = x.shape
    assert H % 2 == 0 and W % 2 == 0, "stride-2 path assumes even spatial dims"
    Ho, Wo = H // 2, W // 2
    Cout = w.shape[-1]
    # Parity planes (ee, eo, oe, oo) stacked along channels: cheap layout shuffle,
    # ~1x HBM traffic instead of the previous 9x im2col expansion.
    xr = x.reshape(N, Ho, 2, Wo, 2, C)
    x4 = jnp.concatenate([xr[:, :, py, :, px, :] for py in (0, 1) for px in (0, 1)],
                         axis=-1)                                         # (N, Ho, Wo, 4*C)
    w16 = _pack_s2_weight(w)                                              # (16*C, Cout)
    kern = _make_downsample_kernel(Ho, Wo, 4 * C, Cout)
    return pl.pallas_call(
        kern,
        out_shape=jax.ShapeDtypeStruct((N, Ho, Wo, Cout), x.dtype),
        grid=(N,),
        in_specs=[pl.BlockSpec((1, Ho, Wo, 4 * C), lambda n: (n, 0, 0, 0)),
                  pl.BlockSpec((16 * C, Cout), lambda n: (0, 0)),
                  pl.BlockSpec((1, Cout), lambda n: (0, 0))],
        out_specs=pl.BlockSpec((1, Ho, Wo, Cout), lambda n: (n, 0, 0, 0)),
        scratch_shapes=[pltpu.VMEM((Ho + 1, Wo + _COL0, 4 * C), jnp.float32)],
        compiler_params=pltpu.CompilerParams(dimension_semantics=("parallel",)),
    )(x4, w16, b.reshape(1, Cout))


# ----------------------------------------------------------------------------- full block

def down_encoder_block_2d(x, params, groups, eps=1e-6, output_scale_factor=1.0,
                          add_downsample=True):
    # layout: NHWC
    for rp in params['resnets']:
        x = resnet_block(x, rp, groups, eps, output_scale_factor)
    if add_downsample:
        x = downsample_conv_s2(x, params['down_w'], params['down_b'])
    return x


# ----------------------------------------------------------------------------- params

def init_params(key, in_channels, out_channels, num_layers):
    def nrm(k, shape, scale=0.05):
        return scale * jax.random.normal(k, shape, jnp.float32)

    kiter = iter(jax.random.split(key, num_layers * 10 + 4))
    params = {'resnets': []}
    for i in range(num_layers):
        cin = in_channels if i == 0 else out_channels
        rp = {
            'gn1_g': 1.0 + nrm(next(kiter), (cin,)),
            'gn1_b': nrm(next(kiter), (cin,)),
            'conv1_w': nrm(next(kiter), (3, 3, cin, out_channels)),
            'conv1_b': nrm(next(kiter), (out_channels,)),
            'gn2_g': 1.0 + nrm(next(kiter), (out_channels,)),
            'gn2_b': nrm(next(kiter), (out_channels,)),
            'conv2_w': nrm(next(kiter), (3, 3, out_channels, out_channels)),
            'conv2_b': nrm(next(kiter), (out_channels,)),
        }
        if cin != out_channels:
            rp['short_w'] = nrm(next(kiter), (cin, out_channels))
            rp['short_b'] = nrm(next(kiter), (out_channels,))
        params['resnets'].append(rp)
    params['down_w'] = nrm(next(kiter), (3, 3, out_channels, out_channels))
    params['down_b'] = nrm(next(kiter), (out_channels,))
    return params


# ----------------------------------------------------------------------------- plain-JAX reference

def _ref_gn(x, g, b, groups, eps):
    N, H, W, C = x.shape
    cg = C // groups
    xg = x.reshape(N, H, W, groups, cg)
    m = xg.mean(axis=(1, 2, 4), keepdims=True)
    v = jnp.square(xg - m).mean(axis=(1, 2, 4), keepdims=True)
    xn = (xg - m) / jnp.sqrt(v + eps)
    return xn.reshape(N, H, W, C) * g + b


def _ref_conv(x, w, b, stride):
    y = jax.lax.conv_general_dilated(x, w, (stride, stride), ((1, 1), (1, 1)),
                                     dimension_numbers=('NHWC', 'HWIO', 'NHWC'))
    return y + b.reshape(1, 1, 1, -1)


def _ref_silu(x):
    return x * jax.nn.sigmoid(x)


def ref_block(x, params, groups, eps=1e-6, osf=1.0):
    for p in params['resnets']:
        h = _ref_silu(_ref_gn(x, p['gn1_g'], p['gn1_b'], groups, eps))
        h = _ref_conv(h, p['conv1_w'], p['conv1_b'], 1)
        h = _ref_silu(_ref_gn(h, p['gn2_g'], p['gn2_b'], groups, eps))
        h = _ref_conv(h, p['conv2_w'], p['conv2_b'], 1)
        if 'short_w' in p:
            x = jnp.einsum('nhwc,cd->nhwd', x, p['short_w']) + p['short_b']
        x = (x + h) / osf
    return _ref_conv(x, params['down_w'], params['down_b'], 2)


# ----------------------------------------------------------------------------- main

if __name__ == "__main__":
    key = jax.random.PRNGKey(0)
    kx, kp = jax.random.split(key)

    # Small synthetic config consistent with the module:
    #   in_channels=8, out_channels=16, num_layers=2, resnet_groups=4, add_downsample=True
    N, Cin, Cout, H, W = 2, 8, 16, 16, 16
    groups, eps = 4, 1e-6

    x_nchw = jax.random.normal(kx, (N, Cin, H, W), jnp.float32)   # PyTorch NCHW input
    x = jnp.transpose(x_nchw, (0, 2, 3, 1))                       # -> NHWC for the kernels

    params = init_params(kp, Cin, Cout, num_layers=2)

    out = down_encoder_block_2d(x, params, groups=groups, eps=eps,
                                output_scale_factor=1.0, add_downsample=True)
    out = jax.block_until_ready(out)
    assert out.shape == (N, H // 2, W // 2, Cout)

    ref = jax.block_until_ready(ref_block(x, params, groups=groups, eps=eps, osf=1.0))
    np.testing.assert_allclose(np.asarray(out), np.asarray(ref), atol=2e-3, rtol=2e-3)

    print("KERNEL_OK")
</pallas_src>

<mosaic_0001>
module attributes {stable_mosaic.version = 11 : i64} {
  func.func @kernel(%arg0: i32, %arg1: memref<1x16x16x8xf32, #tpu.memory_space<vmem>>, %arg2: memref<8x8xf32, #tpu.memory_space<vmem>>, %arg3: memref<1x8xf32, #tpu.memory_space<vmem>>, %arg4: memref<1x8xf32, #tpu.memory_space<vmem>>, %arg5: memref<72x16xf32, #tpu.memory_space<vmem>>, %arg6: memref<1x16xf32, #tpu.memory_space<vmem>>, %arg7: memref<16x16xf32, #tpu.memory_space<vmem>>, %arg8: memref<1x16xf32, #tpu.memory_space<vmem>>, %arg9: memref<1x16xf32, #tpu.memory_space<vmem>>, %arg10: memref<144x16xf32, #tpu.memory_space<vmem>>, %arg11: memref<1x16xf32, #tpu.memory_space<vmem>>, %arg12: memref<8x16xf32, #tpu.memory_space<vmem>>, %arg13: memref<1x16xf32, #tpu.memory_space<vmem>>, %arg14: memref<1x16x16x16xf32, #tpu.memory_space<vmem>>, %arg15: memref<18x25x8xf32, #tpu.memory_space<vmem>>, %arg16: memref<18x25x16xf32, #tpu.memory_space<vmem>>) attributes {dimension_semantics = [#tpu.dimension_semantics<parallel>], iteration_bounds = array<i64: 2>, scalar_prefetch = 0 : i64, scratch_operands = 2 : i64, tpu.core_type = #tpu.core_type<tc>, window_params = [{transform_indices = @transform_0, window_bounds = array<i64: 1, 16, 16, 8>}, {pipeline_mode = #tpu.pipeline_mode<synchronous>, transform_indices = @transform_1, window_bounds = array<i64: 8, 8>}, {pipeline_mode = #tpu.pipeline_mode<synchronous>, transform_indices = @transform_2, window_bounds = array<i64: 1, 8>}, {pipeline_mode = #tpu.pipeline_mode<synchronous>, transform_indices = @transform_3, window_bounds = array<i64: 1, 8>}, {pipeline_mode = #tpu.pipeline_mode<synchronous>, transform_indices = @transform_4, window_bounds = array<i64: 72, 16>}, {pipeline_mode = #tpu.pipeline_mode<synchronous>, transform_indices = @transform_5, window_bounds = array<i64: 1, 16>}, {pipeline_mode = #tpu.pipeline_mode<synchronous>, transform_indices = @transform_6, window_bounds = array<i64: 16, 16>}, {pipeline_mode = #tpu.pipeline_mode<synchronous>, transform_indices = @transform_7, window_bounds = array<i64: 1, 16>}, {pipeline_mode = #tpu.pipeline_mode<synchronous>, transform_indices = @transform_8, window_bounds = array<i64: 1, 16>}, {pipeline_mode = #tpu.pipeline_mode<synchronous>, transform_indices = @transform_9, window_bounds = array<i64: 144, 16>}, {pipeline_mode = #tpu.pipeline_mode<synchronous>, transform_indices = @transform_10, window_bounds = array<i64: 1, 16>}, {pipeline_mode = #tpu.pipeline_mode<synchronous>, transform_indices = @transform_11, window_bounds = array<i64: 8, 16>}, {pipeline_mode = #tpu.pipeline_mode<synchronous>, transform_indices = @transform_12, window_bounds = array<i64: 1, 16>}, {transform_indices = @transform_13, window_bounds = array<i64: 1, 16, 16, 16>}]} {
    %cst = arith.constant 0.000000e+00 : f32
    %0 = vector.broadcast %cst : f32 to vector<18x25x8xf32>
    %c0 = arith.constant 0 : index
    %c0_0 = arith.constant 0 : index
    %c0_1 = arith.constant 0 : index
    %1 = vector.load %arg15[%c0, %c0_0, %c0_1] : memref<18x25x8xf32, #tpu.memory_space<vmem>>, vector<18x25x8xf32>
    tpu.vector_store %arg15[%c0, %c0_0, %c0_1], %0 {strides = array<i32>} : memref<18x25x8xf32, #tpu.memory_space<vmem>>, vector<18x25x8xf32>,
    %cst_2 = arith.constant 0.000000e+00 : f32
    %2 = vector.broadcast %cst_2 : f32 to vector<18x25x16xf32>
    %c0_3 = arith.constant 0 : index
    %c0_4 = arith.constant 0 : index
    %c0_5 = arith.constant 0 : index
    %3 = vector.load %arg16[%c0_3, %c0_4, %c0_5] : memref<18x25x16xf32, #tpu.memory_space<vmem>>, vector<18x25x16xf32>
    tpu.vector_store %arg16[%c0_3, %c0_4, %c0_5], %2 {strides = array<i32>} : memref<18x25x16xf32, #tpu.memory_space<vmem>>, vector<18x25x16xf32>,
    %c0_6 = arith.constant 0 : index
    %c0_7 = arith.constant 0 : index
    %c0_8 = arith.constant 0 : index
    %c0_9 = arith.constant 0 : index
    %4 = vector.load %arg1[%c0_6, %c0_7, %c0_8, %c0_9] : memref<1x16x16x8xf32, #tpu.memory_space<vmem>>, vector<1x16x16x8xf32>
    %5 = vector.shape_cast %4 : vector<1x16x16x8xf32> to vector<16x16x8xf32>
    %6 = vector.shape_cast %5 : vector<16x16x8xf32> to vector<256x8xf32>
    %cst_10 = arith.constant dense<0.000000e+00> : vector<8xf32>
    %7 = vector.multi_reduction <add>, %6, %cst_10 [0] : vector<256x8xf32> to vector<8xf32>
    %8 = vector.shape_cast %7 : vector<8xf32> to vector<1x8xf32>
    %c0_11 = arith.constant 0 : index
    %c0_12 = arith.constant 0 : index
    %9 = vector.load %arg2[%c0_11, %c0_12] : memref<8x8xf32, #tpu.memory_space<vmem>>, vector<8x8xf32>
    %cst_13 = arith.constant dense<0.000000e+00> : vector<1x8xf32>
    %10 = tpu.matmul %8, %9, %cst_13 {dimension_numbers = #tpu.dot_dimension_numbers<[1], [0], [0], [1], [0, 0, 1, 1], [], []>} : vector<1x8xf32>, vector<8x8xf32>, vector<1x8xf32> -> vector<1x8xf32>
    %11 = vector.broadcast %10 : vector<1x8xf32> to vector<256x8xf32>
    %12 = arith.subf %6, %11 : vector<256x8xf32>
    %13 = arith.mulf %12, %12 : vector<256x8xf32>
    %cst_14 = arith.constant dense<0.000000e+00> : vector<8xf32>
    %14 = vector.multi_reduction <add>, %13, %cst_14 [0] : vector<256x8xf32> to vector<8xf32>
    %15 = vector.shape_cast %14 : vector<8xf32> to vector<1x8xf32>
    %c0_15 = arith.constant 0 : index
    %c0_16 = arith.constant 0 : index
    %16 = vector.load %arg2[%c0_15, %c0_16] : memref<8x8xf32, #tpu.memory_space<vmem>>, vector<8x8xf32>
    %cst_17 = arith.constant dense<0.000000e+00> : vector<1x8xf32>
    %17 = tpu.matmul %15, %16, %cst_17 {dimension_numbers = #tpu.dot_dimension_numbers<[1], [0], [0], [1], [0, 0, 1, 1], [], []>} : vector<1x8xf32>, vector<8x8xf32>, vector<1x8xf32> -> vector<1x8xf32>
    %cst_18 = arith.constant 9.99999997E-7 : f32
    %18 = vector.broadcast %cst_18 : f32 to vector<1x8xf32>
    %19 = arith.addf %17, %18 : vector<1x8xf32>
    %20 = math.rsqrt %19 : vector<1x8xf32>
    %21 = vector.broadcast %20 : vector<1x8xf32> to vector<256x8xf32>
    %22 = arith.mulf %12, %21 : vector<256x8xf32>
    %c0_19 = arith.constant 0 : index
    %c0_20 = arith.constant 0 : index
    %23 = vector.load %arg3[%c0_19, %c0_20] : memref<1x8xf32, #tpu.memory_space<vmem>>, vector<1x8xf32>
    %24 = vector.broadcast %23 : vector<1x8xf32> to vector<256x8xf32>
    %25 = arith.mulf %22, %24 : vector<256x8xf32>
    %c0_21 = arith.constant 0 : index
    %c0_22 = arith.constant 0 : index
    %26 = vector.load %arg4[%c0_21, %c0_22] : memref<1x8xf32, #tpu.memory_space<vmem>>, vector<1x8xf32>
    %27 = vector.broadcast %26 : vector<1x8xf32> to vector<256x8xf32>
    %28 = arith.addf %25, %27 : vector<256x8xf32>
    %29 = arith.negf %28 : vector<256x8xf32>
    %30 = math.exp %29 : vector<256x8xf32>
    %cst_23 = arith.constant 1.000000e+00 : f32
    %31 = vector.broadcast %cst_23 : f32 to vector<256x8xf32>
    %32 = arith.addf %31, %30 : vector<256x8xf32>
    %33 = arith.divf %31, %32 : vector<256x8xf32>
    %34 = arith.mulf %28, %33 : vector<256x8xf32>
    %35 = vector.shape_cast %34 : vector<256x8xf32> to vector<16x16x8xf32>
    %c1 = arith.constant 1 : index
    %c8 = arith.constant 8 : index
    %c0_24 = arith.constant 0 : index
    %36 = vector.load %arg15[%c1, %c8, %c0_24] : memref<18x25x8xf32, #tpu.memory_space<vmem>>, vector<16x16x8xf32>
    tpu.vector_store %arg15[%c1, %c8, %c0_24], %35 {strides = array<i32>} : memref<18x25x8xf32, #tpu.memory_space<vmem>>, vector<16x16x8xf32>,
    %c0_25 = arith.constant 0 : index
    %c7 = arith.constant 7 : index
    %c0_26 = arith.constant 0 : index
    %37 = vector.load %arg15[%c0_25, %c7, %c0_26] : memref<18x25x8xf32, #tpu.memory_space<vmem>>, vector<16x16x8xf32>
    %38 = vector.shape_cast %37 : vector<16x16x8xf32> to vector<256x8xf32>
    %c0_27 = arith.constant 0 : index
    %c8_28 = arith.constant 8 : index
    %c0_29 = arith.constant 0 : index
    %39 = vector.load %arg15[%c0_27, %c8_28, %c0_29] : memref<18x25x8xf32, #tpu.memory_space<vmem>>, vector<16x16x8xf32>
    %40 = vector.shape_cast %39 : vector<16x16x8xf32> to vector<256x8xf32>
    %c0_30 = arith.constant 0 : index
    %c9 = arith.constant 9 : index
    %c0_31 = arith.constant 0 : index
    %41 = vector.load %arg15[%c0_30, %c9, %c0_31] : memref<18x25x8xf32, #tpu.memory_space<vmem>>, vector<16x16x8xf32>
    %42 = vector.shape_cast %41 : vector<16x16x8xf32> to vector<256x8xf32>
    %c1_32 = arith.constant 1 : index
    %c7_33 = arith.constant 7 : index
    %c0_34 = arith.constant 0 : index
    %43 = vector.load %arg15[%c1_32, %c7_33, %c0_34] : memref<18x25x8xf32, #tpu.memory_space<vmem>>, vector<16x16x8xf32>
    %44 = vector.shape_cast %43 : vector<16x16x8xf32> to vector<256x8xf32>
    %c1_35 = arith.constant 1 : index
    %c8_36 = arith.constant 8 : index
    %c0_37 = arith.constant 0 : index
    %45 = vector.load %arg15[%c1_35, %c8_36, %c0_37] : memref<18x25x8xf32, #tpu.memory_space<vmem>>, vector<16x16x8xf32>
    %46 = vector.shape_cast %45 : vector<16x16x8xf32> to vector<256x8xf32>
    %c1_38 = arith.constant 1 : index
    %c9_39 = arith.constant 9 : index
    %c0_40 = arith.constant 0 : index
    %47 = vector.load %arg15[%c1_38, %c9_39, %c0_40] : memref<18x25x8xf32, #tpu.memory_space<vmem>>, vector<16x16x8xf32>
    %48 = vector.shape_cast %47 : vector<16x16x8xf32> to vector<256x8xf32>
    %c2 = arith.constant 2 : index
    %c7_41 = arith.constant 7 : index
    %c0_42 = arith.constant 0 : index
    %49 = vector.load %arg15[%c2, %c7_41, %c0_42] : memref<18x25x8xf32, #tpu.memory_space<vmem>>, vector<16x16x8xf32>
    %50 = vector.shape_cast %49 : vector<16x16x8xf32> to vector<256x8xf32>
    %c2_43 = arith.constant 2 : index
    %c8_44 = arith.constant 8 : index
    %c0_45 = arith.constant 0 : index
    %51 = vector.load %arg15[%c2_43, %c8_44, %c0_45] : memref<18x25x8xf32, #tpu.memory_space<vmem>>, vector<16x16x8xf32>
    %52 = vector.shape_cast %51 : vector<16x16x8xf32> to vector<256x8xf32>
    %c2_46 = arith.constant 2 : index
    %c9_47 = arith.constant 9 : index
    %c0_48 = arith.constant 0 : index
    %53 = vector.load %arg15[%c2_46, %c9_47, %c0_48] : memref<18x25x8xf32, #tpu.memory_space<vmem>>, vector<16x16x8xf32>
    %54 = vector.shape_cast %53 : vector<16x16x8xf32> to vector<256x8xf32>
    %55 = tpu.concatenate %38, %40, %42, %44, %46, %48, %50, %52, %54 in 1 : vector<256x8xf32>, vector<256x8xf32>, vector<256x8xf32>, vector<256x8xf32>, vector<256x8xf32>, vector<256x8xf32>, vector<256x8xf32>, vector<256x8xf32>, vector<256x8xf32> -> vector<256x72xf32>
    %c0_49 = arith.constant 0 : index
    %c0_50 = arith.constant 0 : index
    %56 = vector.load %arg5[%c0_49, %c0_50] : memref<72x16xf32, #tpu.memory_space<vmem>>, vector<72x16xf32>
    %cst_51 = arith.constant dense<0.000000e+00> : vector<256x16xf32>
    %57 = tpu.matmul %55, %56, %cst_51 {dimension_numbers = #tpu.dot_dimension_numbers<[1], [0], [0], [1], [0, 0, 1, 1], [], []>} : vector<256x72xf32>, vector<72x16xf32>, vector<256x16xf32> -> vector<256x16xf32>
    %c0_52 = arith.constant 0 : index
    %c0_53 = arith.constant 0 : index
    %58 = vector.load %arg6[%c0_52, %c0_53] : memref<1x16xf32, #tpu.memory_space<vmem>>, vector<1x16xf32>
    %59 = vector.broadcast %58 : vector<1x16xf32> to vector<256x16xf32>
    %60 = arith.addf %57, %59 : vector<256x16xf32>
    %cst_54 = arith.constant dense<0.000000e+00> : vector<16xf32>
    %61 = vector.multi_reduction <add>, %60, %cst_54 [0] : vector<256x16xf32> to vector<16xf32>
    %62 = vector.shape_cast %61 : vector<16xf32> to vector<1x16xf32>
    %c0_55 = arith.constant 0 : index
    %c0_56 = arith.constant 0 : index
    %63 = vector.load %arg7[%c0_55, %c0_56] : memref<16x16xf32, #tpu.memory_space<vmem>>, vector<16x16xf32>
    %cst_57 = arith.constant dense<0.000000e+00> : vector<1x16xf32>
    %64 = tpu.matmul %62, %63, %cst_57 {dimension_numbers = #tpu.dot_dimension_numbers<[1], [0], [0], [1], [0, 0, 1, 1], [], []>} : vector<1x16xf32>, vector<16x16xf32>, vector<1x16xf32> -> vector<1x16xf32>
    %65 = vector.broadcast %64 : vector<1x16xf32> to vector<256x16xf32>
    %66 = arith.subf %60, %65 : vector<256x16xf32>
    %67 = arith.mulf %66, %66 : vector<256x16xf32>
    %cst_58 = arith.constant dense<0.000000e+00> : vector<16xf32>
    %68 = vector.multi_reduction <add>, %67, %cst_58 [0] : vector<256x16xf32> to vector<16xf32>
    %69 = vector.shape_cast %68 : vector<16xf32> to vector<1x16xf32>
    %c0_59 = arith.constant 0 : index
    %c0_60 = arith.constant 0 : index
    %70 = vector.load %arg7[%c0_59, %c0_60] : memref<16x16xf32, #tpu.memory_space<vmem>>, vector<16x16xf32>
    %cst_61 = arith.constant dense<0.000000e+00> : vector<1x16xf32>
    %71 = tpu.matmul %69, %70, %cst_61 {dimension_numbers = #tpu.dot_dimension_numbers<[1], [0], [0], [1], [0, 0, 1, 1], [], []>} : vector<1x16xf32>, vector<16x16xf32>, vector<1x16xf32> -> vector<1x16xf32>
    %cst_62 = arith.constant 9.99999997E-7 : f32
    %72 = vector.broadcast %cst_62 : f32 to vector<1x16xf32>
    %73 = arith.addf %71, %72 : vector<1x16xf32>
    %74 = math.rsqrt %73 : vector<1x16xf32>
    %75 = vector.broadcast %74 : vector<1x16xf32> to vector<256x16xf32>
    %76 = arith.mulf %66, %75 : vector<256x16xf32>
    %c0_63 = arith.constant 0 : index
    %c0_64 = arith.constant 0 : index
    %77 = vector.load %arg8[%c0_63, %c0_64] : memref<1x16xf32, #tpu.memory_space<vmem>>, vector<1x16xf32>
    %78 = vector.broadcast %77 : vector<1x16xf32> to vector<256x16xf32>
    %79 = arith.mulf %76, %78 : vector<256x16xf32>
    %c0_65 = arith.constant 0 : index
    %c0_66 = arith.constant 0 : index
    %80 = vector.load %arg9[%c0_65, %c0_66] : memref<1x16xf32, #tpu.memory_space<vmem>>, vector<1x16xf32>
    %81 = vector.broadcast %80 : vector<1x16xf32> to vector<256x16xf32>
    %82 = arith.addf %79, %81 : vector<256x16xf32>
    %83 = arith.negf %82 : vector<256x16xf32>
    %84 = math.exp %83 : vector<256x16xf32>
    %cst_67 = arith.constant 1.000000e+00 : f32
    %85 = vector.broadcast %cst_67 : f32 to vector<256x16xf32>
    %86 = arith.addf %85, %84 : vector<256x16xf32>
    %87 = arith.divf %85, %86 : vector<256x16xf32>
    %88 = arith.mulf %82, %87 : vector<256x16xf32>
    %89 = vector.shape_cast %88 : vector<256x16xf32> to vector<16x16x16xf32>
    %c1_68 = arith.constant 1 : index
    %c8_69 = arith.constant 8 : index
    %c0_70 = arith.constant 0 : index
    %90 = vector.load %arg16[%c1_68, %c8_69, %c0_70] : memref<18x25x16xf32, #tpu.memory_space<vmem>>, vector<16x16x16xf32>
    tpu.vector_store %arg16[%c1_68, %c8_69, %c0_70], %89 {strides = array<i32>} : memref<18x25x16xf32, #tpu.memory_space<vmem>>, vector<16x16x16xf32>,
    %c0_71 = arith.constant 0 : index
    %c7_72 = arith.constant 7 : index
    %c0_73 = arith.constant 0 : index
    %91 = vector.load %arg16[%c0_71, %c7_72, %c0_73] : memref<18x25x16xf32, #tpu.memory_space<vmem>>, vector<16x16x16xf32>
    %92 = vector.shape_cast %91 : vector<16x16x16xf32> to vector<256x16xf32>
    %c0_74 = arith.constant 0 : index
    %c8_75 = arith.constant 8 : index
    %c0_76 = arith.constant 0 : index
    %93 = vector.load %arg16[%c0_74, %c8_75, %c0_76] : memref<18x25x16xf32, #tpu.memory_space<vmem>>, vector<16x16x16xf32>
    %94 = vector.shape_cast %93 : vector<16x16x16xf32> to vector<256x16xf32>
    %c0_77 = arith.constant 0 : index
    %c9_78 = arith.constant 9 : index
    %c0_79 = arith.constant 0 : index
    %95 = vector.load %arg16[%c0_77, %c9_78, %c0_79] : memref<18x25x16xf32, #tpu.memory_space<vmem>>, vector<16x16x16xf32>
    %96 = vector.shape_cast %95 : vector<16x16x16xf32> to vector<256x16xf32>
    %c1_80 = arith.constant 1 : index
    %c7_81 = arith.constant 7 : index
    %c0_82 = arith.constant 0 : index
    %97 = vector.load %arg16[%c1_80, %c7_81, %c0_82] : memref<18x25x16xf32, #tpu.memory_space<vmem>>, vector<16x16x16xf32>
    %98 = vector.shape_cast %97 : vector<16x16x16xf32> to vector<256x16xf32>
    %c1_83 = arith.constant 1 : index
    %c8_84 = arith.constant 8 : index
    %c0_85 = arith.constant 0 : index
    %99 = vector.load %arg16[%c1_83, %c8_84, %c0_85] : memref<18x25x16xf32, #tpu.memory_space<vmem>>, vector<16x16x16xf32>
    %100 = vector.shape_cast %99 : vector<16x16x16xf32> to vector<256x16xf32>
    %c1_86 = arith.constant 1 : index
    %c9_87 = arith.constant 9 : index
    %c0_88 = arith.constant 0 : index
    %101 = vector.load %arg16[%c1_86, %c9_87, %c0_88] : memref<18x25x16xf32, #tpu.memory_space<vmem>>, vector<16x16x16xf32>
    %102 = vector.shape_cast %101 : vector<16x16x16xf32> to vector<256x16xf32>
    %c2_89 = arith.constant 2 : index
    %c7_90 = arith.constant 7 : index
    %c0_91 = arith.constant 0 : index
    %103 = vector.load %arg16[%c2_89, %c7_90, %c0_91] : memref<18x25x16xf32, #tpu.memory_space<vmem>>, vector<16x16x16xf32>
    %104 = vector.shape_cast %103 : vector<16x16x16xf32> to vector<256x16xf32>
    %c2_92 = arith.constant 2 : index
    %c8_93 = arith.constant 8 : index
    %c0_94 = arith.constant 0 : index
    %105 = vector.load %arg16[%c2_92, %c8_93, %c0_94] : memref<18x25x16xf32, #tpu.memory_space<vmem>>, vector<16x16x16xf32>
    %106 = vector.shape_cast %105 : vector<16x16x16xf32> to vector<256x16xf32>
    %c2_95 = arith.constant 2 : index
    %c9_96 = arith.constant 9 : index
    %c0_97 = arith.constant 0 : index
    %107 = vector.load %arg16[%c2_95, %c9_96, %c0_97] : memref<18x25x16xf32, #tpu.memory_space<vmem>>, vector<16x16x16xf32>
    %108 = vector.shape_cast %107 : vector<16x16x16xf32> to vector<256x16xf32>
    %109 = tpu.concatenate %92, %94, %96, %98, %100, %102, %104, %106, %108 in 1 : vector<256x16xf32>, vector<256x16xf32>, vector<256x16xf32>, vector<256x16xf32>, vector<256x16xf32>, vector<256x16xf32>, vector<256x16xf32>, vector<256x16xf32>, vector<256x16xf32> -> vector<256x144xf32>
    %c0_98 = arith.constant 0 : index
    %c0_99 = arith.constant 0 : index
    %110 = vector.load %arg10[%c0_98, %c0_99] : memref<144x16xf32, #tpu.memory_space<vmem>>, vector<144x16xf32>
    %cst_100 = arith.constant dense<0.000000e+00> : vector<256x16xf32>
    %111 = tpu.matmul %109, %110, %cst_100 {dimension_numbers = #tpu.dot_dimension_numbers<[1], [0], [0], [1], [0, 0, 1, 1], [], []>} : vector<256x144xf32>, vector<144x16xf32>, vector<256x16xf32> -> vector<256x16xf32>
    %c0_101 = arith.constant 0 : index
    %c0_102 = arith.constant 0 : index
    %112 = vector.load %arg11[%c0_101, %c0_102] : memref<1x16xf32, #tpu.memory_space<vmem>>, vector<1x16xf32>
    %113 = vector.broadcast %112 : vector<1x16xf32> to vector<256x16xf32>
    %114 = arith.addf %111, %113 : vector<256x16xf32>
    %c0_103 = arith.constant 0 : index
    %c0_104 = arith.constant 0 : index
    %115 = vector.load %arg12[%c0_103, %c0_104] : memref<8x16xf32, #tpu.memory_space<vmem>>, vector<8x16xf32>
    %cst_105 = arith.constant dense<0.000000e+00> : vector<256x16xf32>
    %116 = tpu.matmul %6, %115, %cst_105 {dimension_numbers = #tpu.dot_dimension_numbers<[1], [0], [0], [1], [0, 0, 1, 1], [], []>} : vector<256x8xf32>, vector<8x16xf32>, vector<256x16xf32> -> vector<256x16xf32>
    %c0_106 = arith.constant 0 : index
    %c0_107 = arith.constant 0 : index
    %117 = vector.load %arg13[%c0_106, %c0_107] : memref<1x16xf32, #tpu.memory_space<vmem>>, vector<1x16xf32>
    %118 = vector.broadcast %117 : vector<1x16xf32> to vector<256x16xf32>
    %119 = arith.addf %116, %118 : vector<256x16xf32>
    %120 = arith.addf %119, %114 : vector<256x16xf32>
    %cst_108 = arith.constant 1.000000e+00 : f32
    %121 = vector.broadcast %cst_108 : f32 to vector<256x16xf32>
    %122 = arith.mulf %120, %121 : vector<256x16xf32>
    %123 = vector.shape_cast %122 : vector<256x16xf32> to vector<1x16x16x16xf32>
    %c0_109 = arith.constant 0 : index
    %c0_110 = arith.constant 0 : index
    %c0_111 = arith.constant 0 : index
    %c0_112 = arith.constant 0 : index
    %124 = vector.load %arg14[%c0_109, %c0_110, %c0_111, %c0_112] : memref<1x16x16x16xf32, #tpu.memory_space<vmem>>, vector<1x16x16x16xf32>
    tpu.vector_store %arg14[%c0_109, %c0_110, %c0_111, %c0_112], %123 {strides = array<i32>} : memref<1x16x16x16xf32, #tpu.memory_space<vmem>>, vector<1x16x16x16xf32>,
    return
  }
  func.func @transform_0(%arg0: i32) -> (i32, i32, i32, i32) {
    %c0_i32 = arith.constant 0 : i32
    %c0_i32_0 = arith.constant 0 : i32
    %c0_i32_1 = arith.constant 0 : i32
    %c0_i32_2 = arith.constant 0 : i32
    return %arg0, %c0_i32, %c0_i32_0, %c0_i32_1 : i32, i32, i32, i32
  }
  func.func @transform_1(%arg0: i32) -> (i32, i32) {
    %c0_i32 = arith.constant 0 : i32
    %c0_i32_0 = arith.constant 0 : i32
    %c0_i32_1 = arith.constant 0 : i32
    return %c0_i32, %c0_i32_0 : i32, i32
  }
  func.func @transform_2(%arg0: i32) -> (i32, i32) {
    %c0_i32 = arith.constant 0 : i32
    %c0_i32_0 = arith.constant 0 : i32
    %c0_i32_1 = arith.constant 0 : i32
    return %c0_i32, %c0_i32_0 : i32, i32
  }
  func.func @transform_3(%arg0: i32) -> (i32, i32) {
    %c0_i32 = arith.constant 0 : i32
    %c0_i32_0 = arith.constant 0 : i32
    %c0_i32_1 = arith.constant 0 : i32
    return %c0_i32, %c0_i32_0 : i32, i32
  }
  func.func @transform_4(%arg0: i32) -> (i32, i32) {
    %c0_i32 = arith.constant 0 : i32
    %c0_i32_0 = arith.constant 0 : i32
    %c0_i32_1 = arith.constant 0 : i32
    return %c0_i32, %c0_i32_0 : i32, i32
  }
  func.func @transform_5(%arg0: i32) -> (i32, i32) {
    %c0_i32 = arith.constant 0 : i32
    %c0_i32_0 = arith.constant 0 : i32
    %c0_i32_1 = arith.constant 0 : i32
    return %c0_i32, %c0_i32_0 : i32, i32
  }
  func.func @transform_6(%arg0: i32) -> (i32, i32) {
    %c0_i32 = arith.constant 0 : i32
    %c0_i32_0 = arith.constant 0 : i32
    %c0_i32_1 = arith.constant 0 : i32
    return %c0_i32, %c0_i32_0 : i32, i32
  }
  func.func @transform_7(%arg0: i32) -> (i32, i32) {
    %c0_i32 = arith.constant 0 : i32
    %c0_i32_0 = arith.constant 0 : i32
    %c0_i32_1 = arith.constant 0 : i32
    return %c0_i32, %c0_i32_0 : i32, i32
  }
  func.func @transform_8(%arg0: i32) -> (i32, i32) {
    %c0_i32 = arith.constant 0 : i32
    %c0_i32_0 = arith.constant 0 : i32
    %c0_i32_1 = arith.constant 0 : i32
    return %c0_i32, %c0_i32_0 : i32, i32
  }
  func.func @transform_9(%arg0: i32) -> (i32, i32) {
    %c0_i32 = arith.constant 0 : i32
    %c0_i32_0 = arith.constant 0 : i32
    %c0_i32_1 = arith.constant 0 : i32
    return %c0_i32, %c0_i32_0 : i32, i32
  }
  func.func @transform_10(%arg0: i32) -> (i32, i32) {
    %c0_i32 = arith.constant 0 : i32
    %c0_i32_0 = arith.constant 0 : i32
    %c0_i32_1 = arith.constant 0 : i32
    return %c0_i32, %c0_i32_0 : i32, i32
  }
  func.func @transform_11(%arg0: i32) -> (i32, i32) {
    %c0_i32 = arith.constant 0 : i32
    %c0_i32_0 = arith.constant 0 : i32
    %c0_i32_1 = arith.constant 0 : i32
    return %c0_i32, %c0_i32_0 : i32, i32
  }
  func.func @transform_12(%arg0: i32) -> (i32, i32) {
    %c0_i32 = arith.constant 0 : i32
    %c0_i32_0 = arith.constant 0 : i32
    %c0_i32_1 = arith.constant 0 : i32
    return %c0_i32, %c0_i32_0 : i32, i32
  }
  func.func @transform_13(%arg0: i32) -> (i32, i32, i32, i32) {
    %c0_i32 = arith.constant 0 : i32
    %c0_i32_0 = arith.constant 0 : i32
    %c0_i32_1 = arith.constant 0 : i32
    %c0_i32_2 = arith.constant 0 : i32
    return %arg0, %c0_i32, %c0_i32_0, %c0_i32_1 : i32, i32, i32, i32
  }
}

</mosaic_0001>

<llo_original>
// kernel: tpu_custom_call.1
$region0: #{tpu_custom_call.1}
  #allocation0 [shape = 'u32[]', space=smem, size = 0x4, offset = 0x4, fixed_abs, tag = 'smem constant byte address 0x4 - core index']
  #allocation1 [shape = 'u32[72,128]{1,0:T(1,128)}', space=vmem, size = 0x9000, scoped, tag = 'internal scratch']
  #allocation2 [shape = 'f32[18,25,8]{2,1,0:T(8,128)}', space=vmem, size = 0x48000, scoped, tag = 'scratch operand']
  #allocation3 [shape = 'f32[18,25,16]{2,1,0:T(8,128)}', space=vmem, size = 0x48000, scoped, tag = 'scratch operand']
  %s0 = inlined_call_operand.vmem [shape: f32[2,16,16,8], index: 0, kind: input, shape index: {}]
  %s1 = inlined_call_operand.vmem [shape: f32[8,8], index: 1, kind: input, shape index: {}]
  %s2 = inlined_call_operand.vmem [shape: f32[1,8], index: 2, kind: input, shape index: {}]
  %s3 = inlined_call_operand.vmem [shape: f32[1,8], index: 3, kind: input, shape index: {}]
  %s4 = inlined_call_operand.vmem [shape: f32[72,16], index: 4, kind: input, shape index: {}]
  %s5 = inlined_call_operand.vmem [shape: f32[1,16], index: 5, kind: input, shape index: {}]
  %s6 = inlined_call_operand.vmem [shape: f32[16,16], index: 6, kind: input, shape index: {}]
  %s7 = inlined_call_operand.vmem [shape: f32[1,16], index: 7, kind: input, shape index: {}]
  %s8 = inlined_call_operand.vmem [shape: f32[1,16], index: 8, kind: input, shape index: {}]
  %s9 = inlined_call_operand.vmem [shape: f32[144,16], index: 9, kind: input, shape index: {}]
  %s10 = inlined_call_operand.vmem [shape: f32[1,16], index: 10, kind: input, shape index: {}]
  %s11 = inlined_call_operand.vmem [shape: f32[8,16], index: 11, kind: input, shape index: {}]
  %s12 = inlined_call_operand.vmem [shape: f32[1,16], index: 12, kind: input, shape index: {}]
  %s13 = inlined_call_operand.hbm [shape: f32[2,16,16,16], index: 13, kind: output, shape index: {}]
  %s14 = sld [smem:[#allocation0]]
  $region85: #{tpu_custom_call.1} parent=0
    _
  %s16 = ssub.s32 1, %s14
  %s17 = scalar_select 0, %s16, %s14
  $region1: #{tpu_custom_call.1} parent=0
    #allocation4 [shape = 'u8[262144]{0}', space=vmem, size = 0x40000, scoped, tag = 'output window, operand 0']
    #allocation5 [shape = 's32[2]{0}', space=sflag, size = 0x8, scoped, tag = 'scoped memory for tpu_custom_call.1']
    %18 = vsyncpa [#allocation5], 0
    %s19 = scalar_lea.sflag [#allocation5], 1
    %20 = vsyncpa %s19, 0
    loop: start=0, step=1, limit=4
    $region2: #{tpu_custom_call.1} parent=1 // loop_pre_header
      _
    $region3: #{tpu_custom_call.1} parent=1 // loop_header
      %s22 = sphi 0, %s26
      %p23 = scmp.ge.s32.totalorder %s22, 4
      %s32 = sphi 0, %s34
      %s35 = sphi 0, %s32
      %s36 = sphi 0, %s35
      %s52 = sphi 0, %s36
      %s56 = sphi 0, %s56
      %s58 = sphi 0, %s56
      %s59 = sphi 0, %s58
      %s73 = sphi 0, %s59
      %s77 = sphi 0, %s77
      %s79 = sphi 0, %s77
      %s80 = sphi 0, %s79
      %s94 = sphi 0, %s80
      %s98 = sphi 0, %s98
      %s100 = sphi 0, %s98
      %s101 = sphi 0, %s100
      %s115 = sphi 0, %s101
      %s119 = sphi 0, %s119
      %s121 = sphi 0, %s119
      %s122 = sphi 0, %s121
      %s136 = sphi 0, %s122
      %s140 = sphi 0, %s140
      %s142 = sphi 0, %s140
      %s143 = sphi 0, %s142
      %s157 = sphi 0, %s143
      %s161 = sphi 0, %s161
      %s163 = sphi 0, %s161
      %s164 = sphi 0, %s163
      %s178 = sphi 0, %s164
      %s182 = sphi 0, %s182
      %s184 = sphi 0, %s182
      %s185 = sphi 0, %s184
      %s199 = sphi 0, %s185
      %s203 = sphi 0, %s203
      %s205 = sphi 0, %s203
      %s206 = sphi 0, %s205
      %s220 = sphi 0, %s206
      %s224 = sphi 0, %s224
      %s226 = sphi 0, %s224
      %s227 = sphi 0, %s226
      %s241 = sphi 0, %s227
      %s245 = sphi 0, %s245
      %s247 = sphi 0, %s245
      %s248 = sphi 0, %s247
      %s262 = sphi 0, %s248
      %s266 = sphi 0, %s266
      %s268 = sphi 0, %s266
      %s269 = sphi 0, %s268
      %s283 = sphi 0, %s269
      %s287 = sphi 0, %s287
      %s289 = sphi 0, %s287
      %s290 = sphi 0, %s289
      %s304 = sphi 0, %s290
      %s310 = sphi 0, %s312
      %s313 = sphi 0, %s310
      %s314 = sphi 0, %s313
      %s330 = sphi 0, %s314
    $region4: #{tpu_custom_call.1} parent=1 // loop_header_branch
      %25 = sbr.rel (%p23) target = $region8
    $region5: #{tpu_custom_call.1} parent=1 // loop_body
      %s27 = ssub.s32 %s22, 1
      %s28 = ssub.s32 %s22, 2
      %s29 = sadd.s32 %s22, 1
      %s30 = ssub.s32 %s22, %s29
      %p31 = scmp.eq.s32.totalorder %s30, 0
      %s33 = sadd.s32 %s32, 1
      %s34 = scalar_select %p31, %s32, %s33
      %p37 = pneg %p31
      %p38 = scmp.eq.s32.totalorder %s22, 1
      %p39 = por %p37, %p38
      %p40 = scmp.ne.s32.totalorder %s32, %s35
      %p41 = scmp.eq.s32.totalorder %s22, 0
      %p42 = por %p40, %p41
      %p43 = scmp.ne.s32.totalorder %s32, %s35
      %p44 = scmp.eq.s32.totalorder %s27, 1
      %p45 = por %p43, %p44
      %p46 = scmp.ne.s32.totalorder %s35, %s36
      %p47 = scmp.eq.s32.totalorder %s27, 0
      %p48 = por %p46, %p47
      %p49 = scmp.ne.s32.totalorder %s35, %s36
      %p50 = scmp.eq.s32.totalorder %s28, 1
      %p51 = por %p49, %p50
      %p53 = scmp.ne.s32.totalorder %s36, %s52
      %p54 = scmp.eq.s32.totalorder %s28, 0
      %p55 = por %p53, %p54
      %s57 = sadd.s32 %s56, 1
      %p60 = scmp.eq.s32.totalorder %s22, 1
      %p61 = scmp.ne.s32.totalorder %s56, %s58
      %p62 = scmp.eq.s32.totalorder %s22, 0
      %p63 = por %p61, %p62
      %p64 = scmp.ne.s32.totalorder %s56, %s58
      %p65 = scmp.eq.s32.totalorder %s27, 1
      %p66 = por %p64, %p65
      %p67 = scmp.ne.s32.totalorder %s58, %s59
      %p68 = scmp.eq.s32.totalorder %s27, 0
      %p69 = por %p67, %p68
      %p70 = scmp.ne.s32.totalorder %s58, %s59
      %p71 = scmp.eq.s32.totalorder %s28, 1
      %p72 = por %p70, %p71
      %p74 = scmp.ne.s32.totalorder %s59, %s73
      %p75 = scmp.eq.s32.totalorder %s28, 0
      %p76 = por %p74, %p75
      %s78 = sadd.s32 %s77, 1
      %p81 = scmp.eq.s32.totalorder %s22, 1
      %p82 = scmp.ne.s32.totalorder %s77, %s79
      %p83 = scmp.eq.s32.totalorder %s22, 0
      %p84 = por %p82, %p83
      %p85 = scmp.ne.s32.totalorder %s77, %s79
      %p86 = scmp.eq.s32.totalorder %s27, 1
      %p87 = por %p85, %p86
      %p88 = scmp.ne.s32.totalorder %s79, %s80
      %p89 = scmp.eq.s32.totalorder %s27, 0
      %p90 = por %p88, %p89
      %p91 = scmp.ne.s32.totalorder %s79, %s80
      %p92 = scmp.eq.s32.totalorder %s28, 1
      %p93 = por %p91, %p92
      %p95 = scmp.ne.s32.totalorder %s80, %s94
      %p96 = scmp.eq.s32.totalorder %s28, 0
      %p97 = por %p95, %p96
      %s99 = sadd.s32 %s98, 1
      %p102 = scmp.eq.s32.totalorder %s22, 1
      %p103 = scmp.ne.s32.totalorder %s98, %s100
      %p104 = scmp.eq.s32.totalorder %s22, 0
      %p105 = por %p103, %p104
      %p106 = scmp.ne.s32.totalorder %s98, %s100
      %p107 = scmp.eq.s32.totalorder %s27, 1
      %p108 = por %p106, %p107
      %p109 = scmp.ne.s32.totalorder %s100, %s101
      %p110 = scmp.eq.s32.totalorder %s27, 0
      %p111 = por %p109, %p110
      %p112 = scmp.ne.s32.totalorder %s100, %s101
      %p113 = scmp.eq.s32.totalorder %s28, 1
      %p114 = por %p112, %p113
      %p116 = scmp.ne.s32.totalorder %s101, %s115
      %p117 = scmp.eq.s32.totalorder %s28, 0
      %p118 = por %p116, %p117
      %s120 = sadd.s32 %s119, 1
      %p123 = scmp.eq.s32.totalorder %s22, 1
      %p124 = scmp.ne.s32.totalorder %s119, %s121
      %p125 = scmp.eq.s32.totalorder %s22, 0
      %p126 = por %p124, %p125
      %p127 = scmp.ne.s32.totalorder %s119, %s121
      %p128 = scmp.eq.s32.totalorder %s27, 1
      %p129 = por %p127, %p128
      %p130 = scmp.ne.s32.totalorder %s121, %s122
      %p131 = scmp.eq.s32.totalorder %s27, 0
      %p132 = por %p130, %p131
      %p133 = scmp.ne.s32.totalorder %s121, %s122
      %p134 = scmp.eq.s32.totalorder %s28, 1
      %p135 = por %p133, %p134
      %p137 = scmp.ne.s32.totalorder %s122, %s136
      %p138 = scmp.eq.s32.totalorder %s28, 0
      %p139 = por %p137, %p138
      %s141 = sadd.s32 %s140, 1
      %p144 = scmp.eq.s32.totalorder %s22, 1
      %p145 = scmp.ne.s32.totalorder %s140, %s142
      %p146 = scmp.eq.s32.totalorder %s22, 0
      %p147 = por %p145, %p146
      %p148 = scmp.ne.s32.totalorder %s140, %s142
      %p149 = scmp.eq.s32.totalorder %s27, 1
      %p150 = por %p148, %p149
      %p151 = scmp.ne.s32.totalorder %s142, %s143
      %p152 = scmp.eq.s32.totalorder %s27, 0
      %p153 = por %p151, %p152
      %p154 = scmp.ne.s32.totalorder %s142, %s143
      %p155 = scmp.eq.s32.totalorder %s28, 1
      %p156 = por %p154, %p155
      %p158 = scmp.ne.s32.totalorder %s143, %s157
      %p159 = scmp.eq.s32.totalorder %s28, 0
      %p160 = por %p158, %p159
      %s162 = sadd.s32 %s161, 1
      %p165 = scmp.eq.s32.totalorder %s22, 1
      %p166 = scmp.ne.s32.totalorder %s161, %s163
      %p167 = scmp.eq.s32.totalorder %s22, 0
      %p168 = por %p166, %p167
      %p169 = scmp.ne.s32.totalorder %s161, %s163
      %p170 = scmp.eq.s32.totalorder %s27, 1
      %p171 = por %p169, %p170
      %p172 = scmp.ne.s32.totalorder %s163, %s164
      %p173 = scmp.eq.s32.totalorder %s27, 0
      %p174 = por %p172, %p173
      %p175 = scmp.ne.s32.totalorder %s163, %s164
      %p176 = scmp.eq.s32.totalorder %s28, 1
      %p177 = por %p175, %p176
      %p179 = scmp.ne.s32.totalorder %s164, %s178
      %p180 = scmp.eq.s32.totalorder %s28, 0
      %p181 = por %p179, %p180
      %s183 = sadd.s32 %s182, 1
      %p186 = scmp.eq.s32.totalorder %s22, 1
      %p187 = scmp.ne.s32.totalorder %s182, %s184
      %p188 = scmp.eq.s32.totalorder %s22, 0
      %p189 = por %p187, %p188
      %p190 = scmp.ne.s32.totalorder %s182, %s184
      %p191 = scmp.eq.s32.totalorder %s27, 1
      %p192 = por %p190, %p191
      %p193 = scmp.ne.s32.totalorder %s184, %s185
      %p194 = scmp.eq.s32.totalorder %s27, 0
      %p195 = por %p193, %p194
      %p196 = scmp.ne.s32.totalorder %s184, %s185
      %p197 = scmp.eq.s32.totalorder %s28, 1
      %p198 = por %p196, %p197
      %p200 = scmp.ne.s32.totalorder %s185, %s199
      %p201 = scmp.eq.s32.totalorder %s28, 0
      %p202 = por %p200, %p201
      %s204 = sadd.s32 %s203, 1
      %p207 = scmp.eq.s32.totalorder %s22, 1
      %p208 = scmp.ne.s32.totalorder %s203, %s205
      %p209 = scmp.eq.s32.totalorder %s22, 0
      %p210 = por %p208, %p209
      %p211 = scmp.ne.s32.totalorder %s203, %s205
      %p212 = scmp.eq.s32.totalorder %s27, 1
      %p213 = por %p211, %p212
      %p214 = scmp.ne.s32.totalorder %s205, %s206
      %p215 = scmp.eq.s32.totalorder %s27, 0
      %p216 = por %p214, %p215
      %p217 = scmp.ne.s32.totalorder %s205, %s206
      %p218 = scmp.eq.s32.totalorder %s28, 1
      %p219 = por %p217, %p218
      %p221 = scmp.ne.s32.totalorder %s206, %s220
      %p222 = scmp.eq.s32.totalorder %s28, 0
      %p223 = por %p221, %p222
      %s225 = sadd.s32 %s224, 1
      %p228 = scmp.eq.s32.totalorder %s22, 1
      %p229 = scmp.ne.s32.totalorder %s224, %s226
      %p230 = scmp.eq.s32.totalorder %s22, 0
      %p231 = por %p229, %p230
      %p232 = scmp.ne.s32.totalorder %s224, %s226
      %p233 = scmp.eq.s32.totalorder %s27, 1
      %p234 = por %p232, %p233
      %p235 = scmp.ne.s32.totalorder %s226, %s227
      %p236 = scmp.eq.s32.totalorder %s27, 0
      %p237 = por %p235, %p236
      %p238 = scmp.ne.s32.totalorder %s226, %s227
      %p239 = scmp.eq.s32.totalorder %s28, 1
      %p240 = por %p238, %p239
      %p242 = scmp.ne.s32.totalorder %s227, %s241
      %p243 = scmp.eq.s32.totalorder %s28, 0
      %p244 = por %p242, %p243
      %s246 = sadd.s32 %s245, 1
      %p249 = scmp.eq.s32.totalorder %s22, 1
      %p250 = scmp.ne.s32.totalorder %s245, %s247
      %p251 = scmp.eq.s32.totalorder %s22, 0
      %p252 = por %p250, %p251
      %p253 = scmp.ne.s32.totalorder %s245, %s247
      %p254 = scmp.eq.s32.totalorder %s27, 1
      %p255 = por %p253, %p254
      %p256 = scmp.ne.s32.totalorder %s247, %s248
      %p257 = scmp.eq.s32.totalorder %s27, 0
      %p258 = por %p256, %p257
      %p259 = scmp.ne.s32.totalorder %s247, %s248
      %p260 = scmp.eq.s32.totalorder %s28, 1
      %p261 = por %p259, %p260
      %p263 = scmp.ne.s32.totalorder %s248, %s262
      %p264 = scmp.eq.s32.totalorder %s28, 0
      %p265 = por %p263, %p264
      %s267 = sadd.s32 %s266, 1
      %p270 = scmp.eq.s32.totalorder %s22, 1
      %p271 = scmp.ne.s32.totalorder %s266, %s268
      %p272 = scmp.eq.s32.totalorder %s22, 0
      %p273 = por %p271, %p272
      %p274 = scmp.ne.s32.totalorder %s266, %s268
      %p275 = scmp.eq.s32.totalorder %s27, 1
      %p276 = por %p274, %p275
      %p277 = scmp.ne.s32.totalorder %s268, %s269
      %p278 = scmp.eq.s32.totalorder %s27, 0
      %p279 = por %p277, %p278
      %p280 = scmp.ne.s32.totalorder %s268, %s269
      %p281 = scmp.eq.s32.totalorder %s28, 1
      %p282 = por %p280, %p281
      %p284 = scmp.ne.s32.totalorder %s269, %s283
      %p285 = scmp.eq.s32.totalorder %s28, 0
      %p286 = por %p284, %p285
      %s288 = sadd.s32 %s287, 1
      %p291 = scmp.eq.s32.totalorder %s22, 1
      %p292 = scmp.ne.s32.totalorder %s287, %s289
      %p293 = scmp.eq.s32.totalorder %s22, 0
      %p294 = por %p292, %p293
      %p295 = scmp.ne.s32.totalorder %s287, %s289
      %p296 = scmp.eq.s32.totalorder %s27, 1
      %p297 = por %p295, %p296
      %p298 = scmp.ne.s32.totalorder %s289, %s290
      %p299 = scmp.eq.s32.totalorder %s27, 0
      %p300 = por %p298, %p299
      %p301 = scmp.ne.s32.totalorder %s289, %s290
      %p302 = scmp.eq.s32.totalorder %s28, 1
      %p303 = por %p301, %p302
      %p305 = scmp.ne.s32.totalorder %s290, %s304
      %p306 = scmp.eq.s32.totalorder %s28, 0
      %p307 = por %p305, %p306
      %s308 = ssub.s32 %s22, %s29
      %p309 = scmp.eq.s32.totalorder %s308, 0
      %s311 = sadd.s32 %s310, 1
      %s312 = scalar_select %p309, %s310, %s311
      %p315 = pneg %p309
      %p316 = scmp.eq.s32.totalorder %s22, 1
      %p317 = por %p315, %p316
      %p318 = scmp.ne.s32.totalorder %s310, %s313
      %p319 = scmp.eq.s32.totalorder %s22, 0
      %p320 = por %p318, %p319
      %p321 = scmp.ne.s32.totalorder %s310, %s313
      %p322 = scmp.eq.s32.totalorder %s27, 1
      %p323 = por %p321, %p322
      %p324 = scmp.ne.s32.totalorder %s313, %s314
      %p325 = scmp.eq.s32.totalorder %s27, 0
      %p326 = por %p324, %p325
      %p327 = scmp.ne.s32.totalorder %s313, %s314
      %p328 = scmp.eq.s32.totalorder %s28, 1
      %p329 = por %p327, %p328
      %p331 = scmp.ne.s32.totalorder %s314, %s330
      %p332 = scmp.eq.s32.totalorder %s28, 0
      %p333 = por %p331, %p332
      %p334 = scmp.le.s32.totalorder 1, %s22
      %p335 = scmp.lt.s32.totalorder %s22, 3
      %p336 = pnand %p334, %p335
      %p337 = pneg %p336
      // Predicated region
      $region9: #{tpu_custom_call.1} parent=5 // pred_check
        _
      $region10: #{tpu_custom_call.1} parent=5 // pred_check_branch
        %339 = sbr.rel (%p336) target = $region12
      $region11: #{tpu_custom_call.1} parent=5 // pred_region
        %s340 = ssub.s32 %s22, 1
        // Predicated region
        $region13: #{tpu_custom_call.1} parent=11 // pred_check
          %p341 = pneg %p69
        $region14: #{tpu_custom_call.1} parent=11 // pred_check_branch
          %343 = sbr.rel (%p341) target = $region16
        $region15: #{tpu_custom_call.1} parent=11 // pred_region
          _
        $region16: #{tpu_custom_call.1} parent=11 // pred_fallthru
          _
        // Predicated region
        $region17: #{tpu_custom_call.1} parent=11 // pred_check
          %p344 = pneg %p90
        $region18: #{tpu_custom_call.1} parent=11 // pred_check_branch
          %346 = sbr.rel (%p344) target = $region20
        $region19: #{tpu_custom_call.1} parent=11 // pred_region
          _
        $region20: #{tpu_custom_call.1} parent=11 // pred_fallthru
          _
        // Predicated region
        $region21: #{tpu_custom_call.1} parent=11 // pred_check
          %p347 = pneg %p111
        $region22: #{tpu_custom_call.1} parent=11 // pred_check_branch
          %349 = sbr.rel (%p347) target = $region24
        $region23: #{tpu_custom_call.1} parent=11 // pred_region
          _
        $region24: #{tpu_custom_call.1} parent=11 // pred_fallthru
          _
        // Predicated region
        $region25: #{tpu_custom_call.1} parent=11 // pred_check
          %p350 = pneg %p132
        $region26: #{tpu_custom_call.1} parent=11 // pred_check_branch
          %352 = sbr.rel (%p350) target = $region28
        $region27: #{tpu_custom_call.1} parent=11 // pred_region
          _
        $region28: #{tpu_custom_call.1} parent=11 // pred_fallthru
          _
        // Predicated region
        $region29: #{tpu_custom_call.1} parent=11 // pred_check
          %p353 = pneg %p153
        $region30: #{tpu_custom_call.1} parent=11 // pred_check_branch
          %355 = sbr.rel (%p353) target = $region32
        $region31: #{tpu_custom_call.1} parent=11 // pred_region
          _
        $region32: #{tpu_custom_call.1} parent=11 // pred_fallthru
          _
        // Predicated region
        $region33: #{tpu_custom_call.1} parent=11 // pred_check
          %p356 = pneg %p174
        $region34: #{tpu_custom_call.1} parent=11 // pred_check_branch
          %358 = sbr.rel (%p356) target = $region36
        $region35: #{tpu_custom_call.1} parent=11 // pred_region
          _
        $region36: #{tpu_custom_call.1} parent=11 // pred_fallthru
          _
        // Predicated region
        $region37: #{tpu_custom_call.1} parent=11 // pred_check
          %p359 = pneg %p195
        $region38: #{tpu_custom_call.1} parent=11 // pred_check_branch
          %361 = sbr.rel (%p359) target = $region40
        $region39: #{tpu_custom_call.1} parent=11 // pred_region
          _
        $region40: #{tpu_custom_call.1} parent=11 // pred_fallthru
          _
        // Predicated region
        $region41: #{tpu_custom_call.1} parent=11 // pred_check
          %p362 = pneg %p216
        $region42: #{tpu_custom_call.1} parent=11 // pred_check_branch
          %364 = sbr.rel (%p362) target = $region44
        $region43: #{tpu_custom_call.1} parent=11 // pred_region
          _
        $region44: #{tpu_custom_call.1} parent=11 // pred_fallthru
          _
        // Predicated region
        $region45: #{tpu_custom_call.1} parent=11 // pred_check
          %p365 = pneg %p237
        $region46: #{tpu_custom_call.1} parent=11 // pred_check_branch
          %367 = sbr.rel (%p365) target = $region48
        $region47: #{tpu_custom_call.1} parent=11 // pred_region
          _
        $region48: #{tpu_custom_call.1} parent=11 // pred_fallthru
          _
        // Predicated region
        $region49: #{tpu_custom_call.1} parent=11 // pred_check
          %p368 = pneg %p258
        $region50: #{tpu_custom_call.1} parent=11 // pred_check_branch
          %370 = sbr.rel (%p368) target = $region52
        $region51: #{tpu_custom_call.1} parent=11 // pred_region
          _
        $region52: #{tpu_custom_call.1} parent=11 // pred_fallthru
          _
        // Predicated region
        $region53: #{tpu_custom_call.1} parent=11 // pred_check
          %p371 = pneg %p279
        $region54: #{tpu_custom_call.1} parent=11 // pred_check_branch
          %373 = sbr.rel (%p371) target = $region56
        $region55: #{tpu_custom_call.1} parent=11 // pred_region
          _
        $region56: #{tpu_custom_call.1} parent=11 // pred_fallthru
          _
        // Predicated region
        $region57: #{tpu_custom_call.1} parent=11 // pred_check
          %p374 = pneg %p300
        $region58: #{tpu_custom_call.1} parent=11 // pred_check_branch
          %376 = sbr.rel (%p374) target = $region60
        $region59: #{tpu_custom_call.1} parent=11 // pred_region
          _
        $region60: #{tpu_custom_call.1} parent=11 // pred_fallthru
          _
      $region12: #{tpu_custom_call.1} parent=5 // pred_fallthru
        _
      %p377 = scmp.lt.s32.totalorder %s22, 2
      // Predicated region
      $region61: #{tpu_custom_call.1} parent=5 // pred_check
        %p378 = pneg %p377
      $region62: #{tpu_custom_call.1} parent=5 // pred_check_branch
        %380 = sbr.rel (%p378) target = $region64
      $region63: #{tpu_custom_call.1} parent=5 // pred_region
        // Predicated region
        $region65: #{tpu_custom_call.1} parent=63 // pred_check
          %p381 = pneg %p42
        $region66: #{tpu_custom_call.1} parent=63 // pred_check_branch
          %383 = sbr.rel (%p381) target = $region68
        $region67: #{tpu_custom_call.1} parent=63 // pred_region
          %p384 = scmp.lt.s32.totalorder %s22, 1
          %s385 = scalar_select %p384, %s22, 1
          %s386 = smul.addr %s385, 32
          %s387 = smul.addr %s386, 8
          %s388 = scalar_lea.vmem %s0, %s387
        $region68: #{tpu_custom_call.1} parent=63 // pred_fallthru
          _
      $region64: #{tpu_custom_call.1} parent=5 // pred_fallthru
        _
      %p389 = scmp.le.s32.totalorder 1, %s22
      %p390 = scmp.lt.s32.totalorder %s22, 3
      %p391 = pnand %p389, %p390
      %p392 = pneg %p391
      // Predicated region
      $region69: #{tpu_custom_call.1} parent=5 // pred_check
        _
      $region70: #{tpu_custom_call.1} parent=5 // pred_check_branch
        %394 = sbr.rel (%p391) target = $region72
      $region71: #{tpu_custom_call.1} parent=5 // pred_region
        %s395 = ssub.s32 %s22, 1
        %p396 = scmp.lt.s32.totalorder %s27, 1
        %s397 = scalar_select %p396, %s27, 1
        %s398 = smul.addr %s397, 32
        %s399 = smul.addr %s398, 8
        %s400 = scalar_lea.vmem %s0, %s399
        %p401 = pneg %p48
        %p402 = pneg %p45
        %p403 = pneg %p69
        %p404 = pneg %p66
        %p405 = pneg %p90
        %p406 = pneg %p87
        %p407 = pneg %p111
        %p408 = pneg %p108
        %p409 = pneg %p132
        %p410 = pneg %p129
        %p411 = pneg %p153
        %p412 = pneg %p150
        %p413 = pneg %p174
        %p414 = pneg %p171
        %p415 = pneg %p195
        %p416 = pneg %p192
        %p417 = pneg %p216
        %p418 = pneg %p213
        %p419 = pneg %p237
        %p420 = pneg %p234
        %p421 = pneg %p258
        %p422 = pneg %p255
        %p423 = pneg %p279
        %p424 = pneg %p276
        %p425 = pneg %p300
        %p426 = pneg %p297
        %p427 = pneg %p326
        %p428 = pneg %p323
        %s429 = sand.u32 %s313, 1
        %s430 = scalar_lea.sflag [#allocation5], %s429
        %s431 = sand.u32 %s313, 1
        %s432 = smul.addr %s431, 256
        %s433 = scalar_lea.vmem [#allocation4], %s432
        %p434 = scmp.lt.s32.totalorder %s27, 1
        %s435 = scalar_select %p434, %s27, 1
        %s436 = smul.addr %s435, 32
        %s437 = smul.addr %s436, 8
        %s438 = scalar_lea.vmem %s0, %s437
        %vm439 = vcmask 64512
        %440 = vst.msk [vmem:[#allocation2] sm:$0xff] %vm439, 0.0
        %441 = vst.msk [vmem:[#allocation2 + $0x8] sm:$0xff] %vm439, 0.0
        %442 = vst.msk [vmem:[#allocation2 + $0x10] sm:$0xff] %vm439, 0.0
        %vm443 = vcmask 57344
        %444 = vst.msk [vmem:[#allocation2 + $0x18] sm:$0x1] %vm443, 0.0
        %445 = vst.msk [vmem:[#allocation2 + $0x20] sm:$0xff] %vm439, 0.0
        %446 = vst.msk [vmem:[#allocation2 + $0x28] sm:$0xff] %vm439, 0.0
        %447 = vst.msk [vmem:[#allocation2 + $0x30] sm:$0xff] %vm439, 0.0
        %448 = vst.msk [vmem:[#allocation2 + $0x38] sm:$0x1] %vm443, 0.0
        %449 = vst.msk [vmem:[#allocation2 + $0x40] sm:$0xff] %vm439, 0.0
        %450 = vst.msk [vmem:[#allocation2 + $0x48] sm:$0xff] %vm439, 0.0
        %451 = vst.msk [vmem:[#allocation2 + $0x50] sm:$0xff] %vm439, 0.0
        %452 = vst.msk [vmem:[#allocation2 + $0x58] sm:$0x1] %vm443, 0.0
        %453 = vst.msk [vmem:[#allocation2 + $0x60] sm:$0xff] %vm439, 0.0
        %454 = vst.msk [vmem:[#allocation2 + $0x68] sm:$0xff] %vm439, 0.0
        %455 = vst.msk [vmem:[#allocation2 + $0x70] sm:$0xff] %vm439, 0.0
        %456 = vst.msk [vmem:[#allocation2 + $0x78] sm:$0x1] %vm443, 0.0
        %457 = vst.msk [vmem:[#allocation2 + $0x80] sm:$0xff] %vm439, 0.0
        %458 = vst.msk [vmem:[#allocation2 + $0x88] sm:$0xff] %vm439, 0.0
        %459 = vst.msk [vmem:[#allocation2 + $0x90] sm:$0xff] %vm439, 0.0
        %460 = vst.msk [vmem:[#allocation2 + $0x98] sm:$0x1] %vm443, 0.0
        %461 = vst.msk [vmem:[#allocation2 + $0xa0] sm:$0xff] %vm439, 0.0
        %462 = vst.msk [vmem:[#allocation2 + $0xa8] sm:$0xff] %vm439, 0.0
        %463 = vst.msk [vmem:[#allocation2 + $0xb0] sm:$0xff] %vm439, 0.0
        %464 = vst.msk [vmem:[#allocation2 + $0xb8] sm:$0x1] %vm443, 0.0
        %465 = vst.msk [vmem:[#allocation2 + $0xc0] sm:$0xff] %vm439, 0.0
        %466 = vst.msk [vmem:[#allocation2 + $0xc8] sm:$0xff] %vm439, 0.0
        %467 = vst.msk [vmem:[#allocation2 + $0xd0] sm:$0xff] %vm439, 0.0
        %468 = vst.msk [vmem:[#allocation2 + $0xd8] sm:$0x1] %vm443, 0.0
        %469 = vst.msk [vmem:[#allocation2 + $0xe0] sm:$0xff] %vm439, 0.0
        %470 = vst.msk [vmem:[#allocation2 + $0xe8] sm:$0xff] %vm439, 0.0
        %471 = vst.msk [vmem:[#allocation2 + $0xf0] sm:$0xff] %vm439, 0.0
        %472 = vst.msk [vmem:[#allocation2 + $0xf8] sm:$0x1] %vm443, 0.0
        %473 = vst.msk [vmem:[#allocation2 + $0x100] sm:$0xff] %vm439, 0.0
        %474 = vst.msk [vmem:[#allocation2 + $0x108] sm:$0xff] %vm439, 0.0
        %475 = vst.msk [vmem:[#allocation2 + $0x110] sm:$0xff] %vm439, 0.0
        %476 = vst.msk [vmem:[#allocation2 + $0x118] sm:$0x1] %vm443, 0.0
        %477 = vst.msk [vmem:[#allocation2 + $0x120] sm:$0xff] %vm439, 0.0
        %478 = vst.msk [vmem:[#allocation2 + $0x128] sm:$0xff] %vm439, 0.0
        %479 = vst.msk [vmem:[#allocation2 + $0x130] sm:$0xff] %vm439, 0.0
        %480 = vst.msk [vmem:[#allocation2 + $0x138] sm:$0x1] %vm443, 0.0
        %481 = vst.msk [vmem:[#allocation2 + $0x140] sm:$0xff] %vm439, 0.0
        %482 = vst.msk [vmem:[#allocation2 + $0x148] sm:$0xff] %vm439, 0.0
        %483 = vst.msk [vmem:[#allocation2 + $0x150] sm:$0xff] %vm439, 0.0
        %484 = vst.msk [vmem:[#allocation2 + $0x158] sm:$0x1] %vm443, 0.0
        %485 = vst.msk [vmem:[#allocation2 + $0x160] sm:$0xff] %vm439, 0.0
        %486 = vst.msk [vmem:[#allocation2 + $0x168] sm:$0xff] %vm439, 0.0
        %487 = vst.msk [vmem:[#allocation2 + $0x170] sm:$0xff] %vm439, 0.0
        %488 = vst.msk [vmem:[#allocation2 + $0x178] sm:$0x1] %vm443, 0.0
        %489 = vst.msk [vmem:[#allocation2 + $0x180] sm:$0xff] %vm439, 0.0
        %490 = vst.msk [vmem:[#allocation2 + $0x188] sm:$0xff] %vm439, 0.0
        %491 = vst.msk [vmem:[#allocation2 + $0x190] sm:$0xff] %vm439, 0.0
        %492 = vst.msk [vmem:[#allocation2 + $0x198] sm:$0x1] %vm443, 0.0
        %493 = vst.msk [vmem:[#allocation2 + $0x1a0] sm:$0xff] %vm439, 0.0
        %494 = vst.msk [vmem:[#allocation2 + $0x1a8] sm:$0xff] %vm439, 0.0
        %495 = vst.msk [vmem:[#allocation2 + $0x1b0] sm:$0xff] %vm439, 0.0
        %496 = vst.msk [vmem:[#allocation2 + $0x1b8] sm:$0x1] %vm443, 0.0
        %497 = vst.msk [vmem:[#allocation2 + $0x1c0] sm:$0xff] %vm439, 0.0
        %498 = vst.msk [vmem:[#allocation2 + $0x1c8] sm:$0xff] %vm439, 0.0
        %499 = vst.msk [vmem:[#allocation2 + $0x1d0] sm:$0xff] %vm439, 0.0
        %500 = vst.msk [vmem:[#allocation2 + $0x1d8] sm:$0x1] %vm443, 0.0
        %501 = vst.msk [vmem:[#allocation2 + $0x1e0] sm:$0xff] %vm439, 0.0
        %502 = vst.msk [vmem:[#allocation2 + $0x1e8] sm:$0xff] %vm439, 0.0
        %503 = vst.msk [vmem:[#allocation2 + $0x1f0] sm:$0xff] %vm439, 0.0
        %504 = vst.msk [vmem:[#allocation2 + $0x1f8] sm:$0x1] %vm443, 0.0
        %505 = vst.msk [vmem:[#allocation2 + $0x200] sm:$0xff] %vm439, 0.0
        %506 = vst.msk [vmem:[#allocation2 + $0x208] sm:$0xff] %vm439, 0.0
        %507 = vst.msk [vmem:[#allocation2 + $0x210] sm:$0xff] %vm439, 0.0
        %508 = vst.msk [vmem:[#allocation2 + $0x218] sm:$0x1] %vm443, 0.0
        %509 = vst.msk [vmem:[#allocation2 + $0x220] sm:$0xff] %vm439, 0.0
        %510 = vst.msk [vmem:[#allocation2 + $0x228] sm:$0xff] %vm439, 0.0
        %511 = vst.msk [vmem:[#allocation2 + $0x230] sm:$0xff] %vm439, 0.0
        %512 = vst.msk [vmem:[#allocation2 + $0x238] sm:$0x1] %vm443, 0.0
        %vm513 = vcmask 130048
        %514 = vst.msk [vmem:[#allocation3] sm:$0xff] %vm513, 0.0
        %515 = vst.msk [vmem:[#allocation3 + $0x8] sm:$0xff] %vm513, 0.0
        %516 = vst.msk [vmem:[#allocation3 + $0x10] sm:$0xff] %vm513, 0.0
        %vm517 = vcmask 122880
        %518 = vst.msk [vmem:[#allocation3 + $0x18] sm:$0x1] %vm517, 0.0
        %519 = vst.msk [vmem:[#allocation3 + $0x20] sm:$0xff] %vm513, 0.0
        %520 = vst.msk [vmem:[#allocation3 + $0x28] sm:$0xff] %vm513, 0.0
        %521 = vst.msk [vmem:[#allocation3 + $0x30] sm:$0xff] %vm513, 0.0
        %522 = vst.msk [vmem:[#allocation3 + $0x38] sm:$0x1] %vm517, 0.0
        %523 = vst.msk [vmem:[#allocation3 + $0x40] sm:$0xff] %vm513, 0.0
        %524 = vst.msk [vmem:[#allocation3 + $0x48] sm:$0xff] %vm513, 0.0
        %525 = vst.msk [vmem:[#allocation3 + $0x50] sm:$0xff] %vm513, 0.0
        %526 = vst.msk [vmem:[#allocation3 + $0x58] sm:$0x1] %vm517, 0.0
        %527 = vst.msk [vmem:[#allocation3 + $0x60] sm:$0xff] %vm513, 0.0
        %528 = vst.msk [vmem:[#allocation3 + $0x68] sm:$0xff] %vm513, 0.0
        %529 = vst.msk [vmem:[#allocation3 + $0x70] sm:$0xff] %vm513, 0.0
        %530 = vst.msk [vmem:[#allocation3 + $0x78] sm:$0x1] %vm517, 0.0
        %531 = vst.msk [vmem:[#allocation3 + $0x80] sm:$0xff] %vm513, 0.0
        %532 = vst.msk [vmem:[#allocation3 + $0x88] sm:$0xff] %vm513, 0.0
        %533 = vst.msk [vmem:[#allocation3 + $0x90] sm:$0xff] %vm513, 0.0
        %534 = vst.msk [vmem:[#allocation3 + $0x98] sm:$0x1] %vm517, 0.0
        %535 = vst.msk [vmem:[#allocation3 + $0xa0] sm:$0xff] %vm513, 0.0
        %536 = vst.msk [vmem:[#allocation3 + $0xa8] sm:$0xff] %vm513, 0.0
        %537 = vst.msk [vmem:[#allocation3 + $0xb0] sm:$0xff] %vm513, 0.0
        %538 = vst.msk [vmem:[#allocation3 + $0xb8] sm:$0x1] %vm517, 0.0
        %539 = vst.msk [vmem:[#allocation3 + $0xc0] sm:$0xff] %vm513, 0.0
        %540 = vst.msk [vmem:[#allocation3 + $0xc8] sm:$0xff] %vm513, 0.0
        %541 = vst.msk [vmem:[#allocation3 + $0xd0] sm:$0xff] %vm513, 0.0
        %542 = vst.msk [vmem:[#allocation3 + $0xd8] sm:$0x1] %vm517, 0.0
        %543 = vst.msk [vmem:[#allocation3 + $0xe0] sm:$0xff] %vm513, 0.0
        %544 = vst.msk [vmem:[#allocation3 + $0xe8] sm:$0xff] %vm513, 0.0
        %545 = vst.msk [vmem:[#allocation3 + $0xf0] sm:$0xff] %vm513, 0.0
        %546 = vst.msk [vmem:[#allocation3 + $0xf8] sm:$0x1] %vm517, 0.0
        %547 = vst.msk [vmem:[#allocation3 + $0x100] sm:$0xff] %vm513, 0.0
        %548 = vst.msk [vmem:[#allocation3 + $0x108] sm:$0xff] %vm513, 0.0
        %549 = vst.msk [vmem:[#allocation3 + $0x110] sm:$0xff] %vm513, 0.0
        %550 = vst.msk [vmem:[#allocation3 + $0x118] sm:$0x1] %vm517, 0.0
        %551 = vst.msk [vmem:[#allocation3 + $0x120] sm:$0xff] %vm513, 0.0
        %552 = vst.msk [vmem:[#allocation3 + $0x128] sm:$0xff] %vm513, 0.0
        %553 = vst.msk [vmem:[#allocation3 + $0x130] sm:$0xff] %vm513, 0.0
        %554 = vst.msk [vmem:[#allocation3 + $0x138] sm:$0x1] %vm517, 0.0
        %555 = vst.msk [vmem:[#allocation3 + $0x140] sm:$0xff] %vm513, 0.0
        %556 = vst.msk [vmem:[#allocation3 + $0x148] sm:$0xff] %vm513, 0.0
        %557 = vst.msk [vmem:[#allocation3 + $0x150] sm:$0xff] %vm513, 0.0
        %558 = vst.msk [vmem:[#allocation3 + $0x158] sm:$0x1] %vm517, 0.0
        %559 = vst.msk [vmem:[#allocation3 + $0x160] sm:$0xff] %vm513, 0.0
        %560 = vst.msk [vmem:[#allocation3 + $0x168] sm:$0xff] %vm513, 0.0
        %561 = vst.msk [vmem:[#allocation3 + $0x170] sm:$0xff] %vm513, 0.0
        %562 = vst.msk [vmem:[#allocation3 + $0x178] sm:$0x1] %vm517, 0.0
        %563 = vst.msk [vmem:[#allocation3 + $0x180] sm:$0xff] %vm513, 0.0
        %564 = vst.msk [vmem:[#allocation3 + $0x188] sm:$0xff] %vm513, 0.0
        %565 = vst.msk [vmem:[#allocation3 + $0x190] sm:$0xff] %vm513, 0.0
        %566 = vst.msk [vmem:[#allocation3 + $0x198] sm:$0x1] %vm517, 0.0
        %567 = vst.msk [vmem:[#allocation3 + $0x1a0] sm:$0xff] %vm513, 0.0
        %568 = vst.msk [vmem:[#allocation3 + $0x1a8] sm:$0xff] %vm513, 0.0
        %569 = vst.msk [vmem:[#allocation3 + $0x1b0] sm:$0xff] %vm513, 0.0
        %570 = vst.msk [vmem:[#allocation3 + $0x1b8] sm:$0x1] %vm517, 0.0
        %571 = vst.msk [vmem:[#allocation3 + $0x1c0] sm:$0xff] %vm513, 0.0
        %572 = vst.msk [vmem:[#allocation3 + $0x1c8] sm:$0xff] %vm513, 0.0
        %573 = vst.msk [vmem:[#allocation3 + $0x1d0] sm:$0xff] %vm513, 0.0
        %574 = vst.msk [vmem:[#allocation3 + $0x1d8] sm:$0x1] %vm517, 0.0
        %575 = vst.msk [vmem:[#allocation3 + $0x1e0] sm:$0xff] %vm513, 0.0
        %576 = vst.msk [vmem:[#allocation3 + $0x1e8] sm:$0xff] %vm513, 0.0
        %577 = vst.msk [vmem:[#allocation3 + $0x1f0] sm:$0xff] %vm513, 0.0
        %578 = vst.msk [vmem:[#allocation3 + $0x1f8] sm:$0x1] %vm517, 0.0
        %579 = vst.msk [vmem:[#allocation3 + $0x200] sm:$0xff] %vm513, 0.0
        %580 = vst.msk [vmem:[#allocation3 + $0x208] sm:$0xff] %vm513, 0.0
        %581 = vst.msk [vmem:[#allocation3 + $0x210] sm:$0xff] %vm513, 0.0
        %582 = vst.msk [vmem:[#allocation3 + $0x218] sm:$0x1] %vm517, 0.0
        %583 = vst.msk [vmem:[#allocation3 + $0x220] sm:$0xff] %vm513, 0.0
        %584 = vst.msk [vmem:[#allocation3 + $0x228] sm:$0xff] %vm513, 0.0
        %585 = vst.msk [vmem:[#allocation3 + $0x230] sm:$0xff] %vm513, 0.0
        %586 = vst.msk [vmem:[#allocation3 + $0x238] sm:$0x1] %vm517, 0.0
        %v587 = vld [vmem:[%s438] sm:$0xff]
        %v588 = vld [vmem:[%s438 + $0x8] sm:$0xff]
        %v589 = vld [vmem:[%s438 + $0x10] sm:$0xff]
        %v590 = vld [vmem:[%s438 + $0x18] sm:$0xff]
        %v591 = vld [vmem:[%s438 + $0x20] sm:$0xff]
        %v592 = vld [vmem:[%s438 + $0x28] sm:$0xff]
        %v593 = vld [vmem:[%s438 + $0x30] sm:$0xff]
        %v594 = vld [vmem:[%s438 + $0x38] sm:$0xff]
        %v595 = vld [vmem:[%s438 + $0x40] sm:$0xff]
        %v596 = vld [vmem:[%s438 + $0x48] sm:$0xff]
        %v597 = vld [vmem:[%s438 + $0x50] sm:$0xff]
        %v598 = vld [vmem:[%s438 + $0x58] sm:$0xff]
        %v599 = vld [vmem:[%s438 + $0x60] sm:$0xff]
        %v600 = vld [vmem:[%s438 + $0x68] sm:$0xff]
        %v601 = vld [vmem:[%s438 + $0x70] sm:$0xff]
        %v602 = vld [vmem:[%s438 + $0x78] sm:$0xff]
        %v603 = vld [vmem:[%s438 + $0x80] sm:$0xff]
        %v604 = vld [vmem:[%s438 + $0x88] sm:$0xff]
        %v605 = vld [vmem:[%s438 + $0x90] sm:$0xff]
        %v606 = vld [vmem:[%s438 + $0x98] sm:$0xff]
        %v607 = vld [vmem:[%s438 + $0xa0] sm:$0xff]
        %v608 = vld [vmem:[%s438 + $0xa8] sm:$0xff]
        %v609 = vld [vmem:[%s438 + $0xb0] sm:$0xff]
        %v610 = vld [vmem:[%s438 + $0xb8] sm:$0xff]
        %v611 = vld [vmem:[%s438 + $0xc0] sm:$0xff]
        %v612 = vld [vmem:[%s438 + $0xc8] sm:$0xff]
        %v613 = vld [vmem:[%s438 + $0xd0] sm:$0xff]
        %v614 = vld [vmem:[%s438 + $0xd8] sm:$0xff]
        %v615 = vld [vmem:[%s438 + $0xe0] sm:$0xff]
        %v616 = vld [vmem:[%s438 + $0xe8] sm:$0xff]
        %v617 = vld [vmem:[%s438 + $0xf0] sm:$0xff]
        %v618 = vld [vmem:[%s438 + $0xf8] sm:$0xff]
        %v619 = vsel %vm439, %v587, 0.0
        %v620 = vsel %vm439, %v588, 0.0
        %v621 = vadd.f32 %v619, %v620
        %v622 = vsel %vm439, %v589, 0.0
        %v623 = vadd.f32 %v621, %v622
        %v624 = vsel %vm439, %v590, 0.0
        %v625 = vadd.f32 %v623, %v624
        %v626 = vsel %vm439, %v591, 0.0
        %v627 = vadd.f32 %v625, %v626
        %v628 = vsel %vm439, %v592, 0.0
        %v629 = vadd.f32 %v627, %v628
        %v630 = vsel %vm439, %v593, 0.0
        %v631 = vadd.f32 %v629, %v630
        %v632 = vsel %vm439, %v594, 0.0
        %v633 = vadd.f32 %v631, %v632
        %v634 = vsel %vm439, %v595, 0.0
        %v635 = vadd.f32 %v633, %v634
        %v636 = vsel %vm439, %v596, 0.0
        %v637 = vadd.f32 %v635, %v636
        %v638 = vsel %vm439, %v597, 0.0
        %v639 = vadd.f32 %v637, %v638
        %v640 = vsel %vm439, %v598, 0.0
        %v641 = vadd.f32 %v639, %v640
        %v642 = vsel %vm439, %v599, 0.0
        %v643 = vadd.f32 %v641, %v642
        %v644 = vsel %vm439, %v600, 0.0
        %v645 = vadd.f32 %v643, %v644
        %v646 = vsel %vm439, %v601, 0.0
        %v647 = vadd.f32 %v645, %v646
        %v648 = vsel %vm439, %v602, 0.0
        %v649 = vadd.f32 %v647, %v648
        %v650 = vsel %vm439, %v603, 0.0
        %v651 = vadd.f32 %v649, %v650
        %v652 = vsel %vm439, %v604, 0.0
        %v653 = vadd.f32 %v651, %v652
        %v654 = vsel %vm439, %v605, 0.0
        %v655 = vadd.f32 %v653, %v654
        %v656 = vsel %vm439, %v606, 0.0
        %v657 = vadd.f32 %v655, %v656
        %v658 = vsel %vm439, %v607, 0.0
        %v659 = vadd.f32 %v657, %v658
        %v660 = vsel %vm439, %v608, 0.0
        %v661 = vadd.f32 %v659, %v660
        %v662 = vsel %vm439, %v609, 0.0
        %v663 = vadd.f32 %v661, %v662
        %v664 = vsel %vm439, %v610, 0.0
        %v665 = vadd.f32 %v663, %v664
        %v666 = vsel %vm439, %v611, 0.0
        %v667 = vadd.f32 %v665, %v666
        %v668 = vsel %vm439, %v612, 0.0
        %v669 = vadd.f32 %v667, %v668
        %v670 = vsel %vm439, %v613, 0.0
        %v671 = vadd.f32 %v669, %v670
        %v672 = vsel %vm439, %v614, 0.0
        %v673 = vadd.f32 %v671, %v672
        %v674 = vsel %vm439, %v615, 0.0
        %v675 = vadd.f32 %v673, %v674
        %v676 = vsel %vm439, %v616, 0.0
        %v677 = vadd.f32 %v675, %v676
        %v678 = vsel %vm439, %v617, 0.0
        %v679 = vadd.f32 %v677, %v678
        %v680 = vsel %vm439, %v618, 0.0
        %v681 = vadd.f32 %v679, %v680
        %v682 = vrot.slane %v681, 4
        %v683 = vadd.f32 %v681, %v682
        %v684 = vrot.slane %v683, 2
        %v685 = vadd.f32 %v683, %v684
        %v686 = vrot.slane %v685, 1
        %v687 = vadd.f32 %v685, %v686
        %v688 = vld [vmem:[%s1] sm:$0xff]
        %v690 = vsel %vm439, %v687, 0
        %692 = vmatpush.msra.mxu0 0.0
        %693 = vmatpush.msra.mxu0 0.0
        %694 = vmatpush.msra.mxu0 0.0
        %695 = vmatpush.msra.mxu0 0.0
        %696 = vmatpush.msra.mxu0 0.0
        %697 = vmatpush.msra.mxu0 0.0
        %698 = vmatpush.msra.mxu0 0.0
        %699 = vmatpush.msra.mxu0 0.0
        %700 = vmatpush.msra.mxu0 0.0
        %701 = vmatpush.msra.mxu0 0.0
        %702 = vmatpush.msra.mxu0 0.0
        %703 = vmatpush.msra.mxu0 0.0
        %704 = vmatpush.msra.mxu0 0.0
        %705 = vmatpush.msra.mxu0 0.0
        %706 = vmatpush.msra.mxu0 0.0
        %707 = vmatpush.msra.mxu0 %v688
        %708 = vmatmul.f32.gmra.mxu0 %v690
        %v709 = vpop.f32.mrf.mxu0
        %v710 = vadd.f32 0.0, %v709
        %711 = vdwg.mxu0
        %v712 = vperm.slane %v710, 0
        %v713 = vsub.f32 %v587, %v712
        %v714 = vsub.f32 %v588, %v712
        %v715 = vsub.f32 %v589, %v712
        %v716 = vsub.f32 %v590, %v712
        %v717 = vsub.f32 %v591, %v712
        %v718 = vsub.f32 %v592, %v712
        %v719 = vsub.f32 %v593, %v712
        %v720 = vsub.f32 %v594, %v712
        %v721 = vsub.f32 %v595, %v712
        %v722 = vsub.f32 %v596, %v712
        %v723 = vsub.f32 %v597, %v712
        %v724 = vsub.f32 %v598, %v712
        %v725 = vsub.f32 %v599, %v712
        %v726 = vsub.f32 %v600, %v712
        %v727 = vsub.f32 %v601, %v712
        %v728 = vsub.f32 %v602, %v712
        %v729 = vsub.f32 %v603, %v712
        %v730 = vsub.f32 %v604, %v712
        %v731 = vsub.f32 %v605, %v712
        %v732 = vsub.f32 %v606, %v712
        %v733 = vsub.f32 %v607, %v712
        %v734 = vsub.f32 %v608, %v712
        %v735 = vsub.f32 %v609, %v712
        %v736 = vsub.f32 %v610, %v712
        %v737 = vsub.f32 %v611, %v712
        %v738 = vsub.f32 %v612, %v712
        %v739 = vsub.f32 %v613, %v712
        %v740 = vsub.f32 %v614, %v712
        %v741 = vsub.f32 %v615, %v712
        %v742 = vsub.f32 %v616, %v712
        %v743 = vsub.f32 %v617, %v712
        %v744 = vsub.f32 %v618, %v712
        %v745 = vmul.f32 %v713, %v713
        %v746 = vmul.f32 %v714, %v714
        %v747 = vmul.f32 %v715, %v715
        %v748 = vmul.f32 %v716, %v716
        %v749 = vmul.f32 %v717, %v717
        %v750 = vmul.f32 %v718, %v718
        %v751 = vmul.f32 %v719, %v719
        %v752 = vmul.f32 %v720, %v720
        %v753 = vmul.f32 %v721, %v721
        %v754 = vmul.f32 %v722, %v722
        %v755 = vmul.f32 %v723, %v723
        %v756 = vmul.f32 %v724, %v724
        %v757 = vmul.f32 %v725, %v725
        %v758 = vmul.f32 %v726, %v726
        %v759 = vmul.f32 %v727, %v727
        %v760 = vmul.f32 %v728, %v728
        %v761 = vmul.f32 %v729, %v729
        %v762 = vmul.f32 %v730, %v730
        %v763 = vmul.f32 %v731, %v731
        %v764 = vmul.f32 %v732, %v732
        %v765 = vmul.f32 %v733, %v733
        %v766 = vmul.f32 %v734, %v734
        %v767 = vmul.f32 %v735, %v735
        %v768 = vmul.f32 %v736, %v736
        %v769 = vmul.f32 %v737, %v737
        %v770 = vmul.f32 %v738, %v738
        %v771 = vmul.f32 %v739, %v739
        %v772 = vmul.f32 %v740, %v740
        %v773 = vmul.f32 %v741, %v741
        %v774 = vmul.f32 %v742, %v742
        %v775 = vmul.f32 %v743, %v743
        %v776 = vmul.f32 %v744, %v744
        %v777 = vsel %vm439, %v745, 0.0
        %v778 = vsel %vm439, %v746, 0.0
        %v779 = vadd.f32 %v777, %v778
        %v780 = vsel %vm439, %v747, 0.0
        %v781 = vadd.f32 %v779, %v780
        %v782 = vsel %vm439, %v748, 0.0
        %v783 = vadd.f32 %v781, %v782
        %v784 = vsel %vm439, %v749, 0.0
        %v785 = vadd.f32 %v783, %v784
        %v786 = vsel %vm439, %v750, 0.0
        %v787 = vadd.f32 %v785, %v786
        %v788 = vsel %vm439, %v751, 0.0
        %v789 = vadd.f32 %v787, %v788
        %v790 = vsel %vm439, %v752, 0.0
        %v791 = vadd.f32 %v789, %v790
        %v792 = vsel %vm439, %v753, 0.0
        %v793 = vadd.f32 %v791, %v792
        %v794 = vsel %vm439, %v754, 0.0
        %v795 = vadd.f32 %v793, %v794
        %v796 = vsel %vm439, %v755, 0.0
        %v797 = vadd.f32 %v795, %v796
        %v798 = vsel %vm439, %v756, 0.0
        %v799 = vadd.f32 %v797, %v798
        %v800 = vsel %vm439, %v757, 0.0
        %v801 = vadd.f32 %v799, %v800
        %v802 = vsel %vm439, %v758, 0.0
        %v803 = vadd.f32 %v801, %v802
        %v804 = vsel %vm439, %v759, 0.0
        %v805 = vadd.f32 %v803, %v804
        %v806 = vsel %vm439, %v760, 0.0
        %v807 = vadd.f32 %v805, %v806
        %v808 = vsel %vm439, %v761, 0.0
        %v809 = vadd.f32 %v807, %v808
        %v810 = vsel %vm439, %v762, 0.0
        %v811 = vadd.f32 %v809, %v810
        %v812 = vsel %vm439, %v763, 0.0
        %v813 = vadd.f32 %v811, %v812
        %v814 = vsel %vm439, %v764, 0.0
        %v815 = vadd.f32 %v813, %v814
        %v816 = vsel %vm439, %v765, 0.0
        %v817 = vadd.f32 %v815, %v816
        %v818 = vsel %vm439, %v766, 0.0
        %v819 = vadd.f32 %v817, %v818
        %v820 = vsel %vm439, %v767, 0.0
        %v821 = vadd.f32 %v819, %v820
        %v822 = vsel %vm439, %v768, 0.0
        %v823 = vadd.f32 %v821, %v822
        %v824 = vsel %vm439, %v769, 0.0
        %v825 = vadd.f32 %v823, %v824
        %v826 = vsel %vm439, %v770, 0.0
        %v827 = vadd.f32 %v825, %v826
        %v828 = vsel %vm439, %v771, 0.0
        %v829 = vadd.f32 %v827, %v828
        %v830 = vsel %vm439, %v772, 0.0
        %v831 = vadd.f32 %v829, %v830
        %v832 = vsel %vm439, %v773, 0.0
        %v833 = vadd.f32 %v831, %v832
        %v834 = vsel %vm439, %v774, 0.0
        %v835 = vadd.f32 %v833, %v834
        %v836 = vsel %vm439, %v775, 0.0
        %v837 = vadd.f32 %v835, %v836
        %v838 = vsel %vm439, %v776, 0.0
        %v839 = vadd.f32 %v837, %v838
        %v840 = vrot.slane %v839, 4
        %v841 = vadd.f32 %v839, %v840
        %v842 = vrot.slane %v841, 2
        %v843 = vadd.f32 %v841, %v842
        %v844 = vrot.slane %v843, 1
        %v845 = vadd.f32 %v843, %v844
        %v847 = vsel %vm439, %v845, 0
        %849 = vmatpush.msra.mxu0 0.0
        %850 = vmatpush.msra.mxu0 0.0
        %851 = vmatpush.msra.mxu0 0.0
        %852 = vmatpush.msra.mxu0 0.0
        %853 = vmatpush.msra.mxu0 0.0
        %854 = vmatpush.msra.mxu0 0.0
        %855 = vmatpush.msra.mxu0 0.0
        %856 = vmatpush.msra.mxu0 0.0
        %857 = vmatpush.msra.mxu0 0.0
        %858 = vmatpush.msra.mxu0 0.0
        %859 = vmatpush.msra.mxu0 0.0
        %860 = vmatpush.msra.mxu0 0.0
        %861 = vmatpush.msra.mxu0 0.0
        %862 = vmatpush.msra.mxu0 0.0
        %863 = vmatpush.msra.mxu0 0.0
        %864 = vmatpush.msra.mxu0 %v688
        %865 = vmatmul.f32.gmra.mxu0 %v847
        %v866 = vpop.f32.mrf.mxu0
        %v867 = vadd.f32 1e-06, %v866
        %868 = vdwg.mxu0
        %v869 = vrsqrt.pop %v867
        %v870 = vmul.f32 %v869, %v867
        %v871 = vmul.f32 %v870, %v869
        %v872 = vmul.f32 0.5, %v871
        %v873 = vsub.f32 1.5, %v872
        %v874 = vmul.f32 %v869, %v873
        %vm875 = vweird.f32 %v867
        %vm876 = vweird.f32 %v869
        %vm877 = vmor %vm875, %vm876
        %v878 = vsel %vm877, %v869, %v874
        %v879 = vperm.slane %v878, 0
        %v880 = vmul.f32 %v713, %v879
        %v881 = vmul.f32 %v714, %v879
        %v882 = vmul.f32 %v715, %v879
        %v883 = vmul.f32 %v716, %v879
        %v884 = vmul.f32 %v717, %v879
        %v885 = vmul.f32 %v718, %v879
        %v886 = vmul.f32 %v719, %v879
        %v887 = vmul.f32 %v720, %v879
        %v888 = vmul.f32 %v721, %v879
        %v889 = vmul.f32 %v722, %v879
        %v890 = vmul.f32 %v723, %v879
        %v891 = vmul.f32 %v724, %v879
        %v892 = vmul.f32 %v725, %v879
        %v893 = vmul.f32 %v726, %v879
        %v894 = vmul.f32 %v727, %v879
        %v895 = vmul.f32 %v728, %v879
        %v896 = vmul.f32 %v729, %v879
        %v897 = vmul.f32 %v730, %v879
        %v898 = vmul.f32 %v731, %v879
        %v899 = vmul.f32 %v732, %v879
        %v900 = vmul.f32 %v733, %v879
        %v901 = vmul.f32 %v734, %v879
        %v902 = vmul.f32 %v735, %v879
        %v903 = vmul.f32 %v736, %v879
        %v904 = vmul.f32 %v737, %v879
        %v905 = vmul.f32 %v738, %v879
        %v906 = vmul.f32 %v739, %v879
        %v907 = vmul.f32 %v740, %v879
        %v908 = vmul.f32 %v741, %v879
        %v909 = vmul.f32 %v742, %v879
        %v910 = vmul.f32 %v743, %v879
        %v911 = vmul.f32 %v744, %v879
        %v912 = vld [vmem:[%s2] sm:$0x1]
        %v914 = vperm.slane %v912, 0
        %v916 = vmul.f32 %v880, %v914
        %v917 = vmul.f32 %v881, %v914
        %v918 = vmul.f32 %v882, %v914
        %v919 = vmul.f32 %v883, %v914
        %v920 = vmul.f32 %v884, %v914
        %v921 = vmul.f32 %v885, %v914
        %v922 = vmul.f32 %v886, %v914
        %v923 = vmul.f32 %v887, %v914
        %v924 = vmul.f32 %v888, %v914
        %v925 = vmul.f32 %v889, %v914
        %v926 = vmul.f32 %v890, %v914
        %v927 = vmul.f32 %v891, %v914
        %v928 = vmul.f32 %v892, %v914
        %v929 = vmul.f32 %v893, %v914
        %v930 = vmul.f32 %v894, %v914
        %v931 = vmul.f32 %v895, %v914
        %v932 = vmul.f32 %v896, %v914
        %v933 = vmul.f32 %v897, %v914
        %v934 = vmul.f32 %v898, %v914
        %v935 = vmul.f32 %v899, %v914
        %v936 = vmul.f32 %v900, %v914
        %v937 = vmul.f32 %v901, %v914
        %v938 = vmul.f32 %v902, %v914
        %v939 = vmul.f32 %v903, %v914
        %v940 = vmul.f32 %v904, %v914
        %v941 = vmul.f32 %v905, %v914
        %v942 = vmul.f32 %v906, %v914
        %v943 = vmul.f32 %v907, %v914
        %v944 = vmul.f32 %v908, %v914
        %v945 = vmul.f32 %v909, %v914
        %v946 = vmul.f32 %v910, %v914
        %v947 = vmul.f32 %v911, %v914
        %v948 = vld [vmem:[%s3] sm:$0x1]
        %v950 = vperm.slane %v948, 0
        %v952 = vadd.f32 %v916, %v950
        %v953 = vadd.f32 %v917, %v950
        %v954 = vadd.f32 %v918, %v950
        %v955 = vadd.f32 %v919, %v950
        %v956 = vadd.f32 %v920, %v950
        %v957 = vadd.f32 %v921, %v950
        %v958 = vadd.f32 %v922, %v950
        %v959 = vadd.f32 %v923, %v950
        %v960 = vadd.f32 %v924, %v950
        %v961 = vadd.f32 %v925, %v950
        %v962 = vadd.f32 %v926, %v950
        %v963 = vadd.f32 %v927, %v950
        %v964 = vadd.f32 %v928, %v950
        %v965 = vadd.f32 %v929, %v950
        %v966 = vadd.f32 %v930, %v950
        %v967 = vadd.f32 %v931, %v950
        %v968 = vadd.f32 %v932, %v950
        %v969 = vadd.f32 %v933, %v950
        %v970 = vadd.f32 %v934, %v950
        %v971 = vadd.f32 %v935, %v950
        %v972 = vadd.f32 %v936, %v950
        %v973 = vadd.f32 %v937, %v950
        %v974 = vadd.f32 %v938, %v950
        %v975 = vadd.f32 %v939, %v950
        %v976 = vadd.f32 %v940, %v950
        %v977 = vadd.f32 %v941, %v950
        %v978 = vadd.f32 %v942, %v950
        %v979 = vadd.f32 %v943, %v950
        %v980 = vadd.f32 %v944, %v950
        %v981 = vadd.f32 %v945, %v950
        %v982 = vadd.f32 %v946, %v950
        %v983 = vadd.f32 %v947, %v950
        %v984 = vxor.u32 %v952, 2147483648
        %v985 = vxor.u32 %v953, 2147483648
        %v986 = vxor.u32 %v954, 2147483648
        %v987 = vxor.u32 %v955, 2147483648
        %v988 = vxor.u32 %v956, 2147483648
        %v989 = vxor.u32 %v957, 2147483648
        %v990 = vxor.u32 %v958, 2147483648
        %v991 = vxor.u32 %v959, 2147483648
        %v992 = vxor.u32 %v960, 2147483648
        %v993 = vxor.u32 %v961, 2147483648
        %v994 = vxor.u32 %v962, 2147483648
        %v995 = vxor.u32 %v963, 2147483648
        %v996 = vxor.u32 %v964, 2147483648
        %v997 = vxor.u32 %v965, 2147483648
        %v998 = vxor.u32 %v966, 2147483648
        %v999 = vxor.u32 %v967, 2147483648
        %v1000 = vxor.u32 %v968, 2147483648
        %v1001 = vxor.u32 %v969, 2147483648
        %v1002 = vxor.u32 %v970, 2147483648
        %v1003 = vxor.u32 %v971, 2147483648
        %v1004 = vxor.u32 %v972, 2147483648
        %v1005 = vxor.u32 %v973, 2147483648
        %v1006 = vxor.u32 %v974, 2147483648
        %v1007 = vxor.u32 %v975, 2147483648
        %v1008 = vxor.u32 %v976, 2147483648
        %v1009 = vxor.u32 %v977, 2147483648
        %v1010 = vxor.u32 %v978, 2147483648
        %v1011 = vxor.u32 %v979, 2147483648
        %v1012 = vxor.u32 %v980, 2147483648
        %v1013 = vxor.u32 %v981, 2147483648
        %v1014 = vxor.u32 %v982, 2147483648
        %v1015 = vxor.u32 %v983, 2147483648
        %v1016 = vmul.f32 %v984, 1.442695
        %v1017 = vpow.pop %v1016
        %v1018 = vmul.f32 %v985, 1.442695
        %v1019 = vpow.pop %v1018
        %v1020 = vmul.f32 %v986, 1.442695
        %v1021 = vpow.pop %v1020
        %v1022 = vmul.f32 %v987, 1.442695
        %v1023 = vpow.pop %v1022
        %v1024 = vmul.f32 %v988, 1.442695
        %v1025 = vpow.pop %v1024
        %v1026 = vmul.f32 %v989, 1.442695
        %v1027 = vpow.pop %v1026
        %v1028 = vmul.f32 %v990, 1.442695
        %v1029 = vpow.pop %v1028
        %v1030 = vmul.f32 %v991, 1.442695
        %v1031 = vpow.pop %v1030
        %v1032 = vmul.f32 %v992, 1.442695
        %v1033 = vpow.pop %v1032
        %v1034 = vmul.f32 %v993, 1.442695
        %v1035 = vpow.pop %v1034
        %v1036 = vmul.f32 %v994, 1.442695
        %v1037 = vpow.pop %v1036
        %v1038 = vmul.f32 %v995, 1.442695
        %v1039 = vpow.pop %v1038
        %v1040 = vmul.f32 %v996, 1.442695
        %v1041 = vpow.pop %v1040
        %v1042 = vmul.f32 %v997, 1.442695
        %v1043 = vpow.pop %v1042
        %v1044 = vmul.f32 %v998, 1.442695
        %v1045 = vpow.pop %v1044
        %v1046 = vmul.f32 %v999, 1.442695
        %v1047 = vpow.pop %v1046
        %v1048 = vmul.f32 %v1000, 1.442695
        %v1049 = vpow.pop %v1048
        %v1050 = vmul.f32 %v1001, 1.442695
        %v1051 = vpow.pop %v1050
        %v1052 = vmul.f32 %v1002, 1.442695
        %v1053 = vpow.pop %v1052
        %v1054 = vmul.f32 %v1003, 1.442695
        %v1055 = vpow.pop %v1054
        %v1056 = vmul.f32 %v1004, 1.442695
        %v1057 = vpow.pop %v1056
        %v1058 = vmul.f32 %v1005, 1.442695
        %v1059 = vpow.pop %v1058
        %v1060 = vmul.f32 %v1006, 1.442695
        %v1061 = vpow.pop %v1060
        %v1062 = vmul.f32 %v1007, 1.442695
        %v1063 = vpow.pop %v1062
        %v1064 = vmul.f32 %v1008, 1.442695
        %v1065 = vpow.pop %v1064
        %v1066 = vmul.f32 %v1009, 1.442695
        %v1067 = vpow.pop %v1066
        %v1068 = vmul.f32 %v1010, 1.442695
        %v1069 = vpow.pop %v1068
        %v1070 = vmul.f32 %v1011, 1.442695
        %v1071 = vpow.pop %v1070
        %v1072 = vmul.f32 %v1012, 1.442695
        %v1073 = vpow.pop %v1072
        %v1074 = vmul.f32 %v1013, 1.442695
        %v1075 = vpow.pop %v1074
        %v1076 = vmul.f32 %v1014, 1.442695
        %v1077 = vpow.pop %v1076
        %v1078 = vmul.f32 %v1015, 1.442695
        %v1079 = vpow.pop %v1078
        %v1080 = vadd.f32 %v1017, 1.0
        %v1081 = vadd.f32 %v1019, 1.0
        %v1082 = vadd.f32 %v1021, 1.0
        %v1083 = vadd.f32 %v1023, 1.0
        %v1084 = vadd.f32 %v1025, 1.0
        %v1085 = vadd.f32 %v1027, 1.0
        %v1086 = vadd.f32 %v1029, 1.0
        %v1087 = vadd.f32 %v1031, 1.0
        %v1088 = vadd.f32 %v1033, 1.0
        %v1089 = vadd.f32 %v1035, 1.0
        %v1090 = vadd.f32 %v1037, 1.0
        %v1091 = vadd.f32 %v1039, 1.0
        %v1092 = vadd.f32 %v1041, 1.0
        %v1093 = vadd.f32 %v1043, 1.0
        %v1094 = vadd.f32 %v1045, 1.0
        %v1095 = vadd.f32 %v1047, 1.0
        %v1096 = vadd.f32 %v1049, 1.0
        %v1097 = vadd.f32 %v1051, 1.0
        %v1098 = vadd.f32 %v1053, 1.0
        %v1099 = vadd.f32 %v1055, 1.0
        %v1100 = vadd.f32 %v1057, 1.0
        %v1101 = vadd.f32 %v1059, 1.0
        %v1102 = vadd.f32 %v1061, 1.0
        %v1103 = vadd.f32 %v1063, 1.0
        %v1104 = vadd.f32 %v1065, 1.0
        %v1105 = vadd.f32 %v1067, 1.0
        %v1106 = vadd.f32 %v1069, 1.0
        %v1107 = vadd.f32 %v1071, 1.0
        %v1108 = vadd.f32 %v1073, 1.0
        %v1109 = vadd.f32 %v1075, 1.0
        %v1110 = vadd.f32 %v1077, 1.0
        %v1111 = vadd.f32 %v1079, 1.0
        %v1112 = vrcp.pop %v1080
        %v1113 = vmul.f32 %v1080, %v1112
        %v1114 = vsub.f32 1.0, %v1113
        %v1115 = vmul.f32 %v1112, %v1114
        %v1116 = vadd.f32 %v1112, %v1115
        %vm1117 = vweird.f32 %v1080
        %vm1118 = vweird.f32 %v1112
        %vm1119 = vmor %vm1117, %vm1118
        %v1120 = vsel %vm1119, %v1112, %v1116
        %v1121 = vand.u32 2147483647, %v1080
        %vm1122 = vcmp.eq.f32.partialorder %v1121, 8.507059e+37
        %v1123 = vand.u32 %v1080, 2147483648
        %v1124 = vor.u32 1.1754944e-38, %v1123
        %v1125 = vsel %vm1122, %v1124, %v1120
        %v1126 = vmul.f32 1.0, %v1125
        %v1127 = vrcp.pop %v1081
        %v1128 = vmul.f32 %v1081, %v1127
        %v1129 = vsub.f32 1.0, %v1128
        %v1130 = vmul.f32 %v1127, %v1129
        %v1131 = vadd.f32 %v1127, %v1130
        %vm1132 = vweird.f32 %v1081
        %vm1133 = vweird.f32 %v1127
        %vm1134 = vmor %vm1132, %vm1133
        %v1135 = vsel %vm1134, %v1127, %v1131
        %v1136 = vand.u32 2147483647, %v1081
        %vm1137 = vcmp.eq.f32.partialorder %v1136, 8.507059e+37
        %v1138 = vand.u32 %v1081, 2147483648
        %v1139 = vor.u32 1.1754944e-38, %v1138
        %v1140 = vsel %vm1137, %v1139, %v1135
        %v1141 = vmul.f32 1.0, %v1140
        %v1142 = vrcp.pop %v1082
        %v1143 = vmul.f32 %v1082, %v1142
        %v1144 = vsub.f32 1.0, %v1143
        %v1145 = vmul.f32 %v1142, %v1144
        %v1146 = vadd.f32 %v1142, %v1145
        %vm1147 = vweird.f32 %v1082
        %vm1148 = vweird.f32 %v1142
        %vm1149 = vmor %vm1147, %vm1148
        %v1150 = vsel %vm1149, %v1142, %v1146
        %v1151 = vand.u32 2147483647, %v1082
        %vm1152 = vcmp.eq.f32.partialorder %v1151, 8.507059e+37
        %v1153 = vand.u32 %v1082, 2147483648
        %v1154 = vor.u32 1.1754944e-38, %v1153
        %v1155 = vsel %vm1152, %v1154, %v1150
        %v1156 = vmul.f32 1.0, %v1155
        %v1157 = vrcp.pop %v1083
        %v1158 = vmul.f32 %v1083, %v1157
        %v1159 = vsub.f32 1.0, %v1158
        %v1160 = vmul.f32 %v1157, %v1159
        %v1161 = vadd.f32 %v1157, %v1160
        %vm1162 = vweird.f32 %v1083
        %vm1163 = vweird.f32 %v1157
        %vm1164 = vmor %vm1162, %vm1163
        %v1165 = vsel %vm1164, %v1157, %v1161
        %v1166 = vand.u32 2147483647, %v1083
        %vm1167 = vcmp.eq.f32.partialorder %v1166, 8.507059e+37
        %v1168 = vand.u32 %v1083, 2147483648
        %v1169 = vor.u32 1.1754944e-38, %v1168
        %v1170 = vsel %vm1167, %v1169, %v1165
        %v1171 = vmul.f32 1.0, %v1170
        %v1172 = vrcp.pop %v1084
        %v1173 = vmul.f32 %v1084, %v1172
        %v1174 = vsub.f32 1.0, %v1173
        %v1175 = vmul.f32 %v1172, %v1174
        %v1176 = vadd.f32 %v1172, %v1175
        %vm1177 = vweird.f32 %v1084
        %vm1178 = vweird.f32 %v1172
        %vm1179 = vmor %vm1177, %vm1178
        %v1180 = vsel %vm1179, %v1172, %v1176
        %v1181 = vand.u32 2147483647, %v1084
        %vm1182 = vcmp.eq.f32.partialorder %v1181, 8.507059e+37
        %v1183 = vand.u32 %v1084, 2147483648
        %v1184 = vor.u32 1.1754944e-38, %v1183
        %v1185 = vsel %vm1182, %v1184, %v1180
        %v1186 = vmul.f32 1.0, %v1185
        %v1187 = vrcp.pop %v1085
        %v1188 = vmul.f32 %v1085, %v1187
        %v1189 = vsub.f32 1.0, %v1188
        %v1190 = vmul.f32 %v1187, %v1189
        %v1191 = vadd.f32 %v1187, %v1190
        %vm1192 = vweird.f32 %v1085
        %vm1193 = vweird.f32 %v1187
        %vm1194 = vmor %vm1192, %vm1193
        %v1195 = vsel %vm1194, %v1187, %v1191
        %v1196 = vand.u32 2147483647, %v1085
        %vm1197 = vcmp.eq.f32.partialorder %v1196, 8.507059e+37
        %v1198 = vand.u32 %v1085, 2147483648
        %v1199 = vor.u32 1.1754944e-38, %v1198
        %v1200 = vsel %vm1197, %v1199, %v1195
        %v1201 = vmul.f32 1.0, %v1200
        %v1202 = vrcp.pop %v1086
        %v1203 = vmul.f32 %v1086, %v1202
        %v1204 = vsub.f32 1.0, %v1203
        %v1205 = vmul.f32 %v1202, %v1204
        %v1206 = vadd.f32 %v1202, %v1205
        %vm1207 = vweird.f32 %v1086
        %vm1208 = vweird.f32 %v1202
        %vm1209 = vmor %vm1207, %vm1208
        %v1210 = vsel %vm1209, %v1202, %v1206
        %v1211 = vand.u32 2147483647, %v1086
        %vm1212 = vcmp.eq.f32.partialorder %v1211, 8.507059e+37
        %v1213 = vand.u32 %v1086, 2147483648
        %v1214 = vor.u32 1.1754944e-38, %v1213
        %v1215 = vsel %vm1212, %v1214, %v1210
        %v1216 = vmul.f32 1.0, %v1215
        %v1217 = vrcp.pop %v1087
        %v1218 = vmul.f32 %v1087, %v1217
        %v1219 = vsub.f32 1.0, %v1218
        %v1220 = vmul.f32 %v1217, %v1219
        %v1221 = vadd.f32 %v1217, %v1220
        %vm1222 = vweird.f32 %v1087
        %vm1223 = vweird.f32 %v1217
        %vm1224 = vmor %vm1222, %vm1223
        %v1225 = vsel %vm1224, %v1217, %v1221
        %v1226 = vand.u32 2147483647, %v1087
        %vm1227 = vcmp.eq.f32.partialorder %v1226, 8.507059e+37
        %v1228 = vand.u32 %v1087, 2147483648
        %v1229 = vor.u32 1.1754944e-38, %v1228
        %v1230 = vsel %vm1227, %v1229, %v1225
        %v1231 = vmul.f32 1.0, %v1230
        %v1232 = vrcp.pop %v1088
        %v1233 = vmul.f32 %v1088, %v1232
        %v1234 = vsub.f32 1.0, %v1233
        %v1235 = vmul.f32 %v1232, %v1234
        %v1236 = vadd.f32 %v1232, %v1235
        %vm1237 = vweird.f32 %v1088
        %vm1238 = vweird.f32 %v1232
        %vm1239 = vmor %vm1237, %vm1238
        %v1240 = vsel %vm1239, %v1232, %v1236
        %v1241 = vand.u32 2147483647, %v1088
        %vm1242 = vcmp.eq.f32.partialorder %v1241, 8.507059e+37
        %v1243 = vand.u32 %v1088, 2147483648
        %v1244 = vor.u32 1.1754944e-38, %v1243
        %v1245 = vsel %vm1242, %v1244, %v1240
        %v1246 = vmul.f32 1.0, %v1245
        %v1247 = vrcp.pop %v1089
        %v1248 = vmul.f32 %v1089, %v1247
        %v1249 = vsub.f32 1.0, %v1248
        %v1250 = vmul.f32 %v1247, %v1249
        %v1251 = vadd.f32 %v1247, %v1250
        %vm1252 = vweird.f32 %v1089
        %vm1253 = vweird.f32 %v1247
        %vm1254 = vmor %vm1252, %vm1253
        %v1255 = vsel %vm1254, %v1247, %v1251
        %v1256 = vand.u32 2147483647, %v1089
        %vm1257 = vcmp.eq.f32.partialorder %v1256, 8.507059e+37
        %v1258 = vand.u32 %v1089, 2147483648
        %v1259 = vor.u32 1.1754944e-38, %v1258
        %v1260 = vsel %vm1257, %v1259, %v1255
        %v1261 = vmul.f32 1.0, %v1260
        %v1262 = vrcp.pop %v1090
        %v1263 = vmul.f32 %v1090, %v1262
        %v1264 = vsub.f32 1.0, %v1263
        %v1265 = vmul.f32 %v1262, %v1264
        %v1266 = vadd.f32 %v1262, %v1265
        %vm1267 = vweird.f32 %v1090
        %vm1268 = vweird.f32 %v1262
        %vm1269 = vmor %vm1267, %vm1268
        %v1270 = vsel %vm1269, %v1262, %v1266
        %v1271 = vand.u32 2147483647, %v1090
        %vm1272 = vcmp.eq.f32.partialorder %v1271, 8.507059e+37
        %v1273 = vand.u32 %v1090, 2147483648
        %v1274 = vor.u32 1.1754944e-38, %v1273
        %v1275 = vsel %vm1272, %v1274, %v1270
        %v1276 = vmul.f32 1.0, %v1275
        %v1277 = vrcp.pop %v1091
        %v1278 = vmul.f32 %v1091, %v1277
        %v1279 = vsub.f32 1.0, %v1278
        %v1280 = vmul.f32 %v1277, %v1279
        %v1281 = vadd.f32 %v1277, %v1280
        %vm1282 = vweird.f32 %v1091
        %vm1283 = vweird.f32 %v1277
        %vm1284 = vmor %vm1282, %vm1283
        %v1285 = vsel %vm1284, %v1277, %v1281
        %v1286 = vand.u32 2147483647, %v1091
        %vm1287 = vcmp.eq.f32.partialorder %v1286, 8.507059e+37
        %v1288 = vand.u32 %v1091, 2147483648
        %v1289 = vor.u32 1.1754944e-38, %v1288
        %v1290 = vsel %vm1287, %v1289, %v1285
        %v1291 = vmul.f32 1.0, %v1290
        %v1292 = vrcp.pop %v1092
        %v1293 = vmul.f32 %v1092, %v1292
        %v1294 = vsub.f32 1.0, %v1293
        %v1295 = vmul.f32 %v1292, %v1294
        %v1296 = vadd.f32 %v1292, %v1295
        %vm1297 = vweird.f32 %v1092
        %vm1298 = vweird.f32 %v1292
        %vm1299 = vmor %vm1297, %vm1298
        %v1300 = vsel %vm1299, %v1292, %v1296
        %v1301 = vand.u32 2147483647, %v1092
        %vm1302 = vcmp.eq.f32.partialorder %v1301, 8.507059e+37
        %v1303 = vand.u32 %v1092, 2147483648
        %v1304 = vor.u32 1.1754944e-38, %v1303
        %v1305 = vsel %vm1302, %v1304, %v1300
        %v1306 = vmul.f32 1.0, %v1305
        %v1307 = vrcp.pop %v1093
        %v1308 = vmul.f32 %v1093, %v1307
        %v1309 = vsub.f32 1.0, %v1308
        %v1310 = vmul.f32 %v1307, %v1309
        %v1311 = vadd.f32 %v1307, %v1310
        %vm1312 = vweird.f32 %v1093
        %vm1313 = vweird.f32 %v1307
        %vm1314 = vmor %vm1312, %vm1313
        %v1315 = vsel %vm1314, %v1307, %v1311
        %v1316 = vand.u32 2147483647, %v1093
        %vm1317 = vcmp.eq.f32.partialorder %v1316, 8.507059e+37
        %v1318 = vand.u32 %v1093, 2147483648
        %v1319 = vor.u32 1.1754944e-38, %v1318
        %v1320 = vsel %vm1317, %v1319, %v1315
        %v1321 = vmul.f32 1.0, %v1320
        %v1322 = vrcp.pop %v1094
        %v1323 = vmul.f32 %v1094, %v1322
        %v1324 = vsub.f32 1.0, %v1323
        %v1325 = vmul.f32 %v1322, %v1324
        %v1326 = vadd.f32 %v1322, %v1325
        %vm1327 = vweird.f32 %v1094
        %vm1328 = vweird.f32 %v1322
        %vm1329 = vmor %vm1327, %vm1328
        %v1330 = vsel %vm1329, %v1322, %v1326
        %v1331 = vand.u32 2147483647, %v1094
        %vm1332 = vcmp.eq.f32.partialorder %v1331, 8.507059e+37
        %v1333 = vand.u32 %v1094, 2147483648
        %v1334 = vor.u32 1.1754944e-38, %v1333
        %v1335 = vsel %vm1332, %v1334, %v1330
        %v1336 = vmul.f32 1.0, %v1335
        %v1337 = vrcp.pop %v1095
        %v1338 = vmul.f32 %v1095, %v1337
        %v1339 = vsub.f32 1.0, %v1338
        %v1340 = vmul.f32 %v1337, %v1339
        %v1341 = vadd.f32 %v1337, %v1340
        %vm1342 = vweird.f32 %v1095
        %vm1343 = vweird.f32 %v1337
        %vm1344 = vmor %vm1342, %vm1343
        %v1345 = vsel %vm1344, %v1337, %v1341
        %v1346 = vand.u32 2147483647, %v1095
        %vm1347 = vcmp.eq.f32.partialorder %v1346, 8.507059e+37
        %v1348 = vand.u32 %v1095, 2147483648
        %v1349 = vor.u32 1.1754944e-38, %v1348
        %v1350 = vsel %vm1347, %v1349, %v1345
        %v1351 = vmul.f32 1.0, %v1350
        %v1352 = vrcp.pop %v1096
        %v1353 = vmul.f32 %v1096, %v1352
        %v1354 = vsub.f32 1.0, %v1353
        %v1355 = vmul.f32 %v1352, %v1354
        %v1356 = vadd.f32 %v1352, %v1355
        %vm1357 = vweird.f32 %v1096
        %vm1358 = vweird.f32 %v1352
        %vm1359 = vmor %vm1357, %vm1358
        %v1360 = vsel %vm1359, %v1352, %v1356
        %v1361 = vand.u32 2147483647, %v1096
        %vm1362 = vcmp.eq.f32.partialorder %v1361, 8.507059e+37
        %v1363 = vand.u32 %v1096, 2147483648
        %v1364 = vor.u32 1.1754944e-38, %v1363
        %v1365 = vsel %vm1362, %v1364, %v1360
        %v1366 = vmul.f32 1.0, %v1365
        %v1367 = vrcp.pop %v1097
        %v1368 = vmul.f32 %v1097, %v1367
        %v1369 = vsub.f32 1.0, %v1368
        %v1370 = vmul.f32 %v1367, %v1369
        %v1371 = vadd.f32 %v1367, %v1370
        %vm1372 = vweird.f32 %v1097
        %vm1373 = vweird.f32 %v1367
        %vm1374 = vmor %vm1372, %vm1373
        %v1375 = vsel %vm1374, %v1367, %v1371
        %v1376 = vand.u32 2147483647, %v1097
        %vm1377 = vcmp.eq.f32.partialorder %v1376, 8.507059e+37
        %v1378 = vand.u32 %v1097, 2147483648
        %v1379 = vor.u32 1.1754944e-38, %v1378
        %v1380 = vsel %vm1377, %v1379, %v1375
        %v1381 = vmul.f32 1.0, %v1380
        %v1382 = vrcp.pop %v1098
        %v1383 = vmul.f32 %v1098, %v1382
        %v1384 = vsub.f32 1.0, %v1383
        %v1385 = vmul.f32 %v1382, %v1384
        %v1386 = vadd.f32 %v1382, %v1385
        %vm1387 = vweird.f32 %v1098
        %vm1388 = vweird.f32 %v1382
        %vm1389 = vmor %vm1387, %vm1388
        %v1390 = vsel %vm1389, %v1382, %v1386
        %v1391 = vand.u32 2147483647, %v1098
        %vm1392 = vcmp.eq.f32.partialorder %v1391, 8.507059e+37
        %v1393 = vand.u32 %v1098, 2147483648
        %v1394 = vor.u32 1.1754944e-38, %v1393
        %v1395 = vsel %vm1392, %v1394, %v1390
        %v1396 = vmul.f32 1.0, %v1395
        %v1397 = vrcp.pop %v1099
        %v1398 = vmul.f32 %v1099, %v1397
        %v1399 = vsub.f32 1.0, %v1398
        %v1400 = vmul.f32 %v1397, %v1399
        %v1401 = vadd.f32 %v1397, %v1400
        %vm1402 = vweird.f32 %v1099
        %vm1403 = vweird.f32 %v1397
        %vm1404 = vmor %vm1402, %vm1403
        %v1405 = vsel %vm1404, %v1397, %v1401
        %v1406 = vand.u32 2147483647, %v1099
        %vm1407 = vcmp.eq.f32.partialorder %v1406, 8.507059e+37
        %v1408 = vand.u32 %v1099, 2147483648
        %v1409 = vor.u32 1.1754944e-38, %v1408
        %v1410 = vsel %vm1407, %v1409, %v1405
        %v1411 = vmul.f32 1.0, %v1410
        %v1412 = vrcp.pop %v1100
        %v1413 = vmul.f32 %v1100, %v1412
        %v1414 = vsub.f32 1.0, %v1413
        %v1415 = vmul.f32 %v1412, %v1414
        %v1416 = vadd.f32 %v1412, %v1415
        %vm1417 = vweird.f32 %v1100
        %vm1418 = vweird.f32 %v1412
        %vm1419 = vmor %vm1417, %vm1418
        %v1420 = vsel %vm1419, %v1412, %v1416
        %v1421 = vand.u32 2147483647, %v1100
        %vm1422 = vcmp.eq.f32.partialorder %v1421, 8.507059e+37
        %v1423 = vand.u32 %v1100, 2147483648
        %v1424 = vor.u32 1.1754944e-38, %v1423
        %v1425 = vsel %vm1422, %v1424, %v1420
        %v1426 = vmul.f32 1.0, %v1425
        %v1427 = vrcp.pop %v1101
        %v1428 = vmul.f32 %v1101, %v1427
        %v1429 = vsub.f32 1.0, %v1428
        %v1430 = vmul.f32 %v1427, %v1429
        %v1431 = vadd.f32 %v1427, %v1430
        %vm1432 = vweird.f32 %v1101
        %vm1433 = vweird.f32 %v1427
        %vm1434 = vmor %vm1432, %vm1433
        %v1435 = vsel %vm1434, %v1427, %v1431
        %v1436 = vand.u32 2147483647, %v1101
        %vm1437 = vcmp.eq.f32.partialorder %v1436, 8.507059e+37
        %v1438 = vand.u32 %v1101, 2147483648
        %v1439 = vor.u32 1.1754944e-38, %v1438
        %v1440 = vsel %vm1437, %v1439, %v1435
        %v1441 = vmul.f32 1.0, %v1440
        %v1442 = vrcp.pop %v1102
        %v1443 = vmul.f32 %v1102, %v1442
        %v1444 = vsub.f32 1.0, %v1443
        %v1445 = vmul.f32 %v1442, %v1444
        %v1446 = vadd.f32 %v1442, %v1445
        %vm1447 = vweird.f32 %v1102
        %vm1448 = vweird.f32 %v1442
        %vm1449 = vmor %vm1447, %vm1448
        %v1450 = vsel %vm1449, %v1442, %v1446
        %v1451 = vand.u32 2147483647, %v1102
        %vm1452 = vcmp.eq.f32.partialorder %v1451, 8.507059e+37
        %v1453 = vand.u32 %v1102, 2147483648
        %v1454 = vor.u32 1.1754944e-38, %v1453
        %v1455 = vsel %vm1452, %v1454, %v1450
        %v1456 = vmul.f32 1.0, %v1455
        %v1457 = vrcp.pop %v1103
        %v1458 = vmul.f32 %v1103, %v1457
        %v1459 = vsub.f32 1.0, %v1458
        %v1460 = vmul.f32 %v1457, %v1459
        %v1461 = vadd.f32 %v1457, %v1460
        %vm1462 = vweird.f32 %v1103
        %vm1463 = vweird.f32 %v1457
        %vm1464 = vmor %vm1462, %vm1463
        %v1465 = vsel %vm1464, %v1457, %v1461
        %v1466 = vand.u32 2147483647, %v1103
        %vm1467 = vcmp.eq.f32.partialorder %v1466, 8.507059e+37
        %v1468 = vand.u32 %v1103, 2147483648
        %v1469 = vor.u32 1.1754944e-38, %v1468
        %v1470 = vsel %vm1467, %v1469, %v1465
        %v1471 = vmul.f32 1.0, %v1470
        %v1472 = vrcp.pop %v1104
        %v1473 = vmul.f32 %v1104, %v1472
        %v1474 = vsub.f32 1.0, %v1473
        %v1475 = vmul.f32 %v1472, %v1474
        %v1476 = vadd.f32 %v1472, %v1475
        %vm1477 = vweird.f32 %v1104
        %vm1478 = vweird.f32 %v1472
        %vm1479 = vmor %vm1477, %vm1478
        %v1480 = vsel %vm1479, %v1472, %v1476
        %v1481 = vand.u32 2147483647, %v1104
        %vm1482 = vcmp.eq.f32.partialorder %v1481, 8.507059e+37
        %v1483 = vand.u32 %v1104, 2147483648
        %v1484 = vor.u32 1.1754944e-38, %v1483
        %v1485 = vsel %vm1482, %v1484, %v1480
        %v1486 = vmul.f32 1.0, %v1485
        %v1487 = vrcp.pop %v1105
        %v1488 = vmul.f32 %v1105, %v1487
        %v1489 = vsub.f32 1.0, %v1488
        %v1490 = vmul.f32 %v1487, %v1489
        %v1491 = vadd.f32 %v1487, %v1490
        %vm1492 = vweird.f32 %v1105
        %vm1493 = vweird.f32 %v1487
        %vm1494 = vmor %vm1492, %vm1493
        %v1495 = vsel %vm1494, %v1487, %v1491
        %v1496 = vand.u32 2147483647, %v1105
        %vm1497 = vcmp.eq.f32.partialorder %v1496, 8.507059e+37
        %v1498 = vand.u32 %v1105, 2147483648
        %v1499 = vor.u32 1.1754944e-38, %v1498
        %v1500 = vsel %vm1497, %v1499, %v1495
        %v1501 = vmul.f32 1.0, %v1500
        %v1502 = vrcp.pop %v1106
        %v1503 = vmul.f32 %v1106, %v1502
        %v1504 = vsub.f32 1.0, %v1503
        %v1505 = vmul.f32 %v1502, %v1504
        %v1506 = vadd.f32 %v1502, %v1505
        %vm1507 = vweird.f32 %v1106
        %vm1508 = vweird.f32 %v1502
        %vm1509 = vmor %vm1507, %vm1508
        %v1510 = vsel %vm1509, %v1502, %v1506
        %v1511 = vand.u32 2147483647, %v1106
        %vm1512 = vcmp.eq.f32.partialorder %v1511, 8.507059e+37
        %v1513 = vand.u32 %v1106, 2147483648
        %v1514 = vor.u32 1.1754944e-38, %v1513
        %v1515 = vsel %vm1512, %v1514, %v1510
        %v1516 = vmul.f32 1.0, %v1515
        %v1517 = vrcp.pop %v1107
        %v1518 = vmul.f32 %v1107, %v1517
        %v1519 = vsub.f32 1.0, %v1518
        %v1520 = vmul.f32 %v1517, %v1519
        %v1521 = vadd.f32 %v1517, %v1520
        %vm1522 = vweird.f32 %v1107
        %vm1523 = vweird.f32 %v1517
        %vm1524 = vmor %vm1522, %vm1523
        %v1525 = vsel %vm1524, %v1517, %v1521
        %v1526 = vand.u32 2147483647, %v1107
        %vm1527 = vcmp.eq.f32.partialorder %v1526, 8.507059e+37
        %v1528 = vand.u32 %v1107, 2147483648
        %v1529 = vor.u32 1.1754944e-38, %v1528
        %v1530 = vsel %vm1527, %v1529, %v1525
        %v1531 = vmul.f32 1.0, %v1530
        %v1532 = vrcp.pop %v1108
        %v1533 = vmul.f32 %v1108, %v1532
        %v1534 = vsub.f32 1.0, %v1533
        %v1535 = vmul.f32 %v1532, %v1534
        %v1536 = vadd.f32 %v1532, %v1535
        %vm1537 = vweird.f32 %v1108
        %vm1538 = vweird.f32 %v1532
        %vm1539 = vmor %vm1537, %vm1538
        %v1540 = vsel %vm1539, %v1532, %v1536
        %v1541 = vand.u32 2147483647, %v1108
        %vm1542 = vcmp.eq.f32.partialorder %v1541, 8.507059e+37
        %v1543 = vand.u32 %v1108, 2147483648
        %v1544 = vor.u32 1.1754944e-38, %v1543
        %v1545 = vsel %vm1542, %v1544, %v1540
        %v1546 = vmul.f32 1.0, %v1545
        %v1547 = vrcp.pop %v1109
        %v1548 = vmul.f32 %v1109, %v1547
        %v1549 = vsub.f32 1.0, %v1548
        %v1550 = vmul.f32 %v1547, %v1549
        %v1551 = vadd.f32 %v1547, %v1550
        %vm1552 = vweird.f32 %v1109
        %vm1553 = vweird.f32 %v1547
        %vm1554 = vmor %vm1552, %vm1553
        %v1555 = vsel %vm1554, %v1547, %v1551
        %v1556 = vand.u32 2147483647, %v1109
        %vm1557 = vcmp.eq.f32.partialorder %v1556, 8.507059e+37
        %v1558 = vand.u32 %v1109, 2147483648
        %v1559 = vor.u32 1.1754944e-38, %v1558
        %v1560 = vsel %vm1557, %v1559, %v1555
        %v1561 = vmul.f32 1.0, %v1560
        %v1562 = vrcp.pop %v1110
        %v1563 = vmul.f32 %v1110, %v1562
        %v1564 = vsub.f32 1.0, %v1563
        %v1565 = vmul.f32 %v1562, %v1564
        %v1566 = vadd.f32 %v1562, %v1565
        %vm1567 = vweird.f32 %v1110
        %vm1568 = vweird.f32 %v1562
        %vm1569 = vmor %vm1567, %vm1568
        %v1570 = vsel %vm1569, %v1562, %v1566
        %v1571 = vand.u32 2147483647, %v1110
        %vm1572 = vcmp.eq.f32.partialorder %v1571, 8.507059e+37
        %v1573 = vand.u32 %v1110, 2147483648
        %v1574 = vor.u32 1.1754944e-38, %v1573
        %v1575 = vsel %vm1572, %v1574, %v1570
        %v1576 = vmul.f32 1.0, %v1575
        %v1577 = vrcp.pop %v1111
        %v1578 = vmul.f32 %v1111, %v1577
        %v1579 = vsub.f32 1.0, %v1578
        %v1580 = vmul.f32 %v1577, %v1579
        %v1581 = vadd.f32 %v1577, %v1580
        %vm1582 = vweird.f32 %v1111
        %vm1583 = vweird.f32 %v1577
        %vm1584 = vmor %vm1582, %vm1583
        %v1585 = vsel %vm1584, %v1577, %v1581
        %v1586 = vand.u32 2147483647, %v1111
        %vm1587 = vcmp.eq.f32.partialorder %v1586, 8.507059e+37
        %v1588 = vand.u32 %v1111, 2147483648
        %v1589 = vor.u32 1.1754944e-38, %v1588
        %v1590 = vsel %vm1587, %v1589, %v1585
        %v1591 = vmul.f32 1.0, %v1590
        %v1592 = vmul.f32 %v952, %v1126
        %v1593 = vmul.f32 %v953, %v1141
        %v1594 = vmul.f32 %v954, %v1156
        %v1595 = vmul.f32 %v955, %v1171
        %v1596 = vmul.f32 %v956, %v1186
        %v1597 = vmul.f32 %v957, %v1201
        %v1598 = vmul.f32 %v958, %v1216
        %v1599 = vmul.f32 %v959, %v1231
        %v1600 = vmul.f32 %v960, %v1246
        %v1601 = vmul.f32 %v961, %v1261
        %v1602 = vmul.f32 %v962, %v1276
        %v1603 = vmul.f32 %v963, %v1291
        %v1604 = vmul.f32 %v964, %v1306
        %v1605 = vmul.f32 %v965, %v1321
        %v1606 = vmul.f32 %v966, %v1336
        %v1607 = vmul.f32 %v967, %v1351
        %v1608 = vmul.f32 %v968, %v1366
        %v1609 = vmul.f32 %v969, %v1381
        %v1610 = vmul.f32 %v970, %v1396
        %v1611 = vmul.f32 %v971, %v1411
        %v1612 = vmul.f32 %v972, %v1426
        %v1613 = vmul.f32 %v973, %v1441
        %v1614 = vmul.f32 %v974, %v1456
        %v1615 = vmul.f32 %v975, %v1471
        %v1616 = vmul.f32 %v976, %v1486
        %v1617 = vmul.f32 %v977, %v1501
        %v1618 = vmul.f32 %v978, %v1516
        %v1619 = vmul.f32 %v979, %v1531
        %v1620 = vmul.f32 %v980, %v1546
        %v1621 = vmul.f32 %v981, %v1561
        %v1622 = vmul.f32 %v982, %v1576
        %v1623 = vmul.f32 %v983, %v1591
        %s1624 = scalar_lea.vmem [#allocation2], 32
        %1625 = vst.msk [vmem:[%s1624 + $0x8] sm:$0xff] %vm439, %v1592
        %1626 = vst.msk [vmem:[%s1624 + $0x10] sm:$0xff] %vm439, %v1593
        %1627 = vst.msk [vmem:[%s1624 + $0x28] sm:$0xff] %vm439, %v1594
        %1628 = vst.msk [vmem:[%s1624 + $0x30] sm:$0xff] %vm439, %v1595
        %1629 = vst.msk [vmem:[%s1624 + $0x48] sm:$0xff] %vm439, %v1596
        %1630 = vst.msk [vmem:[%s1624 + $0x50] sm:$0xff] %vm439, %v1597
        %1631 = vst.msk [vmem:[%s1624 + $0x68] sm:$0xff] %vm439, %v1598
        %1632 = vst.msk [vmem:[%s1624 + $0x70] sm:$0xff] %vm439, %v1599
        %1633 = vst.msk [vmem:[%s1624 + $0x88] sm:$0xff] %vm439, %v1600
        %1634 = vst.msk [vmem:[%s1624 + $0x90] sm:$0xff] %vm439, %v1601
        %1635 = vst.msk [vmem:[%s1624 + $0xa8] sm:$0xff] %vm439, %v1602
        %1636 = vst.msk [vmem:[%s1624 + $0xb0] sm:$0xff] %vm439, %v1603
        %1637 = vst.msk [vmem:[%s1624 + $0xc8] sm:$0xff] %vm439, %v1604
        %1638 = vst.msk [vmem:[%s1624 + $0xd0] sm:$0xff] %vm439, %v1605
        %1639 = vst.msk [vmem:[%s1624 + $0xe8] sm:$0xff] %vm439, %v1606
        %1640 = vst.msk [vmem:[%s1624 + $0xf0] sm:$0xff] %vm439, %v1607
        %1641 = vst.msk [vmem:[%s1624 + $0x108] sm:$0xff] %vm439, %v1608
        %1642 = vst.msk [vmem:[%s1624 + $0x110] sm:$0xff] %vm439, %v1609
        %1643 = vst.msk [vmem:[%s1624 + $0x128] sm:$0xff] %vm439, %v1610
        %1644 = vst.msk [vmem:[%s1624 + $0x130] sm:$0xff] %vm439, %v1611
        %1645 = vst.msk [vmem:[%s1624 + $0x148] sm:$0xff] %vm439, %v1612
        %1646 = vst.msk [vmem:[%s1624 + $0x150] sm:$0xff] %vm439, %v1613
        %1647 = vst.msk [vmem:[%s1624 + $0x168] sm:$0xff] %vm439, %v1614
        %1648 = vst.msk [vmem:[%s1624 + $0x170] sm:$0xff] %vm439, %v1615
        %1649 = vst.msk [vmem:[%s1624 + $0x188] sm:$0xff] %vm439, %v1616
        %1650 = vst.msk [vmem:[%s1624 + $0x190] sm:$0xff] %vm439, %v1617
        %1651 = vst.msk [vmem:[%s1624 + $0x1a8] sm:$0xff] %vm439, %v1618
        %1652 = vst.msk [vmem:[%s1624 + $0x1b0] sm:$0xff] %vm439, %v1619
        %1653 = vst.msk [vmem:[%s1624 + $0x1c8] sm:$0xff] %vm439, %v1620
        %1654 = vst.msk [vmem:[%s1624 + $0x1d0] sm:$0xff] %vm439, %v1621
        %1655 = vst.msk [vmem:[%s1624 + $0x1e8] sm:$0xff] %vm439, %v1622
        %1656 = vst.msk [vmem:[%s1624 + $0x1f0] sm:$0xff] %vm439, %v1623
        %v1657 = vld [vmem:[#allocation2 + $0x7] sm:$0xff]
        %v1658 = vld [vmem:[#allocation2 + $0xf] sm:$0xff]
        %v1659 = vld [vmem:[#allocation2 + $0x27] sm:$0xff]
        %v1660 = vld [vmem:[#allocation2 + $0x2f] sm:$0xff]
        %v1661 = vld [vmem:[#allocation2 + $0x47] sm:$0xff]
        %v1662 = vld [vmem:[#allocation2 + $0x4f] sm:$0xff]
        %v1663 = vld [vmem:[#allocation2 + $0x67] sm:$0xff]
        %v1664 = vld [vmem:[#allocation2 + $0x6f] sm:$0xff]
        %v1665 = vld [vmem:[#allocation2 + $0x87] sm:$0xff]
        %v1666 = vld [vmem:[#allocation2 + $0x8f] sm:$0xff]
        %v1667 = vld [vmem:[#allocation2 + $0xa7] sm:$0xff]
        %v1668 = vld [vmem:[#allocation2 + $0xaf] sm:$0xff]
        %v1669 = vld [vmem:[#allocation2 + $0xc7] sm:$0xff]
        %v1670 = vld [vmem:[#allocation2 + $0xcf] sm:$0xff]
        %v1671 = vld [vmem:[#allocation2 + $0xe7] sm:$0xff]
        %v1672 = vld [vmem:[#allocation2 + $0xef] sm:$0xff]
        %v1673 = vld [vmem:[#allocation2 + $0x107] sm:$0xff]
        %v1674 = vld [vmem:[#allocation2 + $0x10f] sm:$0xff]
        %v1675 = vld [vmem:[#allocation2 + $0x127] sm:$0xff]
        %v1676 = vld [vmem:[#allocation2 + $0x12f] sm:$0xff]
        %v1677 = vld [vmem:[#allocation2 + $0x147] sm:$0xff]
        %v1678 = vld [vmem:[#allocation2 + $0x14f] sm:$0xff]
        %v1679 = vld [vmem:[#allocation2 + $0x167] sm:$0xff]
        %v1680 = vld [vmem:[#allocation2 + $0x16f] sm:$0xff]
        %v1681 = vld [vmem:[#allocation2 + $0x187] sm:$0xff]
        %v1682 = vld [vmem:[#allocation2 + $0x18f] sm:$0xff]
        %v1683 = vld [vmem:[#allocation2 + $0x1a7] sm:$0xff]
        %v1684 = vld [vmem:[#allocation2 + $0x1af] sm:$0xff]
        %v1685 = vld [vmem:[#allocation2 + $0x1c7] sm:$0xff]
        %v1686 = vld [vmem:[#allocation2 + $0x1cf] sm:$0xff]
        %v1687 = vld [vmem:[#allocation2 + $0x1e7] sm:$0xff]
        %v1688 = vld [vmem:[#allocation2 + $0x1ef] sm:$0xff]
        %v1689 = vld [vmem:[#allocation2 + $0x8] sm:$0xff]
        %v1690 = vld [vmem:[#allocation2 + $0x10] sm:$0xff]
        %v1691 = vld [vmem:[#allocation2 + $0x28] sm:$0xff]
        %v1692 = vld [vmem:[#allocation2 + $0x30] sm:$0xff]
        %v1693 = vld [vmem:[#allocation2 + $0x48] sm:$0xff]
        %v1694 = vld [vmem:[#allocation2 + $0x50] sm:$0xff]
        %v1695 = vld [vmem:[#allocation2 + $0x68] sm:$0xff]
        %v1696 = vld [vmem:[#allocation2 + $0x70] sm:$0xff]
        %v1697 = vld [vmem:[#allocation2 + $0x88] sm:$0xff]
        %v1698 = vld [vmem:[#allocation2 + $0x90] sm:$0xff]
        %v1699 = vld [vmem:[#allocation2 + $0xa8] sm:$0xff]
        %v1700 = vld [vmem:[#allocation2 + $0xb0] sm:$0xff]
        %v1701 = vld [vmem:[#allocation2 + $0xc8] sm:$0xff]
        %v1702 = vld [vmem:[#allocation2 + $0xd0] sm:$0xff]
        %v1703 = vld [vmem:[#allocation2 + $0xe8] sm:$0xff]
        %v1704 = vld [vmem:[#allocation2 + $0xf0] sm:$0xff]
        %v1705 = vld [vmem:[#allocation2 + $0x108] sm:$0xff]
        %v1706 = vld [vmem:[#allocation2 + $0x110] sm:$0xff]
        %v1707 = vld [vmem:[#allocation2 + $0x128] sm:$0xff]
        %v1708 = vld [vmem:[#allocation2 + $0x130] sm:$0xff]
        %v1709 = vld [vmem:[#allocation2 + $0x148] sm:$0xff]
        %v1710 = vld [vmem:[#allocation2 + $0x150] sm:$0xff]
        %v1711 = vld [vmem:[#allocation2 + $0x168] sm:$0xff]
        %v1712 = vld [vmem:[#allocation2 + $0x170] sm:$0xff]
        %v1713 = vld [vmem:[#allocation2 + $0x188] sm:$0xff]
        %v1714 = vld [vmem:[#allocation2 + $0x190] sm:$0xff]
        %v1715 = vld [vmem:[#allocation2 + $0x1a8] sm:$0xff]
        %v1716 = vld [vmem:[#allocation2 + $0x1b0] sm:$0xff]
        %v1717 = vld [vmem:[#allocation2 + $0x1c8] sm:$0xff]
        %v1718 = vld [vmem:[#allocation2 + $0x1d0] sm:$0xff]
        %v1719 = vld [vmem:[#allocation2 + $0x1e8] sm:$0xff]
        %v1720 = vld [vmem:[#allocation2 + $0x1f0] sm:$0xff]
        %v1721 = vld [vmem:[#allocation2 + $0x9] sm:$0xff]
        %v1722 = vld [vmem:[#allocation2 + $0x11] sm:$0xff]
        %v1723 = vld [vmem:[#allocation2 + $0x29] sm:$0xff]
        %v1724 = vld [vmem:[#allocation2 + $0x31] sm:$0xff]
        %v1725 = vld [vmem:[#allocation2 + $0x49] sm:$0xff]
        %v1726 = vld [vmem:[#allocation2 + $0x51] sm:$0xff]
        %v1727 = vld [vmem:[#allocation2 + $0x69] sm:$0xff]
        %v1728 = vld [vmem:[#allocation2 + $0x71] sm:$0xff]
        %v1729 = vld [vmem:[#allocation2 + $0x89] sm:$0xff]
        %v1730 = vld [vmem:[#allocation2 + $0x91] sm:$0xff]
        %v1731 = vld [vmem:[#allocation2 + $0xa9] sm:$0xff]
        %v1732 = vld [vmem:[#allocation2 + $0xb1] sm:$0xff]
        %v1733 = vld [vmem:[#allocation2 + $0xc9] sm:$0xff]
        %v1734 = vld [vmem:[#allocation2 + $0xd1] sm:$0xff]
        %v1735 = vld [vmem:[#allocation2 + $0xe9] sm:$0xff]
        %v1736 = vld [vmem:[#allocation2 + $0xf1] sm:$0xff]
        %v1737 = vld [vmem:[#allocation2 + $0x109] sm:$0xff]
        %v1738 = vld [vmem:[#allocation2 + $0x111] sm:$0xff]
        %v1739 = vld [vmem:[#allocation2 + $0x129] sm:$0xff]
        %v1740 = vld [vmem:[#allocation2 + $0x131] sm:$0xff]
        %v1741 = vld [vmem:[#allocation2 + $0x149] sm:$0xff]
        %v1742 = vld [vmem:[#allocation2 + $0x151] sm:$0xff]
        %v1743 = vld [vmem:[#allocation2 + $0x169] sm:$0xff]
        %v1744 = vld [vmem:[#allocation2 + $0x171] sm:$0xff]
        %v1745 = vld [vmem:[#allocation2 + $0x189] sm:$0xff]
        %v1746 = vld [vmem:[#allocation2 + $0x191] sm:$0xff]
        %v1747 = vld [vmem:[#allocation2 + $0x1a9] sm:$0xff]
        %v1748 = vld [vmem:[#allocation2 + $0x1b1] sm:$0xff]
        %v1749 = vld [vmem:[#allocation2 + $0x1c9] sm:$0xff]
        %v1750 = vld [vmem:[#allocation2 + $0x1d1] sm:$0xff]
        %v1751 = vld [vmem:[#allocation2 + $0x1e9] sm:$0xff]
        %v1752 = vld [vmem:[#allocation2 + $0x1f1] sm:$0xff]
        %v1753 = vld [vmem:[%s1624 + $0x7] sm:$0xff]
        %v1754 = vld [vmem:[%s1624 + $0xf] sm:$0xff]
        %v1755 = vld [vmem:[%s1624 + $0x27] sm:$0xff]
        %v1756 = vld [vmem:[%s1624 + $0x2f] sm:$0xff]
        %v1757 = vld [vmem:[%s1624 + $0x47] sm:$0xff]
        %v1758 = vld [vmem:[%s1624 + $0x4f] sm:$0xff]
        %v1759 = vld [vmem:[%s1624 + $0x67] sm:$0xff]
        %v1760 = vld [vmem:[%s1624 + $0x6f] sm:$0xff]
        %v1761 = vld [vmem:[%s1624 + $0x87] sm:$0xff]
        %v1762 = vld [vmem:[%s1624 + $0x8f] sm:$0xff]
        %v1763 = vld [vmem:[%s1624 + $0xa7] sm:$0xff]
        %v1764 = vld [vmem:[%s1624 + $0xaf] sm:$0xff]
        %v1765 = vld [vmem:[%s1624 + $0xc7] sm:$0xff]
        %v1766 = vld [vmem:[%s1624 + $0xcf] sm:$0xff]
        %v1767 = vld [vmem:[%s1624 + $0xe7] sm:$0xff]
        %v1768 = vld [vmem:[%s1624 + $0xef] sm:$0xff]
        %v1769 = vld [vmem:[%s1624 + $0x107] sm:$0xff]
        %v1770 = vld [vmem:[%s1624 + $0x10f] sm:$0xff]
        %v1771 = vld [vmem:[%s1624 + $0x127] sm:$0xff]
        %v1772 = vld [vmem:[%s1624 + $0x12f] sm:$0xff]
        %v1773 = vld [vmem:[%s1624 + $0x147] sm:$0xff]
        %v1774 = vld [vmem:[%s1624 + $0x14f] sm:$0xff]
        %v1775 = vld [vmem:[%s1624 + $0x167] sm:$0xff]
        %v1776 = vld [vmem:[%s1624 + $0x16f] sm:$0xff]
        %v1777 = vld [vmem:[%s1624 + $0x187] sm:$0xff]
        %v1778 = vld [vmem:[%s1624 + $0x18f] sm:$0xff]
        %v1779 = vld [vmem:[%s1624 + $0x1a7] sm:$0xff]
        %v1780 = vld [vmem:[%s1624 + $0x1af] sm:$0xff]
        %v1781 = vld [vmem:[%s1624 + $0x1c7] sm:$0xff]
        %v1782 = vld [vmem:[%s1624 + $0x1cf] sm:$0xff]
        %v1783 = vld [vmem:[%s1624 + $0x1e7] sm:$0xff]
        %v1784 = vld [vmem:[%s1624 + $0x1ef] sm:$0xff]
        %v1785 = vld [vmem:[%s1624 + $0x8] sm:$0xff]
        %v1786 = vld [vmem:[%s1624 + $0x10] sm:$0xff]
        %v1787 = vld [vmem:[%s1624 + $0x28] sm:$0xff]
        %v1788 = vld [vmem:[%s1624 + $0x30] sm:$0xff]
        %v1789 = vld [vmem:[%s1624 + $0x48] sm:$0xff]
        %v1790 = vld [vmem:[%s1624 + $0x50] sm:$0xff]
        %v1791 = vld [vmem:[%s1624 + $0x68] sm:$0xff]
        %v1792 = vld [vmem:[%s1624 + $0x70] sm:$0xff]
        %v1793 = vld [vmem:[%s1624 + $0x88] sm:$0xff]
        %v1794 = vld [vmem:[%s1624 + $0x90] sm:$0xff]
        %v1795 = vld [vmem:[%s1624 + $0xa8] sm:$0xff]
        %v1796 = vld [vmem:[%s1624 + $0xb0] sm:$0xff]
        %v1797 = vld [vmem:[%s1624 + $0xc8] sm:$0xff]
        %v1798 = vld [vmem:[%s1624 + $0xd0] sm:$0xff]
        %v1799 = vld [vmem:[%s1624 + $0xe8] sm:$0xff]
        %v1800 = vld [vmem:[%s1624 + $0xf0] sm:$0xff]
        %v1801 = vld [vmem:[%s1624 + $0x108] sm:$0xff]
        %v1802 = vld [vmem:[%s1624 + $0x110] sm:$0xff]
        %v1803 = vld [vmem:[%s1624 + $0x128] sm:$0xff]
        %v1804 = vld [vmem:[%s1624 + $0x130] sm:$0xff]
        %v1805 = vld [vmem:[%s1624 + $0x148] sm:$0xff]
        %v1806 = vld [vmem:[%s1624 + $0x150] sm:$0xff]
        %v1807 = vld [vmem:[%s1624 + $0x168] sm:$0xff]
        %v1808 = vld [vmem:[%s1624 + $0x170] sm:$0xff]
        %v1809 = vld [vmem:[%s1624 + $0x188] sm:$0xff]
        %v1810 = vld [vmem:[%s1624 + $0x190] sm:$0xff]
        %v1811 = vld [vmem:[%s1624 + $0x1a8] sm:$0xff]
        %v1812 = vld [vmem:[%s1624 + $0x1b0] sm:$0xff]
        %v1813 = vld [vmem:[%s1624 + $0x1c8] sm:$0xff]
        %v1814 = vld [vmem:[%s1624 + $0x1d0] sm:$0xff]
        %v1815 = vld [vmem:[%s1624 + $0x1e8] sm:$0xff]
        %v1816 = vld [vmem:[%s1624 + $0x1f0] sm:$0xff]
        %v1817 = vld [vmem:[%s1624 + $0x9] sm:$0xff]
        %v1818 = vld [vmem:[%s1624 + $0x11] sm:$0xff]
        %v1819 = vld [vmem:[%s1624 + $0x29] sm:$0xff]
        %v1820 = vld [vmem:[%s1624 + $0x31] sm:$0xff]
        %v1821 = vld [vmem:[%s1624 + $0x49] sm:$0xff]
        %v1822 = vld [vmem:[%s1624 + $0x51] sm:$0xff]
        %v1823 = vld [vmem:[%s1624 + $0x69] sm:$0xff]
        %v1824 = vld [vmem:[%s1624 + $0x71] sm:$0xff]
        %v1825 = vld [vmem:[%s1624 + $0x89] sm:$0xff]
        %v1826 = vld [vmem:[%s1624 + $0x91] sm:$0xff]
        %v1827 = vld [vmem:[%s1624 + $0xa9] sm:$0xff]
        %v1828 = vld [vmem:[%s1624 + $0xb1] sm:$0xff]
        %v1829 = vld [vmem:[%s1624 + $0xc9] sm:$0xff]
        %v1830 = vld [vmem:[%s1624 + $0xd1] sm:$0xff]
        %v1831 = vld [vmem:[%s1624 + $0xe9] sm:$0xff]
        %v1832 = vld [vmem:[%s1624 + $0xf1] sm:$0xff]
        %v1833 = vld [vmem:[%s1624 + $0x109] sm:$0xff]
        %v1834 = vld [vmem:[%s1624 + $0x111] sm:$0xff]
        %v1835 = vld [vmem:[%s1624 + $0x129] sm:$0xff]
        %v1836 = vld [vmem:[%s1624 + $0x131] sm:$0xff]
        %v1837 = vld [vmem:[%s1624 + $0x149] sm:$0xff]
        %v1838 = vld [vmem:[%s1624 + $0x151] sm:$0xff]
        %v1839 = vld [vmem:[%s1624 + $0x169] sm:$0xff]
        %v1840 = vld [vmem:[%s1624 + $0x171] sm:$0xff]
        %v1841 = vld [vmem:[%s1624 + $0x189] sm:$0xff]
        %v1842 = vld [vmem:[%s1624 + $0x191] sm:$0xff]
        %v1843 = vld [vmem:[%s1624 + $0x1a9] sm:$0xff]
        %v1844 = vld [vmem:[%s1624 + $0x1b1] sm:$0xff]
        %v1845 = vld [vmem:[%s1624 + $0x1c9] sm:$0xff]
        %v1846 = vld [vmem:[%s1624 + $0x1d1] sm:$0xff]
        %v1847 = vld [vmem:[%s1624 + $0x1e9] sm:$0xff]
        %v1848 = vld [vmem:[%s1624 + $0x1f1] sm:$0xff]
        %s1849 = scalar_lea.vmem [#allocation2], 64
        %v1850 = vld [vmem:[%s1849 + $0x7] sm:$0xff]
        %v1851 = vld [vmem:[%s1849 + $0xf] sm:$0xff]
        %v1852 = vld [vmem:[%s1849 + $0x27] sm:$0xff]
        %v1853 = vld [vmem:[%s1849 + $0x2f] sm:$0xff]
        %v1854 = vld [vmem:[%s1849 + $0x47] sm:$0xff]
        %v1855 = vld [vmem:[%s1849 + $0x4f] sm:$0xff]
        %v1856 = vld [vmem:[%s1849 + $0x67] sm:$0xff]
        %v1857 = vld [vmem:[%s1849 + $0x6f] sm:$0xff]
        %v1858 = vld [vmem:[%s1849 + $0x87] sm:$0xff]
        %v1859 = vld [vmem:[%s1849 + $0x8f] sm:$0xff]
        %v1860 = vld [vmem:[%s1849 + $0xa7] sm:$0xff]
        %v1861 = vld [vmem:[%s1849 + $0xaf] sm:$0xff]
        %v1862 = vld [vmem:[%s1849 + $0xc7] sm:$0xff]
        %v1863 = vld [vmem:[%s1849 + $0xcf] sm:$0xff]
        %v1864 = vld [vmem:[%s1849 + $0xe7] sm:$0xff]
        %v1865 = vld [vmem:[%s1849 + $0xef] sm:$0xff]
        %v1866 = vld [vmem:[%s1849 + $0x107] sm:$0xff]
        %v1867 = vld [vmem:[%s1849 + $0x10f] sm:$0xff]
        %v1868 = vld [vmem:[%s1849 + $0x127] sm:$0xff]
        %v1869 = vld [vmem:[%s1849 + $0x12f] sm:$0xff]
        %v1870 = vld [vmem:[%s1849 + $0x147] sm:$0xff]
        %v1871 = vld [vmem:[%s1849 + $0x14f] sm:$0xff]
        %v1872 = vld [vmem:[%s1849 + $0x167] sm:$0xff]
        %v1873 = vld [vmem:[%s1849 + $0x16f] sm:$0xff]
        %v1874 = vld [vmem:[%s1849 + $0x187] sm:$0xff]
        %v1875 = vld [vmem:[%s1849 + $0x18f] sm:$0xff]
        %v1876 = vld [vmem:[%s1849 + $0x1a7] sm:$0xff]
        %v1877 = vld [vmem:[%s1849 + $0x1af] sm:$0xff]
        %v1878 = vld [vmem:[%s1849 + $0x1c7] sm:$0xff]
        %v1879 = vld [vmem:[%s1849 + $0x1cf] sm:$0xff]
        %v1880 = vld [vmem:[%s1849 + $0x1e7] sm:$0xff]
        %v1881 = vld [vmem:[%s1849 + $0x1ef] sm:$0xff]
        %v1882 = vld [vmem:[%s1849 + $0x8] sm:$0xff]
        %v1883 = vld [vmem:[%s1849 + $0x10] sm:$0xff]
        %v1884 = vld [vmem:[%s1849 + $0x28] sm:$0xff]
        %v1885 = vld [vmem:[%s1849 + $0x30] sm:$0xff]
        %v1886 = vld [vmem:[%s1849 + $0x48] sm:$0xff]
        %v1887 = vld [vmem:[%s1849 + $0x50] sm:$0xff]
        %v1888 = vld [vmem:[%s1849 + $0x68] sm:$0xff]
        %v1889 = vld [vmem:[%s1849 + $0x70] sm:$0xff]
        %v1890 = vld [vmem:[%s1849 + $0x88] sm:$0xff]
        %v1891 = vld [vmem:[%s1849 + $0x90] sm:$0xff]
        %v1892 = vld [vmem:[%s1849 + $0xa8] sm:$0xff]
        %v1893 = vld [vmem:[%s1849 + $0xb0] sm:$0xff]
        %v1894 = vld [vmem:[%s1849 + $0xc8] sm:$0xff]
        %v1895 = vld [vmem:[%s1849 + $0xd0] sm:$0xff]
        %v1896 = vld [vmem:[%s1849 + $0xe8] sm:$0xff]
        %v1897 = vld [vmem:[%s1849 + $0xf0] sm:$0xff]
        %v1898 = vld [vmem:[%s1849 + $0x108] sm:$0xff]
        %v1899 = vld [vmem:[%s1849 + $0x110] sm:$0xff]
        %v1900 = vld [vmem:[%s1849 + $0x128] sm:$0xff]
        %v1901 = vld [vmem:[%s1849 + $0x130] sm:$0xff]
        %v1902 = vld [vmem:[%s1849 + $0x148] sm:$0xff]
        %v1903 = vld [vmem:[%s1849 + $0x150] sm:$0xff]
        %v1904 = vld [vmem:[%s1849 + $0x168] sm:$0xff]
        %v1905 = vld [vmem:[%s1849 + $0x170] sm:$0xff]
        %v1906 = vld [vmem:[%s1849 + $0x188] sm:$0xff]
        %v1907 = vld [vmem:[%s1849 + $0x190] sm:$0xff]
        %v1908 = vld [vmem:[%s1849 + $0x1a8] sm:$0xff]
        %v1909 = vld [vmem:[%s1849 + $0x1b0] sm:$0xff]
        %v1910 = vld [vmem:[%s1849 + $0x1c8] sm:$0xff]
        %v1911 = vld [vmem:[%s1849 + $0x1d0] sm:$0xff]
        %v1912 = vld [vmem:[%s1849 + $0x1e8] sm:$0xff]
        %v1913 = vld [vmem:[%s1849 + $0x1f0] sm:$0xff]
        %v1914 = vld [vmem:[%s1849 + $0x9] sm:$0xff]
        %v1915 = vld [vmem:[%s1849 + $0x11] sm:$0xff]
        %v1916 = vld [vmem:[%s1849 + $0x29] sm:$0xff]
        %v1917 = vld [vmem:[%s1849 + $0x31] sm:$0xff]
        %v1918 = vld [vmem:[%s1849 + $0x49] sm:$0xff]
        %v1919 = vld [vmem:[%s1849 + $0x51] sm:$0xff]
        %v1920 = vld [vmem:[%s1849 + $0x69] sm:$0xff]
        %v1921 = vld [vmem:[%s1849 + $0x71] sm:$0xff]
        %v1922 = vld [vmem:[%s1849 + $0x89] sm:$0xff]
        %v1923 = vld [vmem:[%s1849 + $0x91] sm:$0xff]
        %v1924 = vld [vmem:[%s1849 + $0xa9] sm:$0xff]
        %v1925 = vld [vmem:[%s1849 + $0xb1] sm:$0xff]
        %v1926 = vld [vmem:[%s1849 + $0xc9] sm:$0xff]
        %v1927 = vld [vmem:[%s1849 + $0xd1] sm:$0xff]
        %v1928 = vld [vmem:[%s1849 + $0xe9] sm:$0xff]
        %v1929 = vld [vmem:[%s1849 + $0xf1] sm:$0xff]
        %v1930 = vld [vmem:[%s1849 + $0x109] sm:$0xff]
        %v1931 = vld [vmem:[%s1849 + $0x111] sm:$0xff]
        %v1932 = vld [vmem:[%s1849 + $0x129] sm:$0xff]
        %v1933 = vld [vmem:[%s1849 + $0x131] sm:$0xff]
        %v1934 = vld [vmem:[%s1849 + $0x149] sm:$0xff]
        %v1935 = vld [vmem:[%s1849 + $0x151] sm:$0xff]
        %v1936 = vld [vmem:[%s1849 + $0x169] sm:$0xff]
        %v1937 = vld [vmem:[%s1849 + $0x171] sm:$0xff]
        %v1938 = vld [vmem:[%s1849 + $0x189] sm:$0xff]
        %v1939 = vld [vmem:[%s1849 + $0x191] sm:$0xff]
        %v1940 = vld [vmem:[%s1849 + $0x1a9] sm:$0xff]
        %v1941 = vld [vmem:[%s1849 + $0x1b1] sm:$0xff]
        %v1942 = vld [vmem:[%s1849 + $0x1c9] sm:$0xff]
        %v1943 = vld [vmem:[%s1849 + $0x1d1] sm:$0xff]
        %v1944 = vld [vmem:[%s1849 + $0x1e9] sm:$0xff]
        %v1945 = vld [vmem:[%s1849 + $0x1f1] sm:$0xff]
        %1978 = vrot.lane.b32.xlu0 %v1689, 8
        %v1979 = vpop.permute.xlu0 %1978
        %1980 = vrot.lane.b32.xlu0 %v1690, 8
        %v1981 = vpop.permute.xlu0 %1980
        %1982 = vrot.lane.b32.xlu0 %v1691, 8
        %v1983 = vpop.permute.xlu0 %1982
        %1984 = vrot.lane.b32.xlu0 %v1692, 8
        %v1985 = vpop.permute.xlu0 %1984
        %1986 = vrot.lane.b32.xlu0 %v1693, 8
        %v1987 = vpop.permute.xlu0 %1986
        %1988 = vrot.lane.b32.xlu0 %v1694, 8
        %v1989 = vpop.permute.xlu0 %1988
        %1990 = vrot.lane.b32.xlu0 %v1695, 8
        %v1991 = vpop.permute.xlu0 %1990
        %1992 = vrot.lane.b32.xlu0 %v1696, 8
        %v1993 = vpop.permute.xlu0 %1992
        %1994 = vrot.lane.b32.xlu0 %v1697, 8
        %v1995 = vpop.permute.xlu0 %1994
        %1996 = vrot.lane.b32.xlu0 %v1698, 8
        %v1997 = vpop.permute.xlu0 %1996
        %1998 = vrot.lane.b32.xlu0 %v1699, 8
        %v1999 = vpop.permute.xlu0 %1998
        %2000 = vrot.lane.b32.xlu0 %v1700, 8
        %v2001 = vpop.permute.xlu0 %2000
        %2002 = vrot.lane.b32.xlu0 %v1701, 8
        %v2003 = vpop.permute.xlu0 %2002
        %2004 = vrot.lane.b32.xlu0 %v1702, 8
        %v2005 = vpop.permute.xlu0 %2004
        %2006 = vrot.lane.b32.xlu0 %v1703, 8
        %v2007 = vpop.permute.xlu0 %2006
        %2008 = vrot.lane.b32.xlu0 %v1704, 8
        %v2009 = vpop.permute.xlu0 %2008
        %2010 = vrot.lane.b32.xlu0 %v1705, 8
        %v2011 = vpop.permute.xlu0 %2010
        %2012 = vrot.lane.b32.xlu0 %v1706, 8
        %v2013 = vpop.permute.xlu0 %2012
        %2014 = vrot.lane.b32.xlu0 %v1707, 8
        %v2015 = vpop.permute.xlu0 %2014
        %2016 = vrot.lane.b32.xlu0 %v1708, 8
        %v2017 = vpop.permute.xlu0 %2016
        %2018 = vrot.lane.b32.xlu0 %v1709, 8
        %v2019 = vpop.permute.xlu0 %2018
        %2020 = vrot.lane.b32.xlu0 %v1710, 8
        %v2021 = vpop.permute.xlu0 %2020
        %2022 = vrot.lane.b32.xlu0 %v1711, 8
        %v2023 = vpop.permute.xlu0 %2022
        %2024 = vrot.lane.b32.xlu0 %v1712, 8
        %v2025 = vpop.permute.xlu0 %2024
        %2026 = vrot.lane.b32.xlu0 %v1713, 8
        %v2027 = vpop.permute.xlu0 %2026
        %2028 = vrot.lane.b32.xlu0 %v1714, 8
        %v2029 = vpop.permute.xlu0 %2028
        %2030 = vrot.lane.b32.xlu0 %v1715, 8
        %v2031 = vpop.permute.xlu0 %2030
        %2032 = vrot.lane.b32.xlu0 %v1716, 8
        %v2033 = vpop.permute.xlu0 %2032
        %2034 = vrot.lane.b32.xlu0 %v1717, 8
        %v2035 = vpop.permute.xlu0 %2034
        %2036 = vrot.lane.b32.xlu0 %v1718, 8
        %v2037 = vpop.permute.xlu0 %2036
        %2038 = vrot.lane.b32.xlu0 %v1719, 8
        %v2039 = vpop.permute.xlu0 %2038
        %2040 = vrot.lane.b32.xlu0 %v1720, 8
        %v2041 = vpop.permute.xlu0 %2040
        %2106 = vrot.lane.b32.xlu0 %v1721, 16
        %v2107 = vpop.permute.xlu0 %2106
        %2108 = vrot.lane.b32.xlu0 %v1722, 16
        %v2109 = vpop.permute.xlu0 %2108
        %2110 = vrot.lane.b32.xlu0 %v1723, 16
        %v2111 = vpop.permute.xlu0 %2110
        %2112 = vrot.lane.b32.xlu0 %v1724, 16
        %v2113 = vpop.permute.xlu0 %2112
        %2114 = vrot.lane.b32.xlu0 %v1725, 16
        %v2115 = vpop.permute.xlu0 %2114
        %2116 = vrot.lane.b32.xlu0 %v1726, 16
        %v2117 = vpop.permute.xlu0 %2116
        %2118 = vrot.lane.b32.xlu0 %v1727, 16
        %v2119 = vpop.permute.xlu0 %2118
        %2120 = vrot.lane.b32.xlu0 %v1728, 16
        %v2121 = vpop.permute.xlu0 %2120
        %2122 = vrot.lane.b32.xlu0 %v1729, 16
        %v2123 = vpop.permute.xlu0 %2122
        %2124 = vrot.lane.b32.xlu0 %v1730, 16
        %v2125 = vpop.permute.xlu0 %2124
        %2126 = vrot.lane.b32.xlu0 %v1731, 16
        %v2127 = vpop.permute.xlu0 %2126
        %2128 = vrot.lane.b32.xlu0 %v1732, 16
        %v2129 = vpop.permute.xlu0 %2128
        %2130 = vrot.lane.b32.xlu0 %v1733, 16
        %v2131 = vpop.permute.xlu0 %2130
        %2132 = vrot.lane.b32.xlu0 %v1734, 16
        %v2133 = vpop.permute.xlu0 %2132
        %2134 = vrot.lane.b32.xlu0 %v1735, 16
        %v2135 = vpop.permute.xlu0 %2134
        %2136 = vrot.lane.b32.xlu0 %v1736, 16
        %v2137 = vpop.permute.xlu0 %2136
        %2138 = vrot.lane.b32.xlu0 %v1737, 16
        %v2139 = vpop.permute.xlu0 %2138
        %2140 = vrot.lane.b32.xlu0 %v1738, 16
        %v2141 = vpop.permute.xlu0 %2140
        %2142 = vrot.lane.b32.xlu0 %v1739, 16
        %v2143 = vpop.permute.xlu0 %2142
        %2144 = vrot.lane.b32.xlu0 %v1740, 16
        %v2145 = vpop.permute.xlu0 %2144
        %2146 = vrot.lane.b32.xlu0 %v1741, 16
        %v2147 = vpop.permute.xlu0 %2146
        %2148 = vrot.lane.b32.xlu0 %v1742, 16
        %v2149 = vpop.permute.xlu0 %2148
        %2150 = vrot.lane.b32.xlu0 %v1743, 16
        %v2151 = vpop.permute.xlu0 %2150
        %2152 = vrot.lane.b32.xlu0 %v1744, 16
        %v2153 = vpop.permute.xlu0 %2152
        %2154 = vrot.lane.b32.xlu0 %v1745, 16
        %v2155 = vpop.permute.xlu0 %2154
        %2156 = vrot.lane.b32.xlu0 %v1746, 16
        %v2157 = vpop.permute.xlu0 %2156
        %2158 = vrot.lane.b32.xlu0 %v1747, 16
        %v2159 = vpop.permute.xlu0 %2158
        %2160 = vrot.lane.b32.xlu0 %v1748, 16
        %v2161 = vpop.permute.xlu0 %2160
        %2162 = vrot.lane.b32.xlu0 %v1749, 16
        %v2163 = vpop.permute.xlu0 %2162
        %2164 = vrot.lane.b32.xlu0 %v1750, 16
        %v2165 = vpop.permute.xlu0 %2164
        %2166 = vrot.lane.b32.xlu0 %v1751, 16
        %v2167 = vpop.permute.xlu0 %2166
        %2168 = vrot.lane.b32.xlu0 %v1752, 16
        %v2169 = vpop.permute.xlu0 %2168
        %2234 = vrot.lane.b32.xlu0 %v1753, 24
        %v2235 = vpop.permute.xlu0 %2234
        %2236 = vrot.lane.b32.xlu0 %v1754, 24
        %v2237 = vpop.permute.xlu0 %2236
        %2238 = vrot.lane.b32.xlu0 %v1755, 24
        %v2239 = vpop.permute.xlu0 %2238
        %2240 = vrot.lane.b32.xlu0 %v1756, 24
        %v2241 = vpop.permute.xlu0 %2240
        %2242 = vrot.lane.b32.xlu0 %v1757, 24
        %v2243 = vpop.permute.xlu0 %2242
        %2244 = vrot.lane.b32.xlu0 %v1758, 24
        %v2245 = vpop.permute.xlu0 %2244
        %2246 = vrot.lane.b32.xlu0 %v1759, 24
        %v2247 = vpop.permute.xlu0 %2246
        %2248 = vrot.lane.b32.xlu0 %v1760, 24
        %v2249 = vpop.permute.xlu0 %2248
        %2250 = vrot.lane.b32.xlu0 %v1761, 24
        %v2251 = vpop.permute.xlu0 %2250
        %2252 = vrot.lane.b32.xlu0 %v1762, 24
        %v2253 = vpop.permute.xlu0 %2252
        %2254 = vrot.lane.b32.xlu0 %v1763, 24
        %v2255 = vpop.permute.xlu0 %2254
        %2256 = vrot.lane.b32.xlu0 %v1764, 24
        %v2257 = vpop.permute.xlu0 %2256
        %2258 = vrot.lane.b32.xlu0 %v1765, 24
        %v2259 = vpop.permute.xlu0 %2258
        %2260 = vrot.lane.b32.xlu0 %v1766, 24
        %v2261 = vpop.permute.xlu0 %2260
        %2262 = vrot.lane.b32.xlu0 %v1767, 24
        %v2263 = vpop.permute.xlu0 %2262
        %2264 = vrot.lane.b32.xlu0 %v1768, 24
        %v2265 = vpop.permute.xlu0 %2264
        %2266 = vrot.lane.b32.xlu0 %v1769, 24
        %v2267 = vpop.permute.xlu0 %2266
        %2268 = vrot.lane.b32.xlu0 %v1770, 24
        %v2269 = vpop.permute.xlu0 %2268
        %2270 = vrot.lane.b32.xlu0 %v1771, 24
        %v2271 = vpop.permute.xlu0 %2270
        %2272 = vrot.lane.b32.xlu0 %v1772, 24
        %v2273 = vpop.permute.xlu0 %2272
        %2274 = vrot.lane.b32.xlu0 %v1773, 24
        %v2275 = vpop.permute.xlu0 %2274
        %2276 = vrot.lane.b32.xlu0 %v1774, 24
        %v2277 = vpop.permute.xlu0 %2276
        %2278 = vrot.lane.b32.xlu0 %v1775, 24
        %v2279 = vpop.permute.xlu0 %2278
        %2280 = vrot.lane.b32.xlu0 %v1776, 24
        %v2281 = vpop.permute.xlu0 %2280
        %2282 = vrot.lane.b32.xlu0 %v1777, 24
        %v2283 = vpop.permute.xlu0 %2282
        %2284 = vrot.lane.b32.xlu0 %v1778, 24
        %v2285 = vpop.permute.xlu0 %2284
        %2286 = vrot.lane.b32.xlu0 %v1779, 24
        %v2287 = vpop.permute.xlu0 %2286
        %2288 = vrot.lane.b32.xlu0 %v1780, 24
        %v2289 = vpop.permute.xlu0 %2288
        %2290 = vrot.lane.b32.xlu0 %v1781, 24
        %v2291 = vpop.permute.xlu0 %2290
        %2292 = vrot.lane.b32.xlu0 %v1782, 24
        %v2293 = vpop.permute.xlu0 %2292
        %2294 = vrot.lane.b32.xlu0 %v1783, 24
        %v2295 = vpop.permute.xlu0 %2294
        %2296 = vrot.lane.b32.xlu0 %v1784, 24
        %v2297 = vpop.permute.xlu0 %2296
        %2362 = vrot.lane.b32.xlu0 %v1785, 32
        %v2363 = vpop.permute.xlu0 %2362
        %2364 = vrot.lane.b32.xlu0 %v1786, 32
        %v2365 = vpop.permute.xlu0 %2364
        %2366 = vrot.lane.b32.xlu0 %v1787, 32
        %v2367 = vpop.permute.xlu0 %2366
        %2368 = vrot.lane.b32.xlu0 %v1788, 32
        %v2369 = vpop.permute.xlu0 %2368
        %2370 = vrot.lane.b32.xlu0 %v1789, 32
        %v2371 = vpop.permute.xlu0 %2370
        %2372 = vrot.lane.b32.xlu0 %v1790, 32
        %v2373 = vpop.permute.xlu0 %2372
        %2374 = vrot.lane.b32.xlu0 %v1791, 32
        %v2375 = vpop.permute.xlu0 %2374
        %2376 = vrot.lane.b32.xlu0 %v1792, 32
        %v2377 = vpop.permute.xlu0 %2376
        %2378 = vrot.lane.b32.xlu0 %v1793, 32
        %v2379 = vpop.permute.xlu0 %2378
        %2380 = vrot.lane.b32.xlu0 %v1794, 32
        %v2381 = vpop.permute.xlu0 %2380
        %2382 = vrot.lane.b32.xlu0 %v1795, 32
        %v2383 = vpop.permute.xlu0 %2382
        %2384 = vrot.lane.b32.xlu0 %v1796, 32
        %v2385 = vpop.permute.xlu0 %2384
        %2386 = vrot.lane.b32.xlu0 %v1797, 32
        %v2387 = vpop.permute.xlu0 %2386
        %2388 = vrot.lane.b32.xlu0 %v1798, 32
        %v2389 = vpop.permute.xlu0 %2388
        %2390 = vrot.lane.b32.xlu0 %v1799, 32
        %v2391 = vpop.permute.xlu0 %2390
        %2392 = vrot.lane.b32.xlu0 %v1800, 32
        %v2393 = vpop.permute.xlu0 %2392
        %2394 = vrot.lane.b32.xlu0 %v1801, 32
        %v2395 = vpop.permute.xlu0 %2394
        %2396 = vrot.lane.b32.xlu0 %v1802, 32
        %v2397 = vpop.permute.xlu0 %2396
        %2398 = vrot.lane.b32.xlu0 %v1803, 32
        %v2399 = vpop.permute.xlu0 %2398
        %2400 = vrot.lane.b32.xlu0 %v1804, 32
        %v2401 = vpop.permute.xlu0 %2400
        %2402 = vrot.lane.b32.xlu0 %v1805, 32
        %v2403 = vpop.permute.xlu0 %2402
        %2404 = vrot.lane.b32.xlu0 %v1806, 32
        %v2405 = vpop.permute.xlu0 %2404
        %2406 = vrot.lane.b32.xlu0 %v1807, 32
        %v2407 = vpop.permute.xlu0 %2406
        %2408 = vrot.lane.b32.xlu0 %v1808, 32
        %v2409 = vpop.permute.xlu0 %2408
        %2410 = vrot.lane.b32.xlu0 %v1809, 32
        %v2411 = vpop.permute.xlu0 %2410
        %2412 = vrot.lane.b32.xlu0 %v1810, 32
        %v2413 = vpop.permute.xlu0 %2412
        %2414 = vrot.lane.b32.xlu0 %v1811, 32
        %v2415 = vpop.permute.xlu0 %2414
        %2416 = vrot.lane.b32.xlu0 %v1812, 32
        %v2417 = vpop.permute.xlu0 %2416
        %2418 = vrot.lane.b32.xlu0 %v1813, 32
        %v2419 = vpop.permute.xlu0 %2418
        %2420 = vrot.lane.b32.xlu0 %v1814, 32
        %v2421 = vpop.permute.xlu0 %2420
        %2422 = vrot.lane.b32.xlu0 %v1815, 32
        %v2423 = vpop.permute.xlu0 %2422
        %2424 = vrot.lane.b32.xlu0 %v1816, 32
        %v2425 = vpop.permute.xlu0 %2424
        %2490 = vrot.lane.b32.xlu0 %v1817, 40
        %v2491 = vpop.permute.xlu0 %2490
        %2492 = vrot.lane.b32.xlu0 %v1818, 40
        %v2493 = vpop.permute.xlu0 %2492
        %2494 = vrot.lane.b32.xlu0 %v1819, 40
        %v2495 = vpop.permute.xlu0 %2494
        %2496 = vrot.lane.b32.xlu0 %v1820, 40
        %v2497 = vpop.permute.xlu0 %2496
        %2498 = vrot.lane.b32.xlu0 %v1821, 40
        %v2499 = vpop.permute.xlu0 %2498
        %2500 = vrot.lane.b32.xlu0 %v1822, 40
        %v2501 = vpop.permute.xlu0 %2500
        %2502 = vrot.lane.b32.xlu0 %v1823, 40
        %v2503 = vpop.permute.xlu0 %2502
        %2504 = vrot.lane.b32.xlu0 %v1824, 40
        %v2505 = vpop.permute.xlu0 %2504
        %2506 = vrot.lane.b32.xlu0 %v1825, 40
        %v2507 = vpop.permute.xlu0 %2506
        %2508 = vrot.lane.b32.xlu0 %v1826, 40
        %v2509 = vpop.permute.xlu0 %2508
        %2510 = vrot.lane.b32.xlu0 %v1827, 40
        %v2511 = vpop.permute.xlu0 %2510
        %2512 = vrot.lane.b32.xlu0 %v1828, 40
        %v2513 = vpop.permute.xlu0 %2512
        %2514 = vrot.lane.b32.xlu0 %v1829, 40
        %v2515 = vpop.permute.xlu0 %2514
        %2516 = vrot.lane.b32.xlu0 %v1830, 40
        %v2517 = vpop.permute.xlu0 %2516
        %2518 = vrot.lane.b32.xlu0 %v1831, 40
        %v2519 = vpop.permute.xlu0 %2518
        %2520 = vrot.lane.b32.xlu0 %v1832, 40
        %v2521 = vpop.permute.xlu0 %2520
        %2522 = vrot.lane.b32.xlu0 %v1833, 40
        %v2523 = vpop.permute.xlu0 %2522
        %2524 = vrot.lane.b32.xlu0 %v1834, 40
        %v2525 = vpop.permute.xlu0 %2524
        %2526 = vrot.lane.b32.xlu0 %v1835, 40
        %v2527 = vpop.permute.xlu0 %2526
        %2528 = vrot.lane.b32.xlu0 %v1836, 40
        %v2529 = vpop.permute.xlu0 %2528
        %2530 = vrot.lane.b32.xlu0 %v1837, 40
        %v2531 = vpop.permute.xlu0 %2530
        %2532 = vrot.lane.b32.xlu0 %v1838, 40
        %v2533 = vpop.permute.xlu0 %2532
        %2534 = vrot.lane.b32.xlu0 %v1839, 40
        %v2535 = vpop.permute.xlu0 %2534
        %2536 = vrot.lane.b32.xlu0 %v1840, 40
        %v2537 = vpop.permute.xlu0 %2536
        %2538 = vrot.lane.b32.xlu0 %v1841, 40
        %v2539 = vpop.permute.xlu0 %2538
        %2540 = vrot.lane.b32.xlu0 %v1842, 40
        %v2541 = vpop.permute.xlu0 %2540
        %2542 = vrot.lane.b32.xlu0 %v1843, 40
        %v2543 = vpop.permute.xlu0 %2542
        %2544 = vrot.lane.b32.xlu0 %v1844, 40
        %v2545 = vpop.permute.xlu0 %2544
        %2546 = vrot.lane.b32.xlu0 %v1845, 40
        %v2547 = vpop.permute.xlu0 %2546
        %2548 = vrot.lane.b32.xlu0 %v1846, 40
        %v2549 = vpop.permute.xlu0 %2548
        %2550 = vrot.lane.b32.xlu0 %v1847, 40
        %v2551 = vpop.permute.xlu0 %2550
        %2552 = vrot.lane.b32.xlu0 %v1848, 40
        %v2553 = vpop.permute.xlu0 %2552
        %2618 = vrot.lane.b32.xlu0 %v1850, 48
        %v2619 = vpop.permute.xlu0 %2618
        %2620 = vrot.lane.b32.xlu0 %v1851, 48
        %v2621 = vpop.permute.xlu0 %2620
        %2622 = vrot.lane.b32.xlu0 %v1852, 48
        %v2623 = vpop.permute.xlu0 %2622
        %2624 = vrot.lane.b32.xlu0 %v1853, 48
        %v2625 = vpop.permute.xlu0 %2624
        %2626 = vrot.lane.b32.xlu0 %v1854, 48
        %v2627 = vpop.permute.xlu0 %2626
        %2628 = vrot.lane.b32.xlu0 %v1855, 48
        %v2629 = vpop.permute.xlu0 %2628
        %2630 = vrot.lane.b32.xlu0 %v1856, 48
        %v2631 = vpop.permute.xlu0 %2630
        %2632 = vrot.lane.b32.xlu0 %v1857, 48
        %v2633 = vpop.permute.xlu0 %2632
        %2634 = vrot.lane.b32.xlu0 %v1858, 48
        %v2635 = vpop.permute.xlu0 %2634
        %2636 = vrot.lane.b32.xlu0 %v1859, 48
        %v2637 = vpop.permute.xlu0 %2636
        %2638 = vrot.lane.b32.xlu0 %v1860, 48
        %v2639 = vpop.permute.xlu0 %2638
        %2640 = vrot.lane.b32.xlu0 %v1861, 48
        %v2641 = vpop.permute.xlu0 %2640
        %2642 = vrot.lane.b32.xlu0 %v1862, 48
        %v2643 = vpop.permute.xlu0 %2642
        %2644 = vrot.lane.b32.xlu0 %v1863, 48
        %v2645 = vpop.permute.xlu0 %2644
        %2646 = vrot.lane.b32.xlu0 %v1864, 48
        %v2647 = vpop.permute.xlu0 %2646
        %2648 = vrot.lane.b32.xlu0 %v1865, 48
        %v2649 = vpop.permute.xlu0 %2648
        %2650 = vrot.lane.b32.xlu0 %v1866, 48
        %v2651 = vpop.permute.xlu0 %2650
        %2652 = vrot.lane.b32.xlu0 %v1867, 48
        %v2653 = vpop.permute.xlu0 %2652
        %2654 = vrot.lane.b32.xlu0 %v1868, 48
        %v2655 = vpop.permute.xlu0 %2654
        %2656 = vrot.lane.b32.xlu0 %v1869, 48
        %v2657 = vpop.permute.xlu0 %2656
        %2658 = vrot.lane.b32.xlu0 %v1870, 48
        %v2659 = vpop.permute.xlu0 %2658
        %2660 = vrot.lane.b32.xlu0 %v1871, 48
        %v2661 = vpop.permute.xlu0 %2660
        %2662 = vrot.lane.b32.xlu0 %v1872, 48
        %v2663 = vpop.permute.xlu0 %2662
        %2664 = vrot.lane.b32.xlu0 %v1873, 48
        %v2665 = vpop.permute.xlu0 %2664
        %2666 = vrot.lane.b32.xlu0 %v1874, 48
        %v2667 = vpop.permute.xlu0 %2666
        %2668 = vrot.lane.b32.xlu0 %v1875, 48
        %v2669 = vpop.permute.xlu0 %2668
        %2670 = vrot.lane.b32.xlu0 %v1876, 48
        %v2671 = vpop.permute.xlu0 %2670
        %2672 = vrot.lane.b32.xlu0 %v1877, 48
        %v2673 = vpop.permute.xlu0 %2672
        %2674 = vrot.lane.b32.xlu0 %v1878, 48
        %v2675 = vpop.permute.xlu0 %2674
        %2676 = vrot.lane.b32.xlu0 %v1879, 48
        %v2677 = vpop.permute.xlu0 %2676
        %2678 = vrot.lane.b32.xlu0 %v1880, 48
        %v2679 = vpop.permute.xlu0 %2678
        %2680 = vrot.lane.b32.xlu0 %v1881, 48
        %v2681 = vpop.permute.xlu0 %2680
        %2746 = vrot.lane.b32.xlu0 %v1882, 56
        %v2747 = vpop.permute.xlu0 %2746
        %2748 = vrot.lane.b32.xlu0 %v1883, 56
        %v2749 = vpop.permute.xlu0 %2748
        %2750 = vrot.lane.b32.xlu0 %v1884, 56
        %v2751 = vpop.permute.xlu0 %2750
        %2752 = vrot.lane.b32.xlu0 %v1885, 56
        %v2753 = vpop.permute.xlu0 %2752
        %2754 = vrot.lane.b32.xlu0 %v1886, 56
        %v2755 = vpop.permute.xlu0 %2754
        %2756 = vrot.lane.b32.xlu0 %v1887, 56
        %v2757 = vpop.permute.xlu0 %2756
        %2758 = vrot.lane.b32.xlu0 %v1888, 56
        %v2759 = vpop.permute.xlu0 %2758
        %2760 = vrot.lane.b32.xlu0 %v1889, 56
        %v2761 = vpop.permute.xlu0 %2760
        %2762 = vrot.lane.b32.xlu0 %v1890, 56
        %v2763 = vpop.permute.xlu0 %2762
        %2764 = vrot.lane.b32.xlu0 %v1891, 56
        %v2765 = vpop.permute.xlu0 %2764
        %2766 = vrot.lane.b32.xlu0 %v1892, 56
        %v2767 = vpop.permute.xlu0 %2766
        %2768 = vrot.lane.b32.xlu0 %v1893, 56
        %v2769 = vpop.permute.xlu0 %2768
        %2770 = vrot.lane.b32.xlu0 %v1894, 56
        %v2771 = vpop.permute.xlu0 %2770
        %2772 = vrot.lane.b32.xlu0 %v1895, 56
        %v2773 = vpop.permute.xlu0 %2772
        %2774 = vrot.lane.b32.xlu0 %v1896, 56
        %v2775 = vpop.permute.xlu0 %2774
        %2776 = vrot.lane.b32.xlu0 %v1897, 56
        %v2777 = vpop.permute.xlu0 %2776
        %2778 = vrot.lane.b32.xlu0 %v1898, 56
        %v2779 = vpop.permute.xlu0 %2778
        %2780 = vrot.lane.b32.xlu0 %v1899, 56
        %v2781 = vpop.permute.xlu0 %2780
        %2782 = vrot.lane.b32.xlu0 %v1900, 56
        %v2783 = vpop.permute.xlu0 %2782
        %2784 = vrot.lane.b32.xlu0 %v1901, 56
        %v2785 = vpop.permute.xlu0 %2784
        %2786 = vrot.lane.b32.xlu0 %v1902, 56
        %v2787 = vpop.permute.xlu0 %2786
        %2788 = vrot.lane.b32.xlu0 %v1903, 56
        %v2789 = vpop.permute.xlu0 %2788
        %2790 = vrot.lane.b32.xlu0 %v1904, 56
        %v2791 = vpop.permute.xlu0 %2790
        %2792 = vrot.lane.b32.xlu0 %v1905, 56
        %v2793 = vpop.permute.xlu0 %2792
        %2794 = vrot.lane.b32.xlu0 %v1906, 56
        %v2795 = vpop.permute.xlu0 %2794
        %2796 = vrot.lane.b32.xlu0 %v1907, 56
        %v2797 = vpop.permute.xlu0 %2796
        %2798 = vrot.lane.b32.xlu0 %v1908, 56
        %v2799 = vpop.permute.xlu0 %2798
        %2800 = vrot.lane.b32.xlu0 %v1909, 56
        %v2801 = vpop.permute.xlu0 %2800
        %2802 = vrot.lane.b32.xlu0 %v1910, 56
        %v2803 = vpop.permute.xlu0 %2802
        %2804 = vrot.lane.b32.xlu0 %v1911, 56
        %v2805 = vpop.permute.xlu0 %2804
        %2806 = vrot.lane.b32.xlu0 %v1912, 56
        %v2807 = vpop.permute.xlu0 %2806
        %2808 = vrot.lane.b32.xlu0 %v1913, 56
        %v2809 = vpop.permute.xlu0 %2808
        %2874 = vrot.lane.b32.xlu0 %v1914, 64
        %v2875 = vpop.permute.xlu0 %2874
        %2876 = vrot.lane.b32.xlu0 %v1915, 64
        %v2877 = vpop.permute.xlu0 %2876
        %2878 = vrot.lane.b32.xlu0 %v1916, 64
        %v2879 = vpop.permute.xlu0 %2878
        %2880 = vrot.lane.b32.xlu0 %v1917, 64
        %v2881 = vpop.permute.xlu0 %2880
        %2882 = vrot.lane.b32.xlu0 %v1918, 64
        %v2883 = vpop.permute.xlu0 %2882
        %2884 = vrot.lane.b32.xlu0 %v1919, 64
        %v2885 = vpop.permute.xlu0 %2884
        %2886 = vrot.lane.b32.xlu0 %v1920, 64
        %v2887 = vpop.permute.xlu0 %2886
        %2888 = vrot.lane.b32.xlu0 %v1921, 64
        %v2889 = vpop.permute.xlu0 %2888
        %2890 = vrot.lane.b32.xlu0 %v1922, 64
        %v2891 = vpop.permute.xlu0 %2890
        %2892 = vrot.lane.b32.xlu0 %v1923, 64
        %v2893 = vpop.permute.xlu0 %2892
        %2894 = vrot.lane.b32.xlu0 %v1924, 64
        %v2895 = vpop.permute.xlu0 %2894
        %2896 = vrot.lane.b32.xlu0 %v1925, 64
        %v2897 = vpop.permute.xlu0 %2896
        %2898 = vrot.lane.b32.xlu0 %v1926, 64
        %v2899 = vpop.permute.xlu0 %2898
        %2900 = vrot.lane.b32.xlu0 %v1927, 64
        %v2901 = vpop.permute.xlu0 %2900
        %2902 = vrot.lane.b32.xlu0 %v1928, 64
        %v2903 = vpop.permute.xlu0 %2902
        %2904 = vrot.lane.b32.xlu0 %v1929, 64
        %v2905 = vpop.permute.xlu0 %2904
        %2906 = vrot.lane.b32.xlu0 %v1930, 64
        %v2907 = vpop.permute.xlu0 %2906
        %2908 = vrot.lane.b32.xlu0 %v1931, 64
        %v2909 = vpop.permute.xlu0 %2908
        %2910 = vrot.lane.b32.xlu0 %v1932, 64
        %v2911 = vpop.permute.xlu0 %2910
        %2912 = vrot.lane.b32.xlu0 %v1933, 64
        %v2913 = vpop.permute.xlu0 %2912
        %2914 = vrot.lane.b32.xlu0 %v1934, 64
        %v2915 = vpop.permute.xlu0 %2914
        %2916 = vrot.lane.b32.xlu0 %v1935, 64
        %v2917 = vpop.permute.xlu0 %2916
        %2918 = vrot.lane.b32.xlu0 %v1936, 64
        %v2919 = vpop.permute.xlu0 %2918
        %2920 = vrot.lane.b32.xlu0 %v1937, 64
        %v2921 = vpop.permute.xlu0 %2920
        %2922 = vrot.lane.b32.xlu0 %v1938, 64
        %v2923 = vpop.permute.xlu0 %2922
        %2924 = vrot.lane.b32.xlu0 %v1939, 64
        %v2925 = vpop.permute.xlu0 %2924
        %2926 = vrot.lane.b32.xlu0 %v1940, 64
        %v2927 = vpop.permute.xlu0 %2926
        %2928 = vrot.lane.b32.xlu0 %v1941, 64
        %v2929 = vpop.permute.xlu0 %2928
        %2930 = vrot.lane.b32.xlu0 %v1942, 64
        %v2931 = vpop.permute.xlu0 %2930
        %2932 = vrot.lane.b32.xlu0 %v1943, 64
        %v2933 = vpop.permute.xlu0 %2932
        %2934 = vrot.lane.b32.xlu0 %v1944, 64
        %v2935 = vpop.permute.xlu0 %2934
        %2936 = vrot.lane.b32.xlu0 %v1945, 64
        %v2937 = vpop.permute.xlu0 %2936
        %v2970 = vsel %vm439, %v1657, %v1979
        %v2971 = vsel %vm439, %v1658, %v1981
        %v2972 = vsel %vm439, %v1659, %v1983
        %v2973 = vsel %vm439, %v1660, %v1985
        %v2974 = vsel %vm439, %v1661, %v1987
        %v2975 = vsel %vm439, %v1662, %v1989
        %v2976 = vsel %vm439, %v1663, %v1991
        %v2977 = vsel %vm439, %v1664, %v1993
        %v2978 = vsel %vm439, %v1665, %v1995
        %v2979 = vsel %vm439, %v1666, %v1997
        %v2980 = vsel %vm439, %v1667, %v1999
        %v2981 = vsel %vm439, %v1668, %v2001
        %v2982 = vsel %vm439, %v1669, %v2003
        %v2983 = vsel %vm439, %v1670, %v2005
        %v2984 = vsel %vm439, %v1671, %v2007
        %v2985 = vsel %vm439, %v1672, %v2009
        %v2986 = vsel %vm439, %v1673, %v2011
        %v2987 = vsel %vm439, %v1674, %v2013
        %v2988 = vsel %vm439, %v1675, %v2015
        %v2989 = vsel %vm439, %v1676, %v2017
        %v2990 = vsel %vm439, %v1677, %v2019
        %v2991 = vsel %vm439, %v1678, %v2021
        %v2992 = vsel %vm439, %v1679, %v2023
        %v2993 = vsel %vm439, %v1680, %v2025
        %v2994 = vsel %vm439, %v1681, %v2027
        %v2995 = vsel %vm439, %v1682, %v2029
        %v2996 = vsel %vm439, %v1683, %v2031
        %v2997 = vsel %vm439, %v1684, %v2033
        %v2998 = vsel %vm439, %v1685, %v2035
        %v2999 = vsel %vm439, %v1686, %v2037
        %v3000 = vsel %vm439, %v1687, %v2039
        %v3001 = vsel %vm439, %v1688, %v2041
        %v3002 = vsel %vm513, %v2970, %v2107
        %v3003 = vsel %vm513, %v2971, %v2109
        %v3004 = vsel %vm513, %v2972, %v2111
        %v3005 = vsel %vm513, %v2973, %v2113
        %v3006 = vsel %vm513, %v2974, %v2115
        %v3007 = vsel %vm513, %v2975, %v2117
        %v3008 = vsel %vm513, %v2976, %v2119
        %v3009 = vsel %vm513, %v2977, %v2121
        %v3010 = vsel %vm513, %v2978, %v2123
        %v3011 = vsel %vm513, %v2979, %v2125
        %v3012 = vsel %vm513, %v2980, %v2127
        %v3013 = vsel %vm513, %v2981, %v2129
        %v3014 = vsel %vm513, %v2982, %v2131
        %v3015 = vsel %vm513, %v2983, %v2133
        %v3016 = vsel %vm513, %v2984, %v2135
        %v3017 = vsel %vm513, %v2985, %v2137
        %v3018 = vsel %vm513, %v2986, %v2139
        %v3019 = vsel %vm513, %v2987, %v2141
        %v3020 = vsel %vm513, %v2988, %v2143
        %v3021 = vsel %vm513, %v2989, %v2145
        %v3022 = vsel %vm513, %v2990, %v2147
        %v3023 = vsel %vm513, %v2991, %v2149
        %v3024 = vsel %vm513, %v2992, %v2151
        %v3025 = vsel %vm513, %v2993, %v2153
        %v3026 = vsel %vm513, %v2994, %v2155
        %v3027 = vsel %vm513, %v2995, %v2157
        %v3028 = vsel %vm513, %v2996, %v2159
        %v3029 = vsel %vm513, %v2997, %v2161
        %v3030 = vsel %vm513, %v2998, %v2163
        %v3031 = vsel %vm513, %v2999, %v2165
        %v3032 = vsel %vm513, %v3000, %v2167
        %v3033 = vsel %vm513, %v3001, %v2169
        %vm3034 = vcmask 195584
        %v3035 = vsel %vm3034, %v3002, %v2235
        %v3036 = vsel %vm3034, %v3003, %v2237
        %v3037 = vsel %vm3034, %v3004, %v2239
        %v3038 = vsel %vm3034, %v3005, %v2241
        %v3039 = vsel %vm3034, %v3006, %v2243
        %v3040 = vsel %vm3034, %v3007, %v2245
        %v3041 = vsel %vm3034, %v3008, %v2247
        %v3042 = vsel %vm3034, %v3009, %v2249
        %v3043 = vsel %vm3034, %v3010, %v2251
        %v3044 = vsel %vm3034, %v3011, %v2253
        %v3045 = vsel %vm3034, %v3012, %v2255
        %v3046 = vsel %vm3034, %v3013, %v2257
        %v3047 = vsel %vm3034, %v3014, %v2259
        %v3048 = vsel %vm3034, %v3015, %v2261
        %v3049 = vsel %vm3034, %v3016, %v2263
        %v3050 = vsel %vm3034, %v3017, %v2265
        %v3051 = vsel %vm3034, %v3018, %v2267
        %v3052 = vsel %vm3034, %v3019, %v2269
        %v3053 = vsel %vm3034, %v3020, %v2271
        %v3054 = vsel %vm3034, %v3021, %v2273
        %v3055 = vsel %vm3034, %v3022, %v2275
        %v3056 = vsel %vm3034, %v3023, %v2277
        %v3057 = vsel %vm3034, %v3024, %v2279
        %v3058 = vsel %vm3034, %v3025, %v2281
        %v3059 = vsel %vm3034, %v3026, %v2283
        %v3060 = vsel %vm3034, %v3027, %v2285
        %v3061 = vsel %vm3034, %v3028, %v2287
        %v3062 = vsel %vm3034, %v3029, %v2289
        %v3063 = vsel %vm3034, %v3030, %v2291
        %v3064 = vsel %vm3034, %v3031, %v2293
        %v3065 = vsel %vm3034, %v3032, %v2295
        %v3066 = vsel %vm3034, %v3033, %v2297
        %vm3067 = vcmask 261120
        %v3068 = vsel %vm3067, %v3035, %v2363
        %v3069 = vsel %vm3067, %v3036, %v2365
        %v3070 = vsel %vm3067, %v3037, %v2367
        %v3071 = vsel %vm3067, %v3038, %v2369
        %v3072 = vsel %vm3067, %v3039, %v2371
        %v3073 = vsel %vm3067, %v3040, %v2373
        %v3074 = vsel %vm3067, %v3041, %v2375
        %v3075 = vsel %vm3067, %v3042, %v2377
        %v3076 = vsel %vm3067, %v3043, %v2379
        %v3077 = vsel %vm3067, %v3044, %v2381
        %v3078 = vsel %vm3067, %v3045, %v2383
        %v3079 = vsel %vm3067, %v3046, %v2385
        %v3080 = vsel %vm3067, %v3047, %v2387
        %v3081 = vsel %vm3067, %v3048, %v2389
        %v3082 = vsel %vm3067, %v3049, %v2391
        %v3083 = vsel %vm3067, %v3050, %v2393
        %v3084 = vsel %vm3067, %v3051, %v2395
        %v3085 = vsel %vm3067, %v3052, %v2397
        %v3086 = vsel %vm3067, %v3053, %v2399
        %v3087 = vsel %vm3067, %v3054, %v2401
        %v3088 = vsel %vm3067, %v3055, %v2403
        %v3089 = vsel %vm3067, %v3056, %v2405
        %v3090 = vsel %vm3067, %v3057, %v2407
        %v3091 = vsel %vm3067, %v3058, %v2409
        %v3092 = vsel %vm3067, %v3059, %v2411
        %v3093 = vsel %vm3067, %v3060, %v2413
        %v3094 = vsel %vm3067, %v3061, %v2415
        %v3095 = vsel %vm3067, %v3062, %v2417
        %v3096 = vsel %vm3067, %v3063, %v2419
        %v3097 = vsel %vm3067, %v3064, %v2421
        %v3098 = vsel %vm3067, %v3065, %v2423
        %v3099 = vsel %vm3067, %v3066, %v2425
        %vm3100 = vcmask 326656
        %v3101 = vsel %vm3100, %v3068, %v2491
        %v3102 = vsel %vm3100, %v3069, %v2493
        %v3103 = vsel %vm3100, %v3070, %v2495
        %v3104 = vsel %vm3100, %v3071, %v2497
        %v3105 = vsel %vm3100, %v3072, %v2499
        %v3106 = vsel %vm3100, %v3073, %v2501
        %v3107 = vsel %vm3100, %v3074, %v2503
        %v3108 = vsel %vm3100, %v3075, %v2505
        %v3109 = vsel %vm3100, %v3076, %v2507
        %v3110 = vsel %vm3100, %v3077, %v2509
        %v3111 = vsel %vm3100, %v3078, %v2511
        %v3112 = vsel %vm3100, %v3079, %v2513
        %v3113 = vsel %vm3100, %v3080, %v2515
        %v3114 = vsel %vm3100, %v3081, %v2517
        %v3115 = vsel %vm3100, %v3082, %v2519
        %v3116 = vsel %vm3100, %v3083, %v2521
        %v3117 = vsel %vm3100, %v3084, %v2523
        %v3118 = vsel %vm3100, %v3085, %v2525
        %v3119 = vsel %vm3100, %v3086, %v2527
        %v3120 = vsel %vm3100, %v3087, %v2529
        %v3121 = vsel %vm3100, %v3088, %v2531
        %v3122 = vsel %vm3100, %v3089, %v2533
        %v3123 = vsel %vm3100, %v3090, %v2535
        %v3124 = vsel %vm3100, %v3091, %v2537
        %v3125 = vsel %vm3100, %v3092, %v2539
        %v3126 = vsel %vm3100, %v3093, %v2541
        %v3127 = vsel %vm3100, %v3094, %v2543
        %v3128 = vsel %vm3100, %v3095, %v2545
        %v3129 = vsel %vm3100, %v3096, %v2547
        %v3130 = vsel %vm3100, %v3097, %v2549
        %v3131 = vsel %vm3100, %v3098, %v2551
        %v3132 = vsel %vm3100, %v3099, %v2553
        %vm3133 = vcmask 392192
        %v3134 = vsel %vm3133, %v3101, %v2619
        %v3135 = vsel %vm3133, %v3102, %v2621
        %v3136 = vsel %vm3133, %v3103, %v2623
        %v3137 = vsel %vm3133, %v3104, %v2625
        %v3138 = vsel %vm3133, %v3105, %v2627
        %v3139 = vsel %vm3133, %v3106, %v2629
        %v3140 = vsel %vm3133, %v3107, %v2631
        %v3141 = vsel %vm3133, %v3108, %v2633
        %v3142 = vsel %vm3133, %v3109, %v2635
        %v3143 = vsel %vm3133, %v3110, %v2637
        %v3144 = vsel %vm3133, %v3111, %v2639
        %v3145 = vsel %vm3133, %v3112, %v2641
        %v3146 = vsel %vm3133, %v3113, %v2643
        %v3147 = vsel %vm3133, %v3114, %v2645
        %v3148 = vsel %vm3133, %v3115, %v2647
        %v3149 = vsel %vm3133, %v3116, %v2649
        %v3150 = vsel %vm3133, %v3117, %v2651
        %v3151 = vsel %vm3133, %v3118, %v2653
        %v3152 = vsel %vm3133, %v3119, %v2655
        %v3153 = vsel %vm3133, %v3120, %v2657
        %v3154 = vsel %vm3133, %v3121, %v2659
        %v3155 = vsel %vm3133, %v3122, %v2661
        %v3156 = vsel %vm3133, %v3123, %v2663
        %v3157 = vsel %vm3133, %v3124, %v2665
        %v3158 = vsel %vm3133, %v3125, %v2667
        %v3159 = vsel %vm3133, %v3126, %v2669
        %v3160 = vsel %vm3133, %v3127, %v2671
        %v3161 = vsel %vm3133, %v3128, %v2673
        %v3162 = vsel %vm3133, %v3129, %v2675
        %v3163 = vsel %vm3133, %v3130, %v2677
        %v3164 = vsel %vm3133, %v3131, %v2679
        %v3165 = vsel %vm3133, %v3132, %v2681
        %vm3166 = vcmask 457728
        %v3167 = vsel %vm3166, %v3134, %v2747
        %v3168 = vsel %vm3166, %v3135, %v2749
        %v3169 = vsel %vm3166, %v3136, %v2751
        %v3170 = vsel %vm3166, %v3137, %v2753
        %v3171 = vsel %vm3166, %v3138, %v2755
        %v3172 = vsel %vm3166, %v3139, %v2757
        %v3173 = vsel %vm3166, %v3140, %v2759
        %v3174 = vsel %vm3166, %v3141, %v2761
        %v3175 = vsel %vm3166, %v3142, %v2763
        %v3176 = vsel %vm3166, %v3143, %v2765
        %v3177 = vsel %vm3166, %v3144, %v2767
        %v3178 = vsel %vm3166, %v3145, %v2769
        %v3179 = vsel %vm3166, %v3146, %v2771
        %v3180 = vsel %vm3166, %v3147, %v2773
        %v3181 = vsel %vm3166, %v3148, %v2775
        %v3182 = vsel %vm3166, %v3149, %v2777
        %v3183 = vsel %vm3166, %v3150, %v2779
        %v3184 = vsel %vm3166, %v3151, %v2781
        %v3185 = vsel %vm3166, %v3152, %v2783
        %v3186 = vsel %vm3166, %v3153, %v2785
        %v3187 = vsel %vm3166, %v3154, %v2787
        %v3188 = vsel %vm3166, %v3155, %v2789
        %v3189 = vsel %vm3166, %v3156, %v2791
        %v3190 = vsel %vm3166, %v3157, %v2793
        %v3191 = vsel %vm3166, %v3158, %v2795
        %v3192 = vsel %vm3166, %v3159, %v2797
        %v3193 = vsel %vm3166, %v3160, %v2799
        %v3194 = vsel %vm3166, %v3161, %v2801
        %v3195 = vsel %vm3166, %v3162, %v2803
        %v3196 = vsel %vm3166, %v3163, %v2805
        %v3197 = vsel %vm3166, %v3164, %v2807
        %v3198 = vsel %vm3166, %v3165, %v2809
        %vm3199 = vcmask 523264
        %v3200 = vsel %vm3199, %v3167, %v2875
        %v3201 = vsel %vm3199, %v3168, %v2877
        %v3202 = vsel %vm3199, %v3169, %v2879
        %v3203 = vsel %vm3199, %v3170, %v2881
        %v3204 = vsel %vm3199, %v3171, %v2883
        %v3205 = vsel %vm3199, %v3172, %v2885
        %v3206 = vsel %vm3199, %v3173, %v2887
        %v3207 = vsel %vm3199, %v3174, %v2889
        %v3208 = vsel %vm3199, %v3175, %v2891
        %v3209 = vsel %vm3199, %v3176, %v2893
        %v3210 = vsel %vm3199, %v3177, %v2895
        %v3211 = vsel %vm3199, %v3178, %v2897
        %v3212 = vsel %vm3199, %v3179, %v2899
        %v3213 = vsel %vm3199, %v3180, %v2901
        %v3214 = vsel %vm3199, %v3181, %v2903
        %v3215 = vsel %vm3199, %v3182, %v2905
        %v3216 = vsel %vm3199, %v3183, %v2907
        %v3217 = vsel %vm3199, %v3184, %v2909
        %v3218 = vsel %vm3199, %v3185, %v2911
        %v3219 = vsel %vm3199, %v3186, %v2913
        %v3220 = vsel %vm3199, %v3187, %v2915
        %v3221 = vsel %vm3199, %v3188, %v2917
        %v3222 = vsel %vm3199, %v3189, %v2919
        %v3223 = vsel %vm3199, %v3190, %v2921
        %v3224 = vsel %vm3199, %v3191, %v2923
        %v3225 = vsel %vm3199, %v3192, %v2925
        %v3226 = vsel %vm3199, %v3193, %v2927
        %v3227 = vsel %vm3199, %v3194, %v2929
        %v3228 = vsel %vm3199, %v3195, %v2931
        %v3229 = vsel %vm3199, %v3196, %v2933
        %v3230 = vsel %vm3199, %v3197, %v2935
        %v3231 = vsel %vm3199, %v3198, %v2937
        %v3232 = vld [vmem:[%s4] sm:$0xff]
        %v3233 = vld [vmem:[%s4 + $0x8] sm:$0xff]
        %v3234 = vld [vmem:[%s4 + $0x10] sm:$0xff]
        %v3235 = vld [vmem:[%s4 + $0x18] sm:$0xff]
        %v3236 = vld [vmem:[%s4 + $0x20] sm:$0xff]
        %v3237 = vld [vmem:[%s4 + $0x28] sm:$0xff]
        %v3238 = vld [vmem:[%s4 + $0x30] sm:$0xff]
        %v3239 = vld [vmem:[%s4 + $0x38] sm:$0xff]
        %v3240 = vld [vmem:[%s4 + $0x40] sm:$0xff]
        %v3241 = vld [vmem:[%s5] sm:$0x1]
        %v3243 = vperm.slane %v3241, 0
        %vm3245 = vcmask 588800
        %v3247 = vsel %vm3245, %v3200, 0
        %v3250 = vsel %vm3245, %v3201, 0
        %v3253 = vsel %vm3245, %v3202, 0
        %v3256 = vsel %vm3245, %v3203, 0
        %v3259 = vsel %vm3245, %v3204, 0
        %v3262 = vsel %vm3245, %v3205, 0
        %v3265 = vsel %vm3245, %v3206, 0
        %v3268 = vsel %vm3245, %v3207, 0
        %v3271 = vsel %vm3245, %v3208, 0
        %v3274 = vsel %vm3245, %v3209, 0
        %v3277 = vsel %vm3245, %v3210, 0
        %v3280 = vsel %vm3245, %v3211, 0
        %v3283 = vsel %vm3245, %v3212, 0
        %v3286 = vsel %vm3245, %v3213, 0
        %v3289 = vsel %vm3245, %v3214, 0
        %v3292 = vsel %vm3245, %v3215, 0
        %v3295 = vsel %vm3245, %v3216, 0
        %v3298 = vsel %vm3245, %v3217, 0
        %v3301 = vsel %vm3245, %v3218, 0
        %v3304 = vsel %vm3245, %v3219, 0
        %v3307 = vsel %vm3245, %v3220, 0
        %v3310 = vsel %vm3245, %v3221, 0
        %v3313 = vsel %vm3245, %v3222, 0
        %v3316 = vsel %vm3245, %v3223, 0
        %v3319 = vsel %vm3245, %v3224, 0
        %v3322 = vsel %vm3245, %v3225, 0
        %v3325 = vsel %vm3245, %v3226, 0
        %v3328 = vsel %vm3245, %v3227, 0
        %v3331 = vsel %vm3245, %v3228, 0
        %v3334 = vsel %vm3245, %v3229, 0
        %v3337 = vsel %vm3245, %v3230, 0
        %v3340 = vsel %vm3245, %v3231, 0
        %3342 = vmatpush.msra.mxu0 0.0
        %3343 = vmatpush.msra.mxu0 0.0
        %3344 = vmatpush.msra.mxu0 0.0
        %3345 = vmatpush.msra.mxu0 0.0
        %3346 = vmatpush.msra.mxu0 0.0
        %3347 = vmatpush.msra.mxu0 0.0
        %3348 = vmatpush.msra.mxu0 0.0
        %3349 = vmatpush.msra.mxu0 %v3240
        %3350 = vmatpush.msra.mxu0 %v3239
        %3351 = vmatpush.msra.mxu0 %v3238
        %3352 = vmatpush.msra.mxu0 %v3237
        %3353 = vmatpush.msra.mxu0 %v3236
        %3354 = vmatpush.msra.mxu0 %v3235
        %3355 = vmatpush.msra.mxu0 %v3234
        %3356 = vmatpush.msra.mxu0 %v3233
        %3357 = vmatpush.msra.mxu0 %v3232
        %3358 = vmatmul.f32.gmra.mxu0 %v3247
        %v3359 = vpop.f32.mrf.mxu0
        %v3360 = vadd.f32 %v3243, %v3359
        %3361 = vmatmul.f32.gmra.mxu0 %v3250
        %v3362 = vpop.f32.mrf.mxu0
        %v3363 = vadd.f32 %v3243, %v3362
        %3364 = vmatmul.f32.gmra.mxu0 %v3253
        %v3365 = vpop.f32.mrf.mxu0
        %v3366 = vadd.f32 %v3243, %v3365
        %3367 = vmatmul.f32.gmra.mxu0 %v3256
        %v3368 = vpop.f32.mrf.mxu0
        %v3369 = vadd.f32 %v3243, %v3368
        %3370 = vmatmul.f32.gmra.mxu0 %v3259
        %v3371 = vpop.f32.mrf.mxu0
        %v3372 = vadd.f32 %v3243, %v3371
        %3373 = vmatmul.f32.gmra.mxu0 %v3262
        %v3374 = vpop.f32.mrf.mxu0
        %v3375 = vadd.f32 %v3243, %v3374
        %3376 = vmatmul.f32.gmra.mxu0 %v3265
        %v3377 = vpop.f32.mrf.mxu0
        %v3378 = vadd.f32 %v3243, %v3377
        %3379 = vmatmul.f32.gmra.mxu0 %v3268
        %v3380 = vpop.f32.mrf.mxu0
        %v3381 = vadd.f32 %v3243, %v3380
        %3382 = vmatmul.f32.gmra.mxu0 %v3271
        %v3383 = vpop.f32.mrf.mxu0
        %v3384 = vadd.f32 %v3243, %v3383
        %3385 = vmatmul.f32.gmra.mxu0 %v3274
        %v3386 = vpop.f32.mrf.mxu0
        %v3387 = vadd.f32 %v3243, %v3386
        %3388 = vmatmul.f32.gmra.mxu0 %v3277
        %v3389 = vpop.f32.mrf.mxu0
        %v3390 = vadd.f32 %v3243, %v3389
        %3391 = vmatmul.f32.gmra.mxu0 %v3280
        %v3392 = vpop.f32.mrf.mxu0
        %v3393 = vadd.f32 %v3243, %v3392
        %3394 = vmatmul.f32.gmra.mxu0 %v3283
        %v3395 = vpop.f32.mrf.mxu0
        %v3396 = vadd.f32 %v3243, %v3395
        %3397 = vmatmul.f32.gmra.mxu0 %v3286
        %v3398 = vpop.f32.mrf.mxu0
        %v3399 = vadd.f32 %v3243, %v3398
        %3400 = vmatmul.f32.gmra.mxu0 %v3289
        %v3401 = vpop.f32.mrf.mxu0
        %v3402 = vadd.f32 %v3243, %v3401
        %3403 = vmatmul.f32.gmra.mxu0 %v3292
        %v3404 = vpop.f32.mrf.mxu0
        %v3405 = vadd.f32 %v3243, %v3404
        %3406 = vmatmul.f32.gmra.mxu0 %v3295
        %v3407 = vpop.f32.mrf.mxu0
        %v3408 = vadd.f32 %v3243, %v3407
        %3409 = vmatmul.f32.gmra.mxu0 %v3298
        %v3410 = vpop.f32.mrf.mxu0
        %v3411 = vadd.f32 %v3243, %v3410
        %3412 = vmatmul.f32.gmra.mxu0 %v3301
        %v3413 = vpop.f32.mrf.mxu0
        %v3414 = vadd.f32 %v3243, %v3413
        %3415 = vmatmul.f32.gmra.mxu0 %v3304
        %v3416 = vpop.f32.mrf.mxu0
        %v3417 = vadd.f32 %v3243, %v3416
        %3418 = vmatmul.f32.gmra.mxu0 %v3307
        %v3419 = vpop.f32.mrf.mxu0
        %v3420 = vadd.f32 %v3243, %v3419
        %3421 = vmatmul.f32.gmra.mxu0 %v3310
        %v3422 = vpop.f32.mrf.mxu0
        %v3423 = vadd.f32 %v3243, %v3422
        %3424 = vmatmul.f32.gmra.mxu0 %v3313
        %v3425 = vpop.f32.mrf.mxu0
        %v3426 = vadd.f32 %v3243, %v3425
        %3427 = vmatmul.f32.gmra.mxu0 %v3316
        %v3428 = vpop.f32.mrf.mxu0
        %v3429 = vadd.f32 %v3243, %v3428
        %3430 = vmatmul.f32.gmra.mxu0 %v3319
        %v3431 = vpop.f32.mrf.mxu0
        %v3432 = vadd.f32 %v3243, %v3431
        %3433 = vmatmul.f32.gmra.mxu0 %v3322
        %v3434 = vpop.f32.mrf.mxu0
        %v3435 = vadd.f32 %v3243, %v3434
        %3436 = vmatmul.f32.gmra.mxu0 %v3325
        %v3437 = vpop.f32.mrf.mxu0
        %v3438 = vadd.f32 %v3243, %v3437
        %3439 = vmatmul.f32.gmra.mxu0 %v3328
        %v3440 = vpop.f32.mrf.mxu0
        %v3441 = vadd.f32 %v3243, %v3440
        %3442 = vmatmul.f32.gmra.mxu0 %v3331
        %v3443 = vpop.f32.mrf.mxu0
        %v3444 = vadd.f32 %v3243, %v3443
        %3445 = vmatmul.f32.gmra.mxu0 %v3334
        %v3446 = vpop.f32.mrf.mxu0
        %v3447 = vadd.f32 %v3243, %v3446
        %3448 = vmatmul.f32.gmra.mxu0 %v3337
        %v3449 = vpop.f32.mrf.mxu0
        %v3450 = vadd.f32 %v3243, %v3449
        %3451 = vmatmul.f32.gmra.mxu0 %v3340
        %v3452 = vpop.f32.mrf.mxu0
        %v3453 = vadd.f32 %v3243, %v3452
        %3454 = vdwg.mxu0
        %v3455 = vsel %vm513, %v3360, 0.0
        %v3456 = vsel %vm513, %v3363, 0.0
        %v3457 = vadd.f32 %v3455, %v3456
        %v3458 = vsel %vm513, %v3366, 0.0
        %v3459 = vadd.f32 %v3457, %v3458
        %v3460 = vsel %vm513, %v3369, 0.0
        %v3461 = vadd.f32 %v3459, %v3460
        %v3462 = vsel %vm513, %v3372, 0.0
        %v3463 = vadd.f32 %v3461, %v3462
        %v3464 = vsel %vm513, %v3375, 0.0
        %v3465 = vadd.f32 %v3463, %v3464
        %v3466 = vsel %vm513, %v3378, 0.0
        %v3467 = vadd.f32 %v3465, %v3466
        %v3468 = vsel %vm513, %v3381, 0.0
        %v3469 = vadd.f32 %v3467, %v3468
        %v3470 = vsel %vm513, %v3384, 0.0
        %v3471 = vadd.f32 %v3469, %v3470
        %v3472 = vsel %vm513, %v3387, 0.0
        %v3473 = vadd.f32 %v3471, %v3472
        %v3474 = vsel %vm513, %v3390, 0.0
        %v3475 = vadd.f32 %v3473, %v3474
        %v3476 = vsel %vm513, %v3393, 0.0
        %v3477 = vadd.f32 %v3475, %v3476
        %v3478 = vsel %vm513, %v3396, 0.0
        %v3479 = vadd.f32 %v3477, %v3478
        %v3480 = vsel %vm513, %v3399, 0.0
        %v3481 = vadd.f32 %v3479, %v3480
        %v3482 = vsel %vm513, %v3402, 0.0
        %v3483 = vadd.f32 %v3481, %v3482
        %v3484 = vsel %vm513, %v3405, 0.0
        %v3485 = vadd.f32 %v3483, %v3484
        %v3486 = vsel %vm513, %v3408, 0.0
        %v3487 = vadd.f32 %v3485, %v3486
        %v3488 = vsel %vm513, %v3411, 0.0
        %v3489 = vadd.f32 %v3487, %v3488
        %v3490 = vsel %vm513, %v3414, 0.0
        %v3491 = vadd.f32 %v3489, %v3490
        %v3492 = vsel %vm513, %v3417, 0.0
        %v3493 = vadd.f32 %v3491, %v3492
        %v3494 = vsel %vm513, %v3420, 0.0
        %v3495 = vadd.f32 %v3493, %v3494
        %v3496 = vsel %vm513, %v3423, 0.0
        %v3497 = vadd.f32 %v3495, %v3496
        %v3498 = vsel %vm513, %v3426, 0.0
        %v3499 = vadd.f32 %v3497, %v3498
        %v3500 = vsel %vm513, %v3429, 0.0
        %v3501 = vadd.f32 %v3499, %v3500
        %v3502 = vsel %vm513, %v3432, 0.0
        %v3503 = vadd.f32 %v3501, %v3502
        %v3504 = vsel %vm513, %v3435, 0.0
        %v3505 = vadd.f32 %v3503, %v3504
        %v3506 = vsel %vm513, %v3438, 0.0
        %v3507 = vadd.f32 %v3505, %v3506
        %v3508 = vsel %vm513, %v3441, 0.0
        %v3509 = vadd.f32 %v3507, %v3508
        %v3510 = vsel %vm513, %v3444, 0.0
        %v3511 = vadd.f32 %v3509, %v3510
        %v3512 = vsel %vm513, %v3447, 0.0
        %v3513 = vadd.f32 %v3511, %v3512
        %v3514 = vsel %vm513, %v3450, 0.0
        %v3515 = vadd.f32 %v3513, %v3514
        %v3516 = vsel %vm513, %v3453, 0.0
        %v3517 = vadd.f32 %v3515, %v3516
        %v3518 = vrot.slane %v3517, 4
        %v3519 = vadd.f32 %v3517, %v3518
        %v3520 = vrot.slane %v3519, 2
        %v3521 = vadd.f32 %v3519, %v3520
        %v3522 = vrot.slane %v3521, 1
        %v3523 = vadd.f32 %v3521, %v3522
        %v3524 = vld [vmem:[%s6] sm:$0xff]
        %v3525 = vld [vmem:[%s6 + $0x8] sm:$0xff]
        %v3527 = vsel %vm513, %v3523, 0
        %3529 = vmatpush.msra.mxu0 0.0
        %3530 = vmatpush.msra.mxu0 0.0
        %3531 = vmatpush.msra.mxu0 0.0
        %3532 = vmatpush.msra.mxu0 0.0
        %3533 = vmatpush.msra.mxu0 0.0
        %3534 = vmatpush.msra.mxu0 0.0
        %3535 = vmatpush.msra.mxu0 0.0
        %3536 = vmatpush.msra.mxu0 0.0
        %3537 = vmatpush.msra.mxu0 0.0
        %3538 = vmatpush.msra.mxu0 0.0
        %3539 = vmatpush.msra.mxu0 0.0
        %3540 = vmatpush.msra.mxu0 0.0
        %3541 = vmatpush.msra.mxu0 0.0
        %3542 = vmatpush.msra.mxu0 0.0
        %3543 = vmatpush.msra.mxu0 %v3525
        %3544 = vmatpush.msra.mxu0 %v3524
        %3545 = vmatmul.f32.gmra.mxu0 %v3527
        %v3546 = vpop.f32.mrf.mxu0
        %v3547 = vadd.f32 0.0, %v3546
        %3548 = vdwg.mxu0
        %v3549 = vperm.slane %v3547, 0
        %v3550 = vsub.f32 %v3360, %v3549
        %v3551 = vsub.f32 %v3363, %v3549
        %v3552 = vsub.f32 %v3366, %v3549
        %v3553 = vsub.f32 %v3369, %v3549
        %v3554 = vsub.f32 %v3372, %v3549
        %v3555 = vsub.f32 %v3375, %v3549
        %v3556 = vsub.f32 %v3378, %v3549
        %v3557 = vsub.f32 %v3381, %v3549
        %v3558 = vsub.f32 %v3384, %v3549
        %v3559 = vsub.f32 %v3387, %v3549
        %v3560 = vsub.f32 %v3390, %v3549
        %v3561 = vsub.f32 %v3393, %v3549
        %v3562 = vsub.f32 %v3396, %v3549
        %v3563 = vsub.f32 %v3399, %v3549
        %v3564 = vsub.f32 %v3402, %v3549
        %v3565 = vsub.f32 %v3405, %v3549
        %v3566 = vsub.f32 %v3408, %v3549
        %v3567 = vsub.f32 %v3411, %v3549
        %v3568 = vsub.f32 %v3414, %v3549
        %v3569 = vsub.f32 %v3417, %v3549
        %v3570 = vsub.f32 %v3420, %v3549
        %v3571 = vsub.f32 %v3423, %v3549
        %v3572 = vsub.f32 %v3426, %v3549
        %v3573 = vsub.f32 %v3429, %v3549
        %v3574 = vsub.f32 %v3432, %v3549
        %v3575 = vsub.f32 %v3435, %v3549
        %v3576 = vsub.f32 %v3438, %v3549
        %v3577 = vsub.f32 %v3441, %v3549
        %v3578 = vsub.f32 %v3444, %v3549
        %v3579 = vsub.f32 %v3447, %v3549
        %v3580 = vsub.f32 %v3450, %v3549
        %v3581 = vsub.f32 %v3453, %v3549
        %v3582 = vmul.f32 %v3550, %v3550
        %v3583 = vmul.f32 %v3551, %v3551
        %v3584 = vmul.f32 %v3552, %v3552
        %v3585 = vmul.f32 %v3553, %v3553
        %v3586 = vmul.f32 %v3554, %v3554
        %v3587 = vmul.f32 %v3555, %v3555
        %v3588 = vmul.f32 %v3556, %v3556
        %v3589 = vmul.f32 %v3557, %v3557
        %v3590 = vmul.f32 %v3558, %v3558
        %v3591 = vmul.f32 %v3559, %v3559
        %v3592 = vmul.f32 %v3560, %v3560
        %v3593 = vmul.f32 %v3561, %v3561
        %v3594 = vmul.f32 %v3562, %v3562
        %v3595 = vmul.f32 %v3563, %v3563
        %v3596 = vmul.f32 %v3564, %v3564
        %v3597 = vmul.f32 %v3565, %v3565
        %v3598 = vmul.f32 %v3566, %v3566
        %v3599 = vmul.f32 %v3567, %v3567
        %v3600 = vmul.f32 %v3568, %v3568
        %v3601 = vmul.f32 %v3569, %v3569
        %v3602 = vmul.f32 %v3570, %v3570
        %v3603 = vmul.f32 %v3571, %v3571
        %v3604 = vmul.f32 %v3572, %v3572
        %v3605 = vmul.f32 %v3573, %v3573
        %v3606 = vmul.f32 %v3574, %v3574
        %v3607 = vmul.f32 %v3575, %v3575
        %v3608 = vmul.f32 %v3576, %v3576
        %v3609 = vmul.f32 %v3577, %v3577
        %v3610 = vmul.f32 %v3578, %v3578
        %v3611 = vmul.f32 %v3579, %v3579
        %v3612 = vmul.f32 %v3580, %v3580
        %v3613 = vmul.f32 %v3581, %v3581
        %v3614 = vsel %vm513, %v3582, 0.0
        %v3615 = vsel %vm513, %v3583, 0.0
        %v3616 = vadd.f32 %v3614, %v3615
        %v3617 = vsel %vm513, %v3584, 0.0
        %v3618 = vadd.f32 %v3616, %v3617
        %v3619 = vsel %vm513, %v3585, 0.0
        %v3620 = vadd.f32 %v3618, %v3619
        %v3621 = vsel %vm513, %v3586, 0.0
        %v3622 = vadd.f32 %v3620, %v3621
        %v3623 = vsel %vm513, %v3587, 0.0
        %v3624 = vadd.f32 %v3622, %v3623
        %v3625 = vsel %vm513, %v3588, 0.0
        %v3626 = vadd.f32 %v3624, %v3625
        %v3627 = vsel %vm513, %v3589, 0.0
        %v3628 = vadd.f32 %v3626, %v3627
        %v3629 = vsel %vm513, %v3590, 0.0
        %v3630 = vadd.f32 %v3628, %v3629
        %v3631 = vsel %vm513, %v3591, 0.0
        %v3632 = vadd.f32 %v3630, %v3631
        %v3633 = vsel %vm513, %v3592, 0.0
        %v3634 = vadd.f32 %v3632, %v3633
        %v3635 = vsel %vm513, %v3593, 0.0
        %v3636 = vadd.f32 %v3634, %v3635
        %v3637 = vsel %vm513, %v3594, 0.0
        %v3638 = vadd.f32 %v3636, %v3637
        %v3639 = vsel %vm513, %v3595, 0.0
        %v3640 = vadd.f32 %v3638, %v3639
        %v3641 = vsel %vm513, %v3596, 0.0
        %v3642 = vadd.f32 %v3640, %v3641
        %v3643 = vsel %vm513, %v3597, 0.0
        %v3644 = vadd.f32 %v3642, %v3643
        %v3645 = vsel %vm513, %v3598, 0.0
        %v3646 = vadd.f32 %v3644, %v3645
        %v3647 = vsel %vm513, %v3599, 0.0
        %v3648 = vadd.f32 %v3646, %v3647
        %v3649 = vsel %vm513, %v3600, 0.0
        %v3650 = vadd.f32 %v3648, %v3649
        %v3651 = vsel %vm513, %v3601, 0.0
        %v3652 = vadd.f32 %v3650, %v3651
        %v3653 = vsel %vm513, %v3602, 0.0
        %v3654 = vadd.f32 %v3652, %v3653
        %v3655 = vsel %vm513, %v3603, 0.0
        %v3656 = vadd.f32 %v3654, %v3655
        %v3657 = vsel %vm513, %v3604, 0.0
        %v3658 = vadd.f32 %v3656, %v3657
        %v3659 = vsel %vm513, %v3605, 0.0
        %v3660 = vadd.f32 %v3658, %v3659
        %v3661 = vsel %vm513, %v3606, 0.0
        %v3662 = vadd.f32 %v3660, %v3661
        %v3663 = vsel %vm513, %v3607, 0.0
        %v3664 = vadd.f32 %v3662, %v3663
        %v3665 = vsel %vm513, %v3608, 0.0
        %v3666 = vadd.f32 %v3664, %v3665
        %v3667 = vsel %vm513, %v3609, 0.0
        %v3668 = vadd.f32 %v3666, %v3667
        %v3669 = vsel %vm513, %v3610, 0.0
        %v3670 = vadd.f32 %v3668, %v3669
        %v3671 = vsel %vm513, %v3611, 0.0
        %v3672 = vadd.f32 %v3670, %v3671
        %v3673 = vsel %vm513, %v3612, 0.0
        %v3674 = vadd.f32 %v3672, %v3673
        %v3675 = vsel %vm513, %v3613, 0.0
        %v3676 = vadd.f32 %v3674, %v3675
        %v3677 = vrot.slane %v3676, 4
        %v3678 = vadd.f32 %v3676, %v3677
        %v3679 = vrot.slane %v3678, 2
        %v3680 = vadd.f32 %v3678, %v3679
        %v3681 = vrot.slane %v3680, 1
        %v3682 = vadd.f32 %v3680, %v3681
        %v3684 = vsel %vm513, %v3682, 0
        %3686 = vmatpush.msra.mxu0 0.0
        %3687 = vmatpush.msra.mxu0 0.0
        %3688 = vmatpush.msra.mxu0 0.0
        %3689 = vmatpush.msra.mxu0 0.0
        %3690 = vmatpush.msra.mxu0 0.0
        %3691 = vmatpush.msra.mxu0 0.0
        %3692 = vmatpush.msra.mxu0 0.0
        %3693 = vmatpush.msra.mxu0 0.0
        %3694 = vmatpush.msra.mxu0 0.0
        %3695 = vmatpush.msra.mxu0 0.0
        %3696 = vmatpush.msra.mxu0 0.0
        %3697 = vmatpush.msra.mxu0 0.0
        %3698 = vmatpush.msra.mxu0 0.0
        %3699 = vmatpush.msra.mxu0 0.0
        %3700 = vmatpush.msra.mxu0 %v3525
        %3701 = vmatpush.msra.mxu0 %v3524
        %3702 = vmatmul.f32.gmra.mxu0 %v3684
        %v3703 = vpop.f32.mrf.mxu0
        %v3704 = vadd.f32 1e-06, %v3703
        %3705 = vdwg.mxu0
        %v3706 = vrsqrt.pop %v3704
        %v3707 = vmul.f32 %v3706, %v3704
        %v3708 = vmul.f32 %v3707, %v3706
        %v3709 = vmul.f32 0.5, %v3708
        %v3710 = vsub.f32 1.5, %v3709
        %v3711 = vmul.f32 %v3706, %v3710
        %vm3712 = vweird.f32 %v3704
        %vm3713 = vweird.f32 %v3706
        %vm3714 = vmor %vm3712, %vm3713
        %v3715 = vsel %vm3714, %v3706, %v3711
        %v3716 = vperm.slane %v3715, 0
        %v3717 = vmul.f32 %v3550, %v3716
        %v3718 = vmul.f32 %v3551, %v3716
        %v3719 = vmul.f32 %v3552, %v3716
        %v3720 = vmul.f32 %v3553, %v3716
        %v3721 = vmul.f32 %v3554, %v3716
        %v3722 = vmul.f32 %v3555, %v3716
        %v3723 = vmul.f32 %v3556, %v3716
        %v3724 = vmul.f32 %v3557, %v3716
        %v3725 = vmul.f32 %v3558, %v3716
        %v3726 = vmul.f32 %v3559, %v3716
        %v3727 = vmul.f32 %v3560, %v3716
        %v3728 = vmul.f32 %v3561, %v3716
        %v3729 = vmul.f32 %v3562, %v3716
        %v3730 = vmul.f32 %v3563, %v3716
        %v3731 = vmul.f32 %v3564, %v3716
        %v3732 = vmul.f32 %v3565, %v3716
        %v3733 = vmul.f32 %v3566, %v3716
        %v3734 = vmul.f32 %v3567, %v3716
        %v3735 = vmul.f32 %v3568, %v3716
        %v3736 = vmul.f32 %v3569, %v3716
        %v3737 = vmul.f32 %v3570, %v3716
        %v3738 = vmul.f32 %v3571, %v3716
        %v3739 = vmul.f32 %v3572, %v3716
        %v3740 = vmul.f32 %v3573, %v3716
        %v3741 = vmul.f32 %v3574, %v3716
        %v3742 = vmul.f32 %v3575, %v3716
        %v3743 = vmul.f32 %v3576, %v3716
        %v3744 = vmul.f32 %v3577, %v3716
        %v3745 = vmul.f32 %v3578, %v3716
        %v3746 = vmul.f32 %v3579, %v3716
        %v3747 = vmul.f32 %v3580, %v3716
        %v3748 = vmul.f32 %v3581, %v3716
        %v3749 = vld [vmem:[%s7] sm:$0x1]
        %v3751 = vperm.slane %v3749, 0
        %v3753 = vmul.f32 %v3717, %v3751
        %v3754 = vmul.f32 %v3718, %v3751
        %v3755 = vmul.f32 %v3719, %v3751
        %v3756 = vmul.f32 %v3720, %v3751
        %v3757 = vmul.f32 %v3721, %v3751
        %v3758 = vmul.f32 %v3722, %v3751
        %v3759 = vmul.f32 %v3723, %v3751
        %v3760 = vmul.f32 %v3724, %v3751
        %v3761 = vmul.f32 %v3725, %v3751
        %v3762 = vmul.f32 %v3726, %v3751
        %v3763 = vmul.f32 %v3727, %v3751
        %v3764 = vmul.f32 %v3728, %v3751
        %v3765 = vmul.f32 %v3729, %v3751
        %v3766 = vmul.f32 %v3730, %v3751
        %v3767 = vmul.f32 %v3731, %v3751
        %v3768 = vmul.f32 %v3732, %v3751
        %v3769 = vmul.f32 %v3733, %v3751
        %v3770 = vmul.f32 %v3734, %v3751
        %v3771 = vmul.f32 %v3735, %v3751
        %v3772 = vmul.f32 %v3736, %v3751
        %v3773 = vmul.f32 %v3737, %v3751
        %v3774 = vmul.f32 %v3738, %v3751
        %v3775 = vmul.f32 %v3739, %v3751
        %v3776 = vmul.f32 %v3740, %v3751
        %v3777 = vmul.f32 %v3741, %v3751
        %v3778 = vmul.f32 %v3742, %v3751
        %v3779 = vmul.f32 %v3743, %v3751
        %v3780 = vmul.f32 %v3744, %v3751
        %v3781 = vmul.f32 %v3745, %v3751
        %v3782 = vmul.f32 %v3746, %v3751
        %v3783 = vmul.f32 %v3747, %v3751
        %v3784 = vmul.f32 %v3748, %v3751
        %v3785 = vld [vmem:[%s8] sm:$0x1]
        %v3787 = vperm.slane %v3785, 0
        %v3789 = vadd.f32 %v3753, %v3787
        %v3790 = vadd.f32 %v3754, %v3787
        %v3791 = vadd.f32 %v3755, %v3787
        %v3792 = vadd.f32 %v3756, %v3787
        %v3793 = vadd.f32 %v3757, %v3787
        %v3794 = vadd.f32 %v3758, %v3787
        %v3795 = vadd.f32 %v3759, %v3787
        %v3796 = vadd.f32 %v3760, %v3787
        %v3797 = vadd.f32 %v3761, %v3787
        %v3798 = vadd.f32 %v3762, %v3787
        %v3799 = vadd.f32 %v3763, %v3787
        %v3800 = vadd.f32 %v3764, %v3787
        %v3801 = vadd.f32 %v3765, %v3787
        %v3802 = vadd.f32 %v3766, %v3787
        %v3803 = vadd.f32 %v3767, %v3787
        %v3804 = vadd.f32 %v3768, %v3787
        %v3805 = vadd.f32 %v3769, %v3787
        %v3806 = vadd.f32 %v3770, %v3787
        %v3807 = vadd.f32 %v3771, %v3787
        %v3808 = vadd.f32 %v3772, %v3787
        %v3809 = vadd.f32 %v3773, %v3787
        %v3810 = vadd.f32 %v3774, %v3787
        %v3811 = vadd.f32 %v3775, %v3787
        %v3812 = vadd.f32 %v3776, %v3787
        %v3813 = vadd.f32 %v3777, %v3787
        %v3814 = vadd.f32 %v3778, %v3787
        %v3815 = vadd.f32 %v3779, %v3787
        %v3816 = vadd.f32 %v3780, %v3787
        %v3817 = vadd.f32 %v3781, %v3787
        %v3818 = vadd.f32 %v3782, %v3787
        %v3819 = vadd.f32 %v3783, %v3787
        %v3820 = vadd.f32 %v3784, %v3787
        %v3821 = vxor.u32 %v3789, 2147483648
        %v3822 = vxor.u32 %v3790, 2147483648
        %v3823 = vxor.u32 %v3791, 2147483648
        %v3824 = vxor.u32 %v3792, 2147483648
        %v3825 = vxor.u32 %v3793, 2147483648
        %v3826 = vxor.u32 %v3794, 2147483648
        %v3827 = vxor.u32 %v3795, 2147483648
        %v3828 = vxor.u32 %v3796, 2147483648
        %v3829 = vxor.u32 %v3797, 2147483648
        %v3830 = vxor.u32 %v3798, 2147483648
        %v3831 = vxor.u32 %v3799, 2147483648
        %v3832 = vxor.u32 %v3800, 2147483648
        %v3833 = vxor.u32 %v3801, 2147483648
        %v3834 = vxor.u32 %v3802, 2147483648
        %v3835 = vxor.u32 %v3803, 2147483648
        %v3836 = vxor.u32 %v3804, 2147483648
        %v3837 = vxor.u32 %v3805, 2147483648
        %v3838 = vxor.u32 %v3806, 2147483648
        %v3839 = vxor.u32 %v3807, 2147483648
        %v3840 = vxor.u32 %v3808, 2147483648
        %v3841 = vxor.u32 %v3809, 2147483648
        %v3842 = vxor.u32 %v3810, 2147483648
        %v3843 = vxor.u32 %v3811, 2147483648
        %v3844 = vxor.u32 %v3812, 2147483648
        %v3845 = vxor.u32 %v3813, 2147483648
        %v3846 = vxor.u32 %v3814, 2147483648
        %v3847 = vxor.u32 %v3815, 2147483648
        %v3848 = vxor.u32 %v3816, 2147483648
        %v3849 = vxor.u32 %v3817, 2147483648
        %v3850 = vxor.u32 %v3818, 2147483648
        %v3851 = vxor.u32 %v3819, 2147483648
        %v3852 = vxor.u32 %v3820, 2147483648
        %v3853 = vmul.f32 %v3821, 1.442695
        %v3854 = vpow.pop %v3853
        %v3855 = vmul.f32 %v3822, 1.442695
        %v3856 = vpow.pop %v3855
        %v3857 = vmul.f32 %v3823, 1.442695
        %v3858 = vpow.pop %v3857
        %v3859 = vmul.f32 %v3824, 1.442695
        %v3860 = vpow.pop %v3859
        %v3861 = vmul.f32 %v3825, 1.442695
        %v3862 = vpow.pop %v3861
        %v3863 = vmul.f32 %v3826, 1.442695
        %v3864 = vpow.pop %v3863
        %v3865 = vmul.f32 %v3827, 1.442695
        %v3866 = vpow.pop %v3865
        %v3867 = vmul.f32 %v3828, 1.442695
        %v3868 = vpow.pop %v3867
        %v3869 = vmul.f32 %v3829, 1.442695
        %v3870 = vpow.pop %v3869
        %v3871 = vmul.f32 %v3830, 1.442695
        %v3872 = vpow.pop %v3871
        %v3873 = vmul.f32 %v3831, 1.442695
        %v3874 = vpow.pop %v3873
        %v3875 = vmul.f32 %v3832, 1.442695
        %v3876 = vpow.pop %v3875
        %v3877 = vmul.f32 %v3833, 1.442695
        %v3878 = vpow.pop %v3877
        %v3879 = vmul.f32 %v3834, 1.442695
        %v3880 = vpow.pop %v3879
        %v3881 = vmul.f32 %v3835, 1.442695
        %v3882 = vpow.pop %v3881
        %v3883 = vmul.f32 %v3836, 1.442695
        %v3884 = vpow.pop %v3883
        %v3885 = vmul.f32 %v3837, 1.442695
        %v3886 = vpow.pop %v3885
        %v3887 = vmul.f32 %v3838, 1.442695
        %v3888 = vpow.pop %v3887
        %v3889 = vmul.f32 %v3839, 1.442695
        %v3890 = vpow.pop %v3889
        %v3891 = vmul.f32 %v3840, 1.442695
        %v3892 = vpow.pop %v3891
        %v3893 = vmul.f32 %v3841, 1.442695
        %v3894 = vpow.pop %v3893
        %v3895 = vmul.f32 %v3842, 1.442695
        %v3896 = vpow.pop %v3895
        %v3897 = vmul.f32 %v3843, 1.442695
        %v3898 = vpow.pop %v3897
        %v3899 = vmul.f32 %v3844, 1.442695
        %v3900 = vpow.pop %v3899
        %v3901 = vmul.f32 %v3845, 1.442695
        %v3902 = vpow.pop %v3901
        %v3903 = vmul.f32 %v3846, 1.442695
        %v3904 = vpow.pop %v3903
        %v3905 = vmul.f32 %v3847, 1.442695
        %v3906 = vpow.pop %v3905
        %v3907 = vmul.f32 %v3848, 1.442695
        %v3908 = vpow.pop %v3907
        %v3909 = vmul.f32 %v3849, 1.442695
        %v3910 = vpow.pop %v3909
        %v3911 = vmul.f32 %v3850, 1.442695
        %v3912 = vpow.pop %v3911
        %v3913 = vmul.f32 %v3851, 1.442695
        %v3914 = vpow.pop %v3913
        %v3915 = vmul.f32 %v3852, 1.442695
        %v3916 = vpow.pop %v3915
        %v3917 = vadd.f32 %v3854, 1.0
        %v3918 = vadd.f32 %v3856, 1.0
        %v3919 = vadd.f32 %v3858, 1.0
        %v3920 = vadd.f32 %v3860, 1.0
        %v3921 = vadd.f32 %v3862, 1.0
        %v3922 = vadd.f32 %v3864, 1.0
        %v3923 = vadd.f32 %v3866, 1.0
        %v3924 = vadd.f32 %v3868, 1.0
        %v3925 = vadd.f32 %v3870, 1.0
        %v3926 = vadd.f32 %v3872, 1.0
        %v3927 = vadd.f32 %v3874, 1.0
        %v3928 = vadd.f32 %v3876, 1.0
        %v3929 = vadd.f32 %v3878, 1.0
        %v3930 = vadd.f32 %v3880, 1.0
        %v3931 = vadd.f32 %v3882, 1.0
        %v3932 = vadd.f32 %v3884, 1.0
        %v3933 = vadd.f32 %v3886, 1.0
        %v3934 = vadd.f32 %v3888, 1.0
        %v3935 = vadd.f32 %v3890, 1.0
        %v3936 = vadd.f32 %v3892, 1.0
        %v3937 = vadd.f32 %v3894, 1.0
        %v3938 = vadd.f32 %v3896, 1.0
        %v3939 = vadd.f32 %v3898, 1.0
        %v3940 = vadd.f32 %v3900, 1.0
        %v3941 = vadd.f32 %v3902, 1.0
        %v3942 = vadd.f32 %v3904, 1.0
        %v3943 = vadd.f32 %v3906, 1.0
        %v3944 = vadd.f32 %v3908, 1.0
        %v3945 = vadd.f32 %v3910, 1.0
        %v3946 = vadd.f32 %v3912, 1.0
        %v3947 = vadd.f32 %v3914, 1.0
        %v3948 = vadd.f32 %v3916, 1.0
        %v3949 = vrcp.pop %v3917
        %v3950 = vmul.f32 %v3917, %v3949
        %v3951 = vsub.f32 1.0, %v3950
        %v3952 = vmul.f32 %v3949, %v3951
        %v3953 = vadd.f32 %v3949, %v3952
        %vm3954 = vweird.f32 %v3917
        %vm3955 = vweird.f32 %v3949
        %vm3956 = vmor %vm3954, %vm3955
        %v3957 = vsel %vm3956, %v3949, %v3953
        %v3958 = vand.u32 2147483647, %v3917
        %vm3959 = vcmp.eq.f32.partialorder %v3958, 8.507059e+37
        %v3960 = vand.u32 %v3917, 2147483648
        %v3961 = vor.u32 1.1754944e-38, %v3960
        %v3962 = vsel %vm3959, %v3961, %v3957
        %v3963 = vmul.f32 1.0, %v3962
        %v3964 = vrcp.pop %v3918
        %v3965 = vmul.f32 %v3918, %v3964
        %v3966 = vsub.f32 1.0, %v3965
        %v3967 = vmul.f32 %v3964, %v3966
        %v3968 = vadd.f32 %v3964, %v3967
        %vm3969 = vweird.f32 %v3918
        %vm3970 = vweird.f32 %v3964
        %vm3971 = vmor %vm3969, %vm3970
        %v3972 = vsel %vm3971, %v3964, %v3968
        %v3973 = vand.u32 2147483647, %v3918
        %vm3974 = vcmp.eq.f32.partialorder %v3973, 8.507059e+37
        %v3975 = vand.u32 %v3918, 2147483648
        %v3976 = vor.u32 1.1754944e-38, %v3975
        %v3977 = vsel %vm3974, %v3976, %v3972
        %v3978 = vmul.f32 1.0, %v3977
        %v3979 = vrcp.pop %v3919
        %v3980 = vmul.f32 %v3919, %v3979
        %v3981 = vsub.f32 1.0, %v3980
        %v3982 = vmul.f32 %v3979, %v3981
        %v3983 = vadd.f32 %v3979, %v3982
        %vm3984 = vweird.f32 %v3919
        %vm3985 = vweird.f32 %v3979
        %vm3986 = vmor %vm3984, %vm3985
        %v3987 = vsel %vm3986, %v3979, %v3983
        %v3988 = vand.u32 2147483647, %v3919
        %vm3989 = vcmp.eq.f32.partialorder %v3988, 8.507059e+37
        %v3990 = vand.u32 %v3919, 2147483648
        %v3991 = vor.u32 1.1754944e-38, %v3990
        %v3992 = vsel %vm3989, %v3991, %v3987
        %v3993 = vmul.f32 1.0, %v3992
        %v3994 = vrcp.pop %v3920
        %v3995 = vmul.f32 %v3920, %v3994
        %v3996 = vsub.f32 1.0, %v3995
        %v3997 = vmul.f32 %v3994, %v3996
        %v3998 = vadd.f32 %v3994, %v3997
        %vm3999 = vweird.f32 %v3920
        %vm4000 = vweird.f32 %v3994
        %vm4001 = vmor %vm3999, %vm4000
        %v4002 = vsel %vm4001, %v3994, %v3998
        %v4003 = vand.u32 2147483647, %v3920
        %vm4004 = vcmp.eq.f32.partialorder %v4003, 8.507059e+37
        %v4005 = vand.u32 %v3920, 2147483648
        %v4006 = vor.u32 1.1754944e-38, %v4005
        %v4007 = vsel %vm4004, %v4006, %v4002
        %v4008 = vmul.f32 1.0, %v4007
        %v4009 = vrcp.pop %v3921
        %v4010 = vmul.f32 %v3921, %v4009
        %v4011 = vsub.f32 1.0, %v4010
        %v4012 = vmul.f32 %v4009, %v4011
        %v4013 = vadd.f32 %v4009, %v4012
        %vm4014 = vweird.f32 %v3921
        %vm4015 = vweird.f32 %v4009
        %vm4016 = vmor %vm4014, %vm4015
        %v4017 = vsel %vm4016, %v4009, %v4013
        %v4018 = vand.u32 2147483647, %v3921
        %vm4019 = vcmp.eq.f32.partialorder %v4018, 8.507059e+37
        %v4020 = vand.u32 %v3921, 2147483648
        %v4021 = vor.u32 1.1754944e-38, %v4020
        %v4022 = vsel %vm4019, %v4021, %v4017
        %v4023 = vmul.f32 1.0, %v4022
        %v4024 = vrcp.pop %v3922
        %v4025 = vmul.f32 %v3922, %v4024
        %v4026 = vsub.f32 1.0, %v4025
        %v4027 = vmul.f32 %v4024, %v4026
        %v4028 = vadd.f32 %v4024, %v4027
        %vm4029 = vweird.f32 %v3922
        %vm4030 = vweird.f32 %v4024
        %vm4031 = vmor %vm4029, %vm4030
        %v4032 = vsel %vm4031, %v4024, %v4028
        %v4033 = vand.u32 2147483647, %v3922
        %vm4034 = vcmp.eq.f32.partialorder %v4033, 8.507059e+37
        %v4035 = vand.u32 %v3922, 2147483648
        %v4036 = vor.u32 1.1754944e-38, %v4035
        %v4037 = vsel %vm4034, %v4036, %v4032
        %v4038 = vmul.f32 1.0, %v4037
        %v4039 = vrcp.pop %v3923
        %v4040 = vmul.f32 %v3923, %v4039
        %v4041 = vsub.f32 1.0, %v4040
        %v4042 = vmul.f32 %v4039, %v4041
        %v4043 = vadd.f32 %v4039, %v4042
        %vm4044 = vweird.f32 %v3923
        %vm4045 = vweird.f32 %v4039
        %vm4046 = vmor %vm4044, %vm4045
        %v4047 = vsel %vm4046, %v4039, %v4043
        %v4048 = vand.u32 2147483647, %v3923
        %vm4049 = vcmp.eq.f32.partialorder %v4048, 8.507059e+37
        %v4050 = vand.u32 %v3923, 2147483648
        %v4051 = vor.u32 1.1754944e-38, %v4050
        %v4052 = vsel %vm4049, %v4051, %v4047
        %v4053 = vmul.f32 1.0, %v4052
        %v4054 = vrcp.pop %v3924
        %v4055 = vmul.f32 %v3924, %v4054
        %v4056 = vsub.f32 1.0, %v4055
        %v4057 = vmul.f32 %v4054, %v4056
        %v4058 = vadd.f32 %v4054, %v4057
        %vm4059 = vweird.f32 %v3924
        %vm4060 = vweird.f32 %v4054
        %vm4061 = vmor %vm4059, %vm4060
        %v4062 = vsel %vm4061, %v4054, %v4058
        %v4063 = vand.u32 2147483647, %v3924
        %vm4064 = vcmp.eq.f32.partialorder %v4063, 8.507059e+37
        %v4065 = vand.u32 %v3924, 2147483648
        %v4066 = vor.u32 1.1754944e-38, %v4065
        %v4067 = vsel %vm4064, %v4066, %v4062
        %v4068 = vmul.f32 1.0, %v4067
        %v4069 = vrcp.pop %v3925
        %v4070 = vmul.f32 %v3925, %v4069
        %v4071 = vsub.f32 1.0, %v4070
        %v4072 = vmul.f32 %v4069, %v4071
        %v4073 = vadd.f32 %v4069, %v4072
        %vm4074 = vweird.f32 %v3925
        %vm4075 = vweird.f32 %v4069
        %vm4076 = vmor %vm4074, %vm4075
        %v4077 = vsel %vm4076, %v4069, %v4073
        %v4078 = vand.u32 2147483647, %v3925
        %vm4079 = vcmp.eq.f32.partialorder %v4078, 8.507059e+37
        %v4080 = vand.u32 %v3925, 2147483648
        %v4081 = vor.u32 1.1754944e-38, %v4080
        %v4082 = vsel %vm4079, %v4081, %v4077
        %v4083 = vmul.f32 1.0, %v4082
        %v4084 = vrcp.pop %v3926
        %v4085 = vmul.f32 %v3926, %v4084
        %v4086 = vsub.f32 1.0, %v4085
        %v4087 = vmul.f32 %v4084, %v4086
        %v4088 = vadd.f32 %v4084, %v4087
        %vm4089 = vweird.f32 %v3926
        %vm4090 = vweird.f32 %v4084
        %vm4091 = vmor %vm4089, %vm4090
        %v4092 = vsel %vm4091, %v4084, %v4088
        %v4093 = vand.u32 2147483647, %v3926
        %vm4094 = vcmp.eq.f32.partialorder %v4093, 8.507059e+37
        %v4095 = vand.u32 %v3926, 2147483648
        %v4096 = vor.u32 1.1754944e-38, %v4095
        %v4097 = vsel %vm4094, %v4096, %v4092
        %v4098 = vmul.f32 1.0, %v4097
        %v4099 = vrcp.pop %v3927
        %v4100 = vmul.f32 %v3927, %v4099
        %v4101 = vsub.f32 1.0, %v4100
        %v4102 = vmul.f32 %v4099, %v4101
        %v4103 = vadd.f32 %v4099, %v4102
        %vm4104 = vweird.f32 %v3927
        %vm4105 = vweird.f32 %v4099
        %vm4106 = vmor %vm4104, %vm4105
        %v4107 = vsel %vm4106, %v4099, %v4103
        %v4108 = vand.u32 2147483647, %v3927
        %vm4109 = vcmp.eq.f32.partialorder %v4108, 8.507059e+37
        %v4110 = vand.u32 %v3927, 2147483648
        %v4111 = vor.u32 1.1754944e-38, %v4110
        %v4112 = vsel %vm4109, %v4111, %v4107
        %v4113 = vmul.f32 1.0, %v4112
        %v4114 = vrcp.pop %v3928
        %v4115 = vmul.f32 %v3928, %v4114
        %v4116 = vsub.f32 1.0, %v4115
        %v4117 = vmul.f32 %v4114, %v4116
        %v4118 = vadd.f32 %v4114, %v4117
        %vm4119 = vweird.f32 %v3928
        %vm4120 = vweird.f32 %v4114
        %vm4121 = vmor %vm4119, %vm4120
        %v4122 = vsel %vm4121, %v4114, %v4118
        %v4123 = vand.u32 2147483647, %v3928
        %vm4124 = vcmp.eq.f32.partialorder %v4123, 8.507059e+37
        %v4125 = vand.u32 %v3928, 2147483648
        %v4126 = vor.u32 1.1754944e-38, %v4125
        %v4127 = vsel %vm4124, %v4126, %v4122
        %v4128 = vmul.f32 1.0, %v4127
        %v4129 = vrcp.pop %v3929
        %v4130 = vmul.f32 %v3929, %v4129
        %v4131 = vsub.f32 1.0, %v4130
        %v4132 = vmul.f32 %v4129, %v4131
        %v4133 = vadd.f32 %v4129, %v4132
        %vm4134 = vweird.f32 %v3929
        %vm4135 = vweird.f32 %v4129
        %vm4136 = vmor %vm4134, %vm4135
        %v4137 = vsel %vm4136, %v4129, %v4133
        %v4138 = vand.u32 2147483647, %v3929
        %vm4139 = vcmp.eq.f32.partialorder %v4138, 8.507059e+37
        %v4140 = vand.u32 %v3929, 2147483648
        %v4141 = vor.u32 1.1754944e-38, %v4140
        %v4142 = vsel %vm4139, %v4141, %v4137
        %v4143 = vmul.f32 1.0, %v4142
        %v4144 = vrcp.pop %v3930
        %v4145 = vmul.f32 %v3930, %v4144
        %v4146 = vsub.f32 1.0, %v4145
        %v4147 = vmul.f32 %v4144, %v4146
        %v4148 = vadd.f32 %v4144, %v4147
        %vm4149 = vweird.f32 %v3930
        %vm4150 = vweird.f32 %v4144
        %vm4151 = vmor %vm4149, %vm4150
        %v4152 = vsel %vm4151, %v4144, %v4148
        %v4153 = vand.u32 2147483647, %v3930
        %vm4154 = vcmp.eq.f32.partialorder %v4153, 8.507059e+37
        %v4155 = vand.u32 %v3930, 2147483648
        %v4156 = vor.u32 1.1754944e-38, %v4155
        %v4157 = vsel %vm4154, %v4156, %v4152
        %v4158 = vmul.f32 1.0, %v4157
        %v4159 = vrcp.pop %v3931
        %v4160 = vmul.f32 %v3931, %v4159
        %v4161 = vsub.f32 1.0, %v4160
        %v4162 = vmul.f32 %v4159, %v4161
        %v4163 = vadd.f32 %v4159, %v4162
        %vm4164 = vweird.f32 %v3931
        %vm4165 = vweird.f32 %v4159
        %vm4166 = vmor %vm4164, %vm4165
        %v4167 = vsel %vm4166, %v4159, %v4163
        %v4168 = vand.u32 2147483647, %v3931
        %vm4169 = vcmp.eq.f32.partialorder %v4168, 8.507059e+37
        %v4170 = vand.u32 %v3931, 2147483648
        %v4171 = vor.u32 1.1754944e-38, %v4170
        %v4172 = vsel %vm4169, %v4171, %v4167
        %v4173 = vmul.f32 1.0, %v4172
        %v4174 = vrcp.pop %v3932
        %v4175 = vmul.f32 %v3932, %v4174
        %v4176 = vsub.f32 1.0, %v4175
        %v4177 = vmul.f32 %v4174, %v4176
        %v4178 = vadd.f32 %v4174, %v4177
        %vm4179 = vweird.f32 %v3932
        %vm4180 = vweird.f32 %v4174
        %vm4181 = vmor %vm4179, %vm4180
        %v4182 = vsel %vm4181, %v4174, %v4178
        %v4183 = vand.u32 2147483647, %v3932
        %vm4184 = vcmp.eq.f32.partialorder %v4183, 8.507059e+37
        %v4185 = vand.u32 %v3932, 2147483648
        %v4186 = vor.u32 1.1754944e-38, %v4185
        %v4187 = vsel %vm4184, %v4186, %v4182
        %v4188 = vmul.f32 1.0, %v4187
        %v4189 = vrcp.pop %v3933
        %v4190 = vmul.f32 %v3933, %v4189
        %v4191 = vsub.f32 1.0, %v4190
        %v4192 = vmul.f32 %v4189, %v4191
        %v4193 = vadd.f32 %v4189, %v4192
        %vm4194 = vweird.f32 %v3933
        %vm4195 = vweird.f32 %v4189
        %vm4196 = vmor %vm4194, %vm4195
        %v4197 = vsel %vm4196, %v4189, %v4193
        %v4198 = vand.u32 2147483647, %v3933
        %vm4199 = vcmp.eq.f32.partialorder %v4198, 8.507059e+37
        %v4200 = vand.u32 %v3933, 2147483648
        %v4201 = vor.u32 1.1754944e-38, %v4200
        %v4202 = vsel %vm4199, %v4201, %v4197
        %v4203 = vmul.f32 1.0, %v4202
        %v4204 = vrcp.pop %v3934
        %v4205 = vmul.f32 %v3934, %v4204
        %v4206 = vsub.f32 1.0, %v4205
        %v4207 = vmul.f32 %v4204, %v4206
        %v4208 = vadd.f32 %v4204, %v4207
        %vm4209 = vweird.f32 %v3934
        %vm4210 = vweird.f32 %v4204
        %vm4211 = vmor %vm4209, %vm4210
        %v4212 = vsel %vm4211, %v4204, %v4208
        %v4213 = vand.u32 2147483647, %v3934
        %vm4214 = vcmp.eq.f32.partialorder %v4213, 8.507059e+37
        %v4215 = vand.u32 %v3934, 2147483648
        %v4216 = vor.u32 1.1754944e-38, %v4215
        %v4217 = vsel %vm4214, %v4216, %v4212
        %v4218 = vmul.f32 1.0, %v4217
        %v4219 = vrcp.pop %v3935
        %v4220 = vmul.f32 %v3935, %v4219
        %v4221 = vsub.f32 1.0, %v4220
        %v4222 = vmul.f32 %v4219, %v4221
        %v4223 = vadd.f32 %v4219, %v4222
        %vm4224 = vweird.f32 %v3935
        %vm4225 = vweird.f32 %v4219
        %vm4226 = vmor %vm4224, %vm4225
        %v4227 = vsel %vm4226, %v4219, %v4223
        %v4228 = vand.u32 2147483647, %v3935
        %vm4229 = vcmp.eq.f32.partialorder %v4228, 8.507059e+37
        %v4230 = vand.u32 %v3935, 2147483648
        %v4231 = vor.u32 1.1754944e-38, %v4230
        %v4232 = vsel %vm4229, %v4231, %v4227
        %v4233 = vmul.f32 1.0, %v4232
        %v4234 = vrcp.pop %v3936
        %v4235 = vmul.f32 %v3936, %v4234
        %v4236 = vsub.f32 1.0, %v4235
        %v4237 = vmul.f32 %v4234, %v4236
        %v4238 = vadd.f32 %v4234, %v4237
        %vm4239 = vweird.f32 %v3936
        %vm4240 = vweird.f32 %v4234
        %vm4241 = vmor %vm4239, %vm4240
        %v4242 = vsel %vm4241, %v4234, %v4238
        %v4243 = vand.u32 2147483647, %v3936
        %vm4244 = vcmp.eq.f32.partialorder %v4243, 8.507059e+37
        %v4245 = vand.u32 %v3936, 2147483648
        %v4246 = vor.u32 1.1754944e-38, %v4245
        %v4247 = vsel %vm4244, %v4246, %v4242
        %v4248 = vmul.f32 1.0, %v4247
        %v4249 = vrcp.pop %v3937
        %v4250 = vmul.f32 %v3937, %v4249
        %v4251 = vsub.f32 1.0, %v4250
        %v4252 = vmul.f32 %v4249, %v4251
        %v4253 = vadd.f32 %v4249, %v4252
        %vm4254 = vweird.f32 %v3937
        %vm4255 = vweird.f32 %v4249
        %vm4256 = vmor %vm4254, %vm4255
        %v4257 = vsel %vm4256, %v4249, %v4253
        %v4258 = vand.u32 2147483647, %v3937
        %vm4259 = vcmp.eq.f32.partialorder %v4258, 8.507059e+37
        %v4260 = vand.u32 %v3937, 2147483648
        %v4261 = vor.u32 1.1754944e-38, %v4260
        %v4262 = vsel %vm4259, %v4261, %v4257
        %v4263 = vmul.f32 1.0, %v4262
        %v4264 = vrcp.pop %v3938
        %v4265 = vmul.f32 %v3938, %v4264
        %v4266 = vsub.f32 1.0, %v4265
        %v4267 = vmul.f32 %v4264, %v4266
        %v4268 = vadd.f32 %v4264, %v4267
        %vm4269 = vweird.f32 %v3938
        %vm4270 = vweird.f32 %v4264
        %vm4271 = vmor %vm4269, %vm4270
        %v4272 = vsel %vm4271, %v4264, %v4268
        %v4273 = vand.u32 2147483647, %v3938
        %vm4274 = vcmp.eq.f32.partialorder %v4273, 8.507059e+37
        %v4275 = vand.u32 %v3938, 2147483648
        %v4276 = vor.u32 1.1754944e-38, %v4275
        %v4277 = vsel %vm4274, %v4276, %v4272
        %v4278 = vmul.f32 1.0, %v4277
        %v4279 = vrcp.pop %v3939
        %v4280 = vmul.f32 %v3939, %v4279
        %v4281 = vsub.f32 1.0, %v4280
        %v4282 = vmul.f32 %v4279, %v4281
        %v4283 = vadd.f32 %v4279, %v4282
        %vm4284 = vweird.f32 %v3939
        %vm4285 = vweird.f32 %v4279
        %vm4286 = vmor %vm4284, %vm4285
        %v4287 = vsel %vm4286, %v4279, %v4283
        %v4288 = vand.u32 2147483647, %v3939
        %vm4289 = vcmp.eq.f32.partialorder %v4288, 8.507059e+37
        %v4290 = vand.u32 %v3939, 2147483648
        %v4291 = vor.u32 1.1754944e-38, %v4290
        %v4292 = vsel %vm4289, %v4291, %v4287
        %v4293 = vmul.f32 1.0, %v4292
        %v4294 = vrcp.pop %v3940
        %v4295 = vmul.f32 %v3940, %v4294
        %v4296 = vsub.f32 1.0, %v4295
        %v4297 = vmul.f32 %v4294, %v4296
        %v4298 = vadd.f32 %v4294, %v4297
        %vm4299 = vweird.f32 %v3940
        %vm4300 = vweird.f32 %v4294
        %vm4301 = vmor %vm4299, %vm4300
        %v4302 = vsel %vm4301, %v4294, %v4298
        %v4303 = vand.u32 2147483647, %v3940
        %vm4304 = vcmp.eq.f32.partialorder %v4303, 8.507059e+37
        %v4305 = vand.u32 %v3940, 2147483648
        %v4306 = vor.u32 1.1754944e-38, %v4305
        %v4307 = vsel %vm4304, %v4306, %v4302
        %v4308 = vmul.f32 1.0, %v4307
        %v4309 = vrcp.pop %v3941
        %v4310 = vmul.f32 %v3941, %v4309
        %v4311 = vsub.f32 1.0, %v4310
        %v4312 = vmul.f32 %v4309, %v4311
        %v4313 = vadd.f32 %v4309, %v4312
        %vm4314 = vweird.f32 %v3941
        %vm4315 = vweird.f32 %v4309
        %vm4316 = vmor %vm4314, %vm4315
        %v4317 = vsel %vm4316, %v4309, %v4313
        %v4318 = vand.u32 2147483647, %v3941
        %vm4319 = vcmp.eq.f32.partialorder %v4318, 8.507059e+37
        %v4320 = vand.u32 %v3941, 2147483648
        %v4321 = vor.u32 1.1754944e-38, %v4320
        %v4322 = vsel %vm4319, %v4321, %v4317
        %v4323 = vmul.f32 1.0, %v4322
        %v4324 = vrcp.pop %v3942
        %v4325 = vmul.f32 %v3942, %v4324
        %v4326 = vsub.f32 1.0, %v4325
        %v4327 = vmul.f32 %v4324, %v4326
        %v4328 = vadd.f32 %v4324, %v4327
        %vm4329 = vweird.f32 %v3942
        %vm4330 = vweird.f32 %v4324
        %vm4331 = vmor %vm4329, %vm4330
        %v4332 = vsel %vm4331, %v4324, %v4328
        %v4333 = vand.u32 2147483647, %v3942
        %vm4334 = vcmp.eq.f32.partialorder %v4333, 8.507059e+37
        %v4335 = vand.u32 %v3942, 2147483648
        %v4336 = vor.u32 1.1754944e-38, %v4335
        %v4337 = vsel %vm4334, %v4336, %v4332
        %v4338 = vmul.f32 1.0, %v4337
        %v4339 = vrcp.pop %v3943
        %v4340 = vmul.f32 %v3943, %v4339
        %v4341 = vsub.f32 1.0, %v4340
        %v4342 = vmul.f32 %v4339, %v4341
        %v4343 = vadd.f32 %v4339, %v4342
        %vm4344 = vweird.f32 %v3943
        %vm4345 = vweird.f32 %v4339
        %vm4346 = vmor %vm4344, %vm4345
        %v4347 = vsel %vm4346, %v4339, %v4343
        %v4348 = vand.u32 2147483647, %v3943
        %vm4349 = vcmp.eq.f32.partialorder %v4348, 8.507059e+37
        %v4350 = vand.u32 %v3943, 2147483648
        %v4351 = vor.u32 1.1754944e-38, %v4350
        %v4352 = vsel %vm4349, %v4351, %v4347
        %v4353 = vmul.f32 1.0, %v4352
        %v4354 = vrcp.pop %v3944
        %v4355 = vmul.f32 %v3944, %v4354
        %v4356 = vsub.f32 1.0, %v4355
        %v4357 = vmul.f32 %v4354, %v4356
        %v4358 = vadd.f32 %v4354, %v4357
        %vm4359 = vweird.f32 %v3944
        %vm4360 = vweird.f32 %v4354
        %vm4361 = vmor %vm4359, %vm4360
        %v4362 = vsel %vm4361, %v4354, %v4358
        %v4363 = vand.u32 2147483647, %v3944
        %vm4364 = vcmp.eq.f32.partialorder %v4363, 8.507059e+37
        %v4365 = vand.u32 %v3944, 2147483648
        %v4366 = vor.u32 1.1754944e-38, %v4365
        %v4367 = vsel %vm4364, %v4366, %v4362
        %v4368 = vmul.f32 1.0, %v4367
        %v4369 = vrcp.pop %v3945
        %v4370 = vmul.f32 %v3945, %v4369
        %v4371 = vsub.f32 1.0, %v4370
        %v4372 = vmul.f32 %v4369, %v4371
        %v4373 = vadd.f32 %v4369, %v4372
        %vm4374 = vweird.f32 %v3945
        %vm4375 = vweird.f32 %v4369
        %vm4376 = vmor %vm4374, %vm4375
        %v4377 = vsel %vm4376, %v4369, %v4373
        %v4378 = vand.u32 2147483647, %v3945
        %vm4379 = vcmp.eq.f32.partialorder %v4378, 8.507059e+37
        %v4380 = vand.u32 %v3945, 2147483648
        %v4381 = vor.u32 1.1754944e-38, %v4380
        %v4382 = vsel %vm4379, %v4381, %v4377
        %v4383 = vmul.f32 1.0, %v4382
        %v4384 = vrcp.pop %v3946
        %v4385 = vmul.f32 %v3946, %v4384
        %v4386 = vsub.f32 1.0, %v4385
        %v4387 = vmul.f32 %v4384, %v4386
        %v4388 = vadd.f32 %v4384, %v4387
        %vm4389 = vweird.f32 %v3946
        %vm4390 = vweird.f32 %v4384
        %vm4391 = vmor %vm4389, %vm4390
        %v4392 = vsel %vm4391, %v4384, %v4388
        %v4393 = vand.u32 2147483647, %v3946
        %vm4394 = vcmp.eq.f32.partialorder %v4393, 8.507059e+37
        %v4395 = vand.u32 %v3946, 2147483648
        %v4396 = vor.u32 1.1754944e-38, %v4395
        %v4397 = vsel %vm4394, %v4396, %v4392
        %v4398 = vmul.f32 1.0, %v4397
        %v4399 = vrcp.pop %v3947
        %v4400 = vmul.f32 %v3947, %v4399
        %v4401 = vsub.f32 1.0, %v4400
        %v4402 = vmul.f32 %v4399, %v4401
        %v4403 = vadd.f32 %v4399, %v4402
        %vm4404 = vweird.f32 %v3947
        %vm4405 = vweird.f32 %v4399
        %vm4406 = vmor %vm4404, %vm4405
        %v4407 = vsel %vm4406, %v4399, %v4403
        %v4408 = vand.u32 2147483647, %v3947
        %vm4409 = vcmp.eq.f32.partialorder %v4408, 8.507059e+37
        %v4410 = vand.u32 %v3947, 2147483648
        %v4411 = vor.u32 1.1754944e-38, %v4410
        %v4412 = vsel %vm4409, %v4411, %v4407
        %v4413 = vmul.f32 1.0, %v4412
        %v4414 = vrcp.pop %v3948
        %v4415 = vmul.f32 %v3948, %v4414
        %v4416 = vsub.f32 1.0, %v4415
        %v4417 = vmul.f32 %v4414, %v4416
        %v4418 = vadd.f32 %v4414, %v4417
        %vm4419 = vweird.f32 %v3948
        %vm4420 = vweird.f32 %v4414
        %vm4421 = vmor %vm4419, %vm4420
        %v4422 = vsel %vm4421, %v4414, %v4418
        %v4423 = vand.u32 2147483647, %v3948
        %vm4424 = vcmp.eq.f32.partialorder %v4423, 8.507059e+37
        %v4425 = vand.u32 %v3948, 2147483648
        %v4426 = vor.u32 1.1754944e-38, %v4425
        %v4427 = vsel %vm4424, %v4426, %v4422
        %v4428 = vmul.f32 1.0, %v4427
        %v4429 = vmul.f32 %v3789, %v3963
        %v4430 = vmul.f32 %v3790, %v3978
        %v4431 = vmul.f32 %v3791, %v3993
        %v4432 = vmul.f32 %v3792, %v4008
        %v4433 = vmul.f32 %v3793, %v4023
        %v4434 = vmul.f32 %v3794, %v4038
        %v4435 = vmul.f32 %v3795, %v4053
        %v4436 = vmul.f32 %v3796, %v4068
        %v4437 = vmul.f32 %v3797, %v4083
        %v4438 = vmul.f32 %v3798, %v4098
        %v4439 = vmul.f32 %v3799, %v4113
        %v4440 = vmul.f32 %v3800, %v4128
        %v4441 = vmul.f32 %v3801, %v4143
        %v4442 = vmul.f32 %v3802, %v4158
        %v4443 = vmul.f32 %v3803, %v4173
        %v4444 = vmul.f32 %v3804, %v4188
        %v4445 = vmul.f32 %v3805, %v4203
        %v4446 = vmul.f32 %v3806, %v4218
        %v4447 = vmul.f32 %v3807, %v4233
        %v4448 = vmul.f32 %v3808, %v4248
        %v4449 = vmul.f32 %v3809, %v4263
        %v4450 = vmul.f32 %v3810, %v4278
        %v4451 = vmul.f32 %v3811, %v4293
        %v4452 = vmul.f32 %v3812, %v4308
        %v4453 = vmul.f32 %v3813, %v4323
        %v4454 = vmul.f32 %v3814, %v4338
        %v4455 = vmul.f32 %v3815, %v4353
        %v4456 = vmul.f32 %v3816, %v4368
        %v4457 = vmul.f32 %v3817, %v4383
        %v4458 = vmul.f32 %v3818, %v4398
        %v4459 = vmul.f32 %v3819, %v4413
        %v4460 = vmul.f32 %v3820, %v4428
        %s4461 = scalar_lea.vmem [#allocation3], 32
        %4462 = vst.msk [vmem:[%s4461 + $0x8] sm:$0xff] %vm513, %v4429
        %4463 = vst.msk [vmem:[%s4461 + $0x10] sm:$0xff] %vm513, %v4430
        %4464 = vst.msk [vmem:[%s4461 + $0x28] sm:$0xff] %vm513, %v4431
        %4465 = vst.msk [vmem:[%s4461 + $0x30] sm:$0xff] %vm513, %v4432
        %4466 = vst.msk [vmem:[%s4461 + $0x48] sm:$0xff] %vm513, %v4433
        %4467 = vst.msk [vmem:[%s4461 + $0x50] sm:$0xff] %vm513, %v4434
        %4468 = vst.msk [vmem:[%s4461 + $0x68] sm:$0xff] %vm513, %v4435
        %4469 = vst.msk [vmem:[%s4461 + $0x70] sm:$0xff] %vm513, %v4436
        %4470 = vst.msk [vmem:[%s4461 + $0x88] sm:$0xff] %vm513, %v4437
        %4471 = vst.msk [vmem:[%s4461 + $0x90] sm:$0xff] %vm513, %v4438
        %4472 = vst.msk [vmem:[%s4461 + $0xa8] sm:$0xff] %vm513, %v4439
        %4473 = vst.msk [vmem:[%s4461 + $0xb0] sm:$0xff] %vm513, %v4440
        %4474 = vst.msk [vmem:[%s4461 + $0xc8] sm:$0xff] %vm513, %v4441
        %4475 = vst.msk [vmem:[%s4461 + $0xd0] sm:$0xff] %vm513, %v4442
        %4476 = vst.msk [vmem:[%s4461 + $0xe8] sm:$0xff] %vm513, %v4443
        %4477 = vst.msk [vmem:[%s4461 + $0xf0] sm:$0xff] %vm513, %v4444
        %4478 = vst.msk [vmem:[%s4461 + $0x108] sm:$0xff] %vm513, %v4445
        %4479 = vst.msk [vmem:[%s4461 + $0x110] sm:$0xff] %vm513, %v4446
        %4480 = vst.msk [vmem:[%s4461 + $0x128] sm:$0xff] %vm513, %v4447
        %4481 = vst.msk [vmem:[%s4461 + $0x130] sm:$0xff] %vm513, %v4448
        %4482 = vst.msk [vmem:[%s4461 + $0x148] sm:$0xff] %vm513, %v4449
        %4483 = vst.msk [vmem:[%s4461 + $0x150] sm:$0xff] %vm513, %v4450
        %4484 = vst.msk [vmem:[%s4461 + $0x168] sm:$0xff] %vm513, %v4451
        %4485 = vst.msk [vmem:[%s4461 + $0x170] sm:$0xff] %vm513, %v4452
        %4486 = vst.msk [vmem:[%s4461 + $0x188] sm:$0xff] %vm513, %v4453
        %4487 = vst.msk [vmem:[%s4461 + $0x190] sm:$0xff] %vm513, %v4454
        %4488 = vst.msk [vmem:[%s4461 + $0x1a8] sm:$0xff] %vm513, %v4455
        %4489 = vst.msk [vmem:[%s4461 + $0x1b0] sm:$0xff] %vm513, %v4456
        %4490 = vst.msk [vmem:[%s4461 + $0x1c8] sm:$0xff] %vm513, %v4457
        %4491 = vst.msk [vmem:[%s4461 + $0x1d0] sm:$0xff] %vm513, %v4458
        %4492 = vst.msk [vmem:[%s4461 + $0x1e8] sm:$0xff] %vm513, %v4459
        %4493 = vst.msk [vmem:[%s4461 + $0x1f0] sm:$0xff] %vm513, %v4460
        %v4494 = vld [vmem:[#allocation3 + $0x7] sm:$0xff]
        %v4495 = vld [vmem:[#allocation3 + $0xf] sm:$0xff]
        %v4496 = vld [vmem:[#allocation3 + $0x27] sm:$0xff]
        %v4497 = vld [vmem:[#allocation3 + $0x2f] sm:$0xff]
        %v4498 = vld [vmem:[#allocation3 + $0x47] sm:$0xff]
        %v4499 = vld [vmem:[#allocation3 + $0x4f] sm:$0xff]
        %v4500 = vld [vmem:[#allocation3 + $0x67] sm:$0xff]
        %v4501 = vld [vmem:[#allocation3 + $0x6f] sm:$0xff]
        %v4502 = vld [vmem:[#allocation3 + $0x87] sm:$0xff]
        %v4503 = vld [vmem:[#allocation3 + $0x8f] sm:$0xff]
        %v4504 = vld [vmem:[#allocation3 + $0xa7] sm:$0xff]
        %v4505 = vld [vmem:[#allocation3 + $0xaf] sm:$0xff]
        %v4506 = vld [vmem:[#allocation3 + $0xc7] sm:$0xff]
        %v4507 = vld [vmem:[#allocation3 + $0xcf] sm:$0xff]
        %v4508 = vld [vmem:[#allocation3 + $0xe7] sm:$0xff]
        %v4509 = vld [vmem:[#allocation3 + $0xef] sm:$0xff]
        %v4510 = vld [vmem:[#allocation3 + $0x107] sm:$0xff]
        %v4511 = vld [vmem:[#allocation3 + $0x10f] sm:$0xff]
        %v4512 = vld [vmem:[#allocation3 + $0x127] sm:$0xff]
        %v4513 = vld [vmem:[#allocation3 + $0x12f] sm:$0xff]
        %v4514 = vld [vmem:[#allocation3 + $0x147] sm:$0xff]
        %v4515 = vld [vmem:[#allocation3 + $0x14f] sm:$0xff]
        %v4516 = vld [vmem:[#allocation3 + $0x167] sm:$0xff]
        %v4517 = vld [vmem:[#allocation3 + $0x16f] sm:$0xff]
        %v4518 = vld [vmem:[#allocation3 + $0x187] sm:$0xff]
        %v4519 = vld [vmem:[#allocation3 + $0x18f] sm:$0xff]
        %v4520 = vld [vmem:[#allocation3 + $0x1a7] sm:$0xff]
        %v4521 = vld [vmem:[#allocation3 + $0x1af] sm:$0xff]
        %v4522 = vld [vmem:[#allocation3 + $0x1c7] sm:$0xff]
        %v4523 = vld [vmem:[#allocation3 + $0x1cf] sm:$0xff]
        %v4524 = vld [vmem:[#allocation3 + $0x1e7] sm:$0xff]
        %v4525 = vld [vmem:[#allocation3 + $0x1ef] sm:$0xff]
        %v4526 = vld [vmem:[#allocation3 + $0x8] sm:$0xff]
        %v4527 = vld [vmem:[#allocation3 + $0x10] sm:$0xff]
        %v4528 = vld [vmem:[#allocation3 + $0x28] sm:$0xff]
        %v4529 = vld [vmem:[#allocation3 + $0x30] sm:$0xff]
        %v4530 = vld [vmem:[#allocation3 + $0x48] sm:$0xff]
        %v4531 = vld [vmem:[#allocation3 + $0x50] sm:$0xff]
        %v4532 = vld [vmem:[#allocation3 + $0x68] sm:$0xff]
        %v4533 = vld [vmem:[#allocation3 + $0x70] sm:$0xff]
        %v4534 = vld [vmem:[#allocation3 + $0x88] sm:$0xff]
        %v4535 = vld [vmem:[#allocation3 + $0x90] sm:$0xff]
        %v4536 = vld [vmem:[#allocation3 + $0xa8] sm:$0xff]
        %v4537 = vld [vmem:[#allocation3 + $0xb0] sm:$0xff]
        %v4538 = vld [vmem:[#allocation3 + $0xc8] sm:$0xff]
        %v4539 = vld [vmem:[#allocation3 + $0xd0] sm:$0xff]
        %v4540 = vld [vmem:[#allocation3 + $0xe8] sm:$0xff]
        %v4541 = vld [vmem:[#allocation3 + $0xf0] sm:$0xff]
        %v4542 = vld [vmem:[#allocation3 + $0x108] sm:$0xff]
        %v4543 = vld [vmem:[#allocation3 + $0x110] sm:$0xff]
        %v4544 = vld [vmem:[#allocation3 + $0x128] sm:$0xff]
        %v4545 = vld [vmem:[#allocation3 + $0x130] sm:$0xff]
        %v4546 = vld [vmem:[#allocation3 + $0x148] sm:$0xff]
        %v4547 = vld [vmem:[#allocation3 + $0x150] sm:$0xff]
        %v4548 = vld [vmem:[#allocation3 + $0x168] sm:$0xff]
        %v4549 = vld [vmem:[#allocation3 + $0x170] sm:$0xff]
        %v4550 = vld [vmem:[#allocation3 + $0x188] sm:$0xff]
        %v4551 = vld [vmem:[#allocation3 + $0x190] sm:$0xff]
        %v4552 = vld [vmem:[#allocation3 + $0x1a8] sm:$0xff]
        %v4553 = vld [vmem:[#allocation3 + $0x1b0] sm:$0xff]
        %v4554 = vld [vmem:[#allocation3 + $0x1c8] sm:$0xff]
        %v4555 = vld [vmem:[#allocation3 + $0x1d0] sm:$0xff]
        %v4556 = vld [vmem:[#allocation3 + $0x1e8] sm:$0xff]
        %v4557 = vld [vmem:[#allocation3 + $0x1f0] sm:$0xff]
        %v4558 = vld [vmem:[#allocation3 + $0x9] sm:$0xff]
        %v4559 = vld [vmem:[#allocation3 + $0x11] sm:$0xff]
        %v4560 = vld [vmem:[#allocation3 + $0x29] sm:$0xff]
        %v4561 = vld [vmem:[#allocation3 + $0x31] sm:$0xff]
        %v4562 = vld [vmem:[#allocation3 + $0x49] sm:$0xff]
        %v4563 = vld [vmem:[#allocation3 + $0x51] sm:$0xff]
        %v4564 = vld [vmem:[#allocation3 + $0x69] sm:$0xff]
        %v4565 = vld [vmem:[#allocation3 + $0x71] sm:$0xff]
        %v4566 = vld [vmem:[#allocation3 + $0x89] sm:$0xff]
        %v4567 = vld [vmem:[#allocation3 + $0x91] sm:$0xff]
        %v4568 = vld [vmem:[#allocation3 + $0xa9] sm:$0xff]
        %v4569 = vld [vmem:[#allocation3 + $0xb1] sm:$0xff]
        %v4570 = vld [vmem:[#allocation3 + $0xc9] sm:$0xff]
        %v4571 = vld [vmem:[#allocation3 + $0xd1] sm:$0xff]
        %v4572 = vld [vmem:[#allocation3 + $0xe9] sm:$0xff]
        %v4573 = vld [vmem:[#allocation3 + $0xf1] sm:$0xff]
        %v4574 = vld [vmem:[#allocation3 + $0x109] sm:$0xff]
        %v4575 = vld [vmem:[#allocation3 + $0x111] sm:$0xff]
        %v4576 = vld [vmem:[#allocation3 + $0x129] sm:$0xff]
        %v4577 = vld [vmem:[#allocation3 + $0x131] sm:$0xff]
        %v4578 = vld [vmem:[#allocation3 + $0x149] sm:$0xff]
        %v4579 = vld [vmem:[#allocation3 + $0x151] sm:$0xff]
        %v4580 = vld [vmem:[#allocation3 + $0x169] sm:$0xff]
        %v4581 = vld [vmem:[#allocation3 + $0x171] sm:$0xff]
        %v4582 = vld [vmem:[#allocation3 + $0x189] sm:$0xff]
        %v4583 = vld [vmem:[#allocation3 + $0x191] sm:$0xff]
        %v4584 = vld [vmem:[#allocation3 + $0x1a9] sm:$0xff]
        %v4585 = vld [vmem:[#allocation3 + $0x1b1] sm:$0xff]
        %v4586 = vld [vmem:[#allocation3 + $0x1c9] sm:$0xff]
        %v4587 = vld [vmem:[#allocation3 + $0x1d1] sm:$0xff]
        %v4588 = vld [vmem:[#allocation3 + $0x1e9] sm:$0xff]
        %v4589 = vld [vmem:[#allocation3 + $0x1f1] sm:$0xff]
        %v4590 = vld [vmem:[%s4461 + $0x7] sm:$0xff]
        %v4591 = vld [vmem:[%s4461 + $0xf] sm:$0xff]
        %v4592 = vld [vmem:[%s4461 + $0x27] sm:$0xff]
        %v4593 = vld [vmem:[%s4461 + $0x2f] sm:$0xff]
        %v4594 = vld [vmem:[%s4461 + $0x47] sm:$0xff]
        %v4595 = vld [vmem:[%s4461 + $0x4f] sm:$0xff]
        %v4596 = vld [vmem:[%s4461 + $0x67] sm:$0xff]
        %v4597 = vld [vmem:[%s4461 + $0x6f] sm:$0xff]
        %v4598 = vld [vmem:[%s4461 + $0x87] sm:$0xff]
        %v4599 = vld [vmem:[%s4461 + $0x8f] sm:$0xff]
        %v4600 = vld [vmem:[%s4461 + $0xa7] sm:$0xff]
        %v4601 = vld [vmem:[%s4461 + $0xaf] sm:$0xff]
        %v4602 = vld [vmem:[%s4461 + $0xc7] sm:$0xff]
        %v4603 = vld [vmem:[%s4461 + $0xcf] sm:$0xff]
        %v4604 = vld [vmem:[%s4461 + $0xe7] sm:$0xff]
        %v4605 = vld [vmem:[%s4461 + $0xef] sm:$0xff]
        %v4606 = vld [vmem:[%s4461 + $0x107] sm:$0xff]
        %v4607 = vld [vmem:[%s4461 + $0x10f] sm:$0xff]
        %v4608 = vld [vmem:[%s4461 + $0x127] sm:$0xff]
        %v4609 = vld [vmem:[%s4461 + $0x12f] sm:$0xff]
        %v4610 = vld [vmem:[%s4461 + $0x147] sm:$0xff]
        %v4611 = vld [vmem:[%s4461 + $0x14f] sm:$0xff]
        %v4612 = vld [vmem:[%s4461 + $0x167] sm:$0xff]
        %v4613 = vld [vmem:[%s4461 + $0x16f] sm:$0xff]
        %v4614 = vld [vmem:[%s4461 + $0x187] sm:$0xff]
        %v4615 = vld [vmem:[%s4461 + $0x18f] sm:$0xff]
        %v4616 = vld [vmem:[%s4461 + $0x1a7] sm:$0xff]
        %v4617 = vld [vmem:[%s4461 + $0x1af] sm:$0xff]
        %v4618 = vld [vmem:[%s4461 + $0x1c7] sm:$0xff]
        %v4619 = vld [vmem:[%s4461 + $0x1cf] sm:$0xff]
        %v4620 = vld [vmem:[%s4461 + $0x1e7] sm:$0xff]
        %v4621 = vld [vmem:[%s4461 + $0x1ef] sm:$0xff]
        %v4622 = vld [vmem:[%s4461 + $0x8] sm:$0xff]
        %v4623 = vld [vmem:[%s4461 + $0x10] sm:$0xff]
        %v4624 = vld [vmem:[%s4461 + $0x28] sm:$0xff]
        %v4625 = vld [vmem:[%s4461 + $0x30] sm:$0xff]
        %v4626 = vld [vmem:[%s4461 + $0x48] sm:$0xff]
        %v4627 = vld [vmem:[%s4461 + $0x50] sm:$0xff]
        %v4628 = vld [vmem:[%s4461 + $0x68] sm:$0xff]
        %v4629 = vld [vmem:[%s4461 + $0x70] sm:$0xff]
        %v4630 = vld [vmem:[%s4461 + $0x88] sm:$0xff]
        %v4631 = vld [vmem:[%s4461 + $0x90] sm:$0xff]
        %v4632 = vld [vmem:[%s4461 + $0xa8] sm:$0xff]
        %v4633 = vld [vmem:[%s4461 + $0xb0] sm:$0xff]
        %v4634 = vld [vmem:[%s4461 + $0xc8] sm:$0xff]
        %v4635 = vld [vmem:[%s4461 + $0xd0] sm:$0xff]
        %v4636 = vld [vmem:[%s4461 + $0xe8] sm:$0xff]
        %v4637 = vld [vmem:[%s4461 + $0xf0] sm:$0xff]
        %v4638 = vld [vmem:[%s4461 + $0x108] sm:$0xff]
        %v4639 = vld [vmem:[%s4461 + $0x110] sm:$0xff]
        %v4640 = vld [vmem:[%s4461 + $0x128] sm:$0xff]
        %v4641 = vld [vmem:[%s4461 + $0x130] sm:$0xff]
        %v4642 = vld [vmem:[%s4461 + $0x148] sm:$0xff]
        %v4643 = vld [vmem:[%s4461 + $0x150] sm:$0xff]
        %v4644 = vld [vmem:[%s4461 + $0x168] sm:$0xff]
        %v4645 = vld [vmem:[%s4461 + $0x170] sm:$0xff]
        %v4646 = vld [vmem:[%s4461 + $0x188] sm:$0xff]
        %v4647 = vld [vmem:[%s4461 + $0x190] sm:$0xff]
        %v4648 = vld [vmem:[%s4461 + $0x1a8] sm:$0xff]
        %v4649 = vld [vmem:[%s4461 + $0x1b0] sm:$0xff]
        %v4650 = vld [vmem:[%s4461 + $0x1c8] sm:$0xff]
        %v4651 = vld [vmem:[%s4461 + $0x1d0] sm:$0xff]
        %v4652 = vld [vmem:[%s4461 + $0x1e8] sm:$0xff]
        %v4653 = vld [vmem:[%s4461 + $0x1f0] sm:$0xff]
        %v4654 = vld [vmem:[%s4461 + $0x9] sm:$0xff]
        %v4655 = vld [vmem:[%s4461 + $0x11] sm:$0xff]
        %v4656 = vld [vmem:[%s4461 + $0x29] sm:$0xff]
        %v4657 = vld [vmem:[%s4461 + $0x31] sm:$0xff]
        %v4658 = vld [vmem:[%s4461 + $0x49] sm:$0xff]
        %v4659 = vld [vmem:[%s4461 + $0x51] sm:$0xff]
        %v4660 = vld [vmem:[%s4461 + $0x69] sm:$0xff]
        %v4661 = vld [vmem:[%s4461 + $0x71] sm:$0xff]
        %v4662 = vld [vmem:[%s4461 + $0x89] sm:$0xff]
        %v4663 = vld [vmem:[%s4461 + $0x91] sm:$0xff]
        %v4664 = vld [vmem:[%s4461 + $0xa9] sm:$0xff]
        %v4665 = vld [vmem:[%s4461 + $0xb1] sm:$0xff]
        %v4666 = vld [vmem:[%s4461 + $0xc9] sm:$0xff]
        %v4667 = vld [vmem:[%s4461 + $0xd1] sm:$0xff]
        %v4668 = vld [vmem:[%s4461 + $0xe9] sm:$0xff]
        %v4669 = vld [vmem:[%s4461 + $0xf1] sm:$0xff]
        %v4670 = vld [vmem:[%s4461 + $0x109] sm:$0xff]
        %v4671 = vld [vmem:[%s4461 + $0x111] sm:$0xff]
        %v4672 = vld [vmem:[%s4461 + $0x129] sm:$0xff]
        %v4673 = vld [vmem:[%s4461 + $0x131] sm:$0xff]
        %v4674 = vld [vmem:[%s4461 + $0x149] sm:$0xff]
        %v4675 = vld [vmem:[%s4461 + $0x151] sm:$0xff]
        %v4676 = vld [vmem:[%s4461 + $0x169] sm:$0xff]
        %v4677 = vld [vmem:[%s4461 + $0x171] sm:$0xff]
        %v4678 = vld [vmem:[%s4461 + $0x189] sm:$0xff]
        %v4679 = vld [vmem:[%s4461 + $0x191] sm:$0xff]
        %v4680 = vld [vmem:[%s4461 + $0x1a9] sm:$0xff]
        %v4681 = vld [vmem:[%s4461 + $0x1b1] sm:$0xff]
        %v4682 = vld [vmem:[%s4461 + $0x1c9] sm:$0xff]
        %v4683 = vld [vmem:[%s4461 + $0x1d1] sm:$0xff]
        %v4684 = vld [vmem:[%s4461 + $0x1e9] sm:$0xff]
        %v4685 = vld [vmem:[%s4461 + $0x1f1] sm:$0xff]
        %s4686 = scalar_lea.vmem [#allocation3], 64
        %v4687 = vld [vmem:[%s4686 + $0x7] sm:$0xff]
        %v4688 = vld [vmem:[%s4686 + $0xf] sm:$0xff]
        %v4689 = vld [vmem:[%s4686 + $0x27] sm:$0xff]
        %v4690 = vld [vmem:[%s4686 + $0x2f] sm:$0xff]
        %v4691 = vld [vmem:[%s4686 + $0x47] sm:$0xff]
        %v4692 = vld [vmem:[%s4686 + $0x4f] sm:$0xff]
        %v4693 = vld [vmem:[%s4686 + $0x67] sm:$0xff]
        %v4694 = vld [vmem:[%s4686 + $0x6f] sm:$0xff]
        %v4695 = vld [vmem:[%s4686 + $0x87] sm:$0xff]
        %v4696 = vld [vmem:[%s4686 + $0x8f] sm:$0xff]
        %v4697 = vld [vmem:[%s4686 + $0xa7] sm:$0xff]
        %v4698 = vld [vmem:[%s4686 + $0xaf] sm:$0xff]
        %v4699 = vld [vmem:[%s4686 + $0xc7] sm:$0xff]
        %v4700 = vld [vmem:[%s4686 + $0xcf] sm:$0xff]
        %v4701 = vld [vmem:[%s4686 + $0xe7] sm:$0xff]
        %v4702 = vld [vmem:[%s4686 + $0xef] sm:$0xff]
        %v4703 = vld [vmem:[%s4686 + $0x107] sm:$0xff]
        %v4704 = vld [vmem:[%s4686 + $0x10f] sm:$0xff]
        %v4705 = vld [vmem:[%s4686 + $0x127] sm:$0xff]
        %v4706 = vld [vmem:[%s4686 + $0x12f] sm:$0xff]
        %v4707 = vld [vmem:[%s4686 + $0x147] sm:$0xff]
        %v4708 = vld [vmem:[%s4686 + $0x14f] sm:$0xff]
        %v4709 = vld [vmem:[%s4686 + $0x167] sm:$0xff]
        %v4710 = vld [vmem:[%s4686 + $0x16f] sm:$0xff]
        %v4711 = vld [vmem:[%s4686 + $0x187] sm:$0xff]
        %v4712 = vld [vmem:[%s4686 + $0x18f] sm:$0xff]
        %v4713 = vld [vmem:[%s4686 + $0x1a7] sm:$0xff]
        %v4714 = vld [vmem:[%s4686 + $0x1af] sm:$0xff]
        %v4715 = vld [vmem:[%s4686 + $0x1c7] sm:$0xff]
        %v4716 = vld [vmem:[%s4686 + $0x1cf] sm:$0xff]
        %v4717 = vld [vmem:[%s4686 + $0x1e7] sm:$0xff]
        %v4718 = vld [vmem:[%s4686 + $0x1ef] sm:$0xff]
        %v4719 = vld [vmem:[%s4686 + $0x8] sm:$0xff]
        %v4720 = vld [vmem:[%s4686 + $0x10] sm:$0xff]
        %v4721 = vld [vmem:[%s4686 + $0x28] sm:$0xff]
        %v4722 = vld [vmem:[%s4686 + $0x30] sm:$0xff]
        %v4723 = vld [vmem:[%s4686 + $0x48] sm:$0xff]
        %v4724 = vld [vmem:[%s4686 + $0x50] sm:$0xff]
        %v4725 = vld [vmem:[%s4686 + $0x68] sm:$0xff]
        %v4726 = vld [vmem:[%s4686 + $0x70] sm:$0xff]
        %v4727 = vld [vmem:[%s4686 + $0x88] sm:$0xff]
        %v4728 = vld [vmem:[%s4686 + $0x90] sm:$0xff]
        %v4729 = vld [vmem:[%s4686 + $0xa8] sm:$0xff]
        %v4730 = vld [vmem:[%s4686 + $0xb0] sm:$0xff]
        %v4731 = vld [vmem:[%s4686 + $0xc8] sm:$0xff]
        %v4732 = vld [vmem:[%s4686 + $0xd0] sm:$0xff]
        %v4733 = vld [vmem:[%s4686 + $0xe8] sm:$0xff]
        %v4734 = vld [vmem:[%s4686 + $0xf0] sm:$0xff]
        %v4735 = vld [vmem:[%s4686 + $0x108] sm:$0xff]
        %v4736 = vld [vmem:[%s4686 + $0x110] sm:$0xff]
        %v4737 = vld [vmem:[%s4686 + $0x128] sm:$0xff]
        %v4738 = vld [vmem:[%s4686 + $0x130] sm:$0xff]
        %v4739 = vld [vmem:[%s4686 + $0x148] sm:$0xff]
        %v4740 = vld [vmem:[%s4686 + $0x150] sm:$0xff]
        %v4741 = vld [vmem:[%s4686 + $0x168] sm:$0xff]
        %v4742 = vld [vmem:[%s4686 + $0x170] sm:$0xff]
        %v4743 = vld [vmem:[%s4686 + $0x188] sm:$0xff]
        %v4744 = vld [vmem:[%s4686 + $0x190] sm:$0xff]
        %v4745 = vld [vmem:[%s4686 + $0x1a8] sm:$0xff]
        %v4746 = vld [vmem:[%s4686 + $0x1b0] sm:$0xff]
        %v4747 = vld [vmem:[%s4686 + $0x1c8] sm:$0xff]
        %v4748 = vld [vmem:[%s4686 + $0x1d0] sm:$0xff]
        %v4749 = vld [vmem:[%s4686 + $0x1e8] sm:$0xff]
        %v4750 = vld [vmem:[%s4686 + $0x1f0] sm:$0xff]
        %v4751 = vld [vmem:[%s4686 + $0x9] sm:$0xff]
        %v4752 = vld [vmem:[%s4686 + $0x11] sm:$0xff]
        %v4753 = vld [vmem:[%s4686 + $0x29] sm:$0xff]
        %v4754 = vld [vmem:[%s4686 + $0x31] sm:$0xff]
        %v4755 = vld [vmem:[%s4686 + $0x49] sm:$0xff]
        %v4756 = vld [vmem:[%s4686 + $0x51] sm:$0xff]
        %v4757 = vld [vmem:[%s4686 + $0x69] sm:$0xff]
        %v4758 = vld [vmem:[%s4686 + $0x71] sm:$0xff]
        %v4759 = vld [vmem:[%s4686 + $0x89] sm:$0xff]
        %v4760 = vld [vmem:[%s4686 + $0x91] sm:$0xff]
        %v4761 = vld [vmem:[%s4686 + $0xa9] sm:$0xff]
        %v4762 = vld [vmem:[%s4686 + $0xb1] sm:$0xff]
        %v4763 = vld [vmem:[%s4686 + $0xc9] sm:$0xff]
        %v4764 = vld [vmem:[%s4686 + $0xd1] sm:$0xff]
        %v4765 = vld [vmem:[%s4686 + $0xe9] sm:$0xff]
        %v4766 = vld [vmem:[%s4686 + $0xf1] sm:$0xff]
        %v4767 = vld [vmem:[%s4686 + $0x109] sm:$0xff]
        %v4768 = vld [vmem:[%s4686 + $0x111] sm:$0xff]
        %v4769 = vld [vmem:[%s4686 + $0x129] sm:$0xff]
        %v4770 = vld [vmem:[%s4686 + $0x131] sm:$0xff]
        %v4771 = vld [vmem:[%s4686 + $0x149] sm:$0xff]
        %v4772 = vld [vmem:[%s4686 + $0x151] sm:$0xff]
        %v4773 = vld [vmem:[%s4686 + $0x169] sm:$0xff]
        %v4774 = vld [vmem:[%s4686 + $0x171] sm:$0xff]
        %v4775 = vld [vmem:[%s4686 + $0x189] sm:$0xff]
        %v4776 = vld [vmem:[%s4686 + $0x191] sm:$0xff]
        %v4777 = vld [vmem:[%s4686 + $0x1a9] sm:$0xff]
        %v4778 = vld [vmem:[%s4686 + $0x1b1] sm:$0xff]
        %v4779 = vld [vmem:[%s4686 + $0x1c9] sm:$0xff]
        %v4780 = vld [vmem:[%s4686 + $0x1d1] sm:$0xff]
        %v4781 = vld [vmem:[%s4686 + $0x1e9] sm:$0xff]
        %v4782 = vld [vmem:[%s4686 + $0x1f1] sm:$0xff]
        %4815 = vrot.lane.b32.xlu0 %v4526, 16
        %v4816 = vpop.permute.xlu0 %4815
        %4817 = vrot.lane.b32.xlu0 %v4527, 16
        %v4818 = vpop.permute.xlu0 %4817
        %4819 = vrot.lane.b32.xlu0 %v4528, 16
        %v4820 = vpop.permute.xlu0 %4819
        %4821 = vrot.lane.b32.xlu0 %v4529, 16
        %v4822 = vpop.permute.xlu0 %4821
        %4823 = vrot.lane.b32.xlu0 %v4530, 16
        %v4824 = vpop.permute.xlu0 %4823
        %4825 = vrot.lane.b32.xlu0 %v4531, 16
        %v4826 = vpop.permute.xlu0 %4825
        %4827 = vrot.lane.b32.xlu0 %v4532, 16
        %v4828 = vpop.permute.xlu0 %4827
        %4829 = vrot.lane.b32.xlu0 %v4533, 16
        %v4830 = vpop.permute.xlu0 %4829
        %4831 = vrot.lane.b32.xlu0 %v4534, 16
        %v4832 = vpop.permute.xlu0 %4831
        %4833 = vrot.lane.b32.xlu0 %v4535, 16
        %v4834 = vpop.permute.xlu0 %4833
        %4835 = vrot.lane.b32.xlu0 %v4536, 16
        %v4836 = vpop.permute.xlu0 %4835
        %4837 = vrot.lane.b32.xlu0 %v4537, 16
        %v4838 = vpop.permute.xlu0 %4837
        %4839 = vrot.lane.b32.xlu0 %v4538, 16
        %v4840 = vpop.permute.xlu0 %4839
        %4841 = vrot.lane.b32.xlu0 %v4539, 16
        %v4842 = vpop.permute.xlu0 %4841
        %4843 = vrot.lane.b32.xlu0 %v4540, 16
        %v4844 = vpop.permute.xlu0 %4843
        %4845 = vrot.lane.b32.xlu0 %v4541, 16
        %v4846 = vpop.permute.xlu0 %4845
        %4847 = vrot.lane.b32.xlu0 %v4542, 16
        %v4848 = vpop.permute.xlu0 %4847
        %4849 = vrot.lane.b32.xlu0 %v4543, 16
        %v4850 = vpop.permute.xlu0 %4849
        %4851 = vrot.lane.b32.xlu0 %v4544, 16
        %v4852 = vpop.permute.xlu0 %4851
        %4853 = vrot.lane.b32.xlu0 %v4545, 16
        %v4854 = vpop.permute.xlu0 %4853
        %4855 = vrot.lane.b32.xlu0 %v4546, 16
        %v4856 = vpop.permute.xlu0 %4855
        %4857 = vrot.lane.b32.xlu0 %v4547, 16
        %v4858 = vpop.permute.xlu0 %4857
        %4859 = vrot.lane.b32.xlu0 %v4548, 16
        %v4860 = vpop.permute.xlu0 %4859
        %4861 = vrot.lane.b32.xlu0 %v4549, 16
        %v4862 = vpop.permute.xlu0 %4861
        %4863 = vrot.lane.b32.xlu0 %v4550, 16
        %v4864 = vpop.permute.xlu0 %4863
        %4865 = vrot.lane.b32.xlu0 %v4551, 16
        %v4866 = vpop.permute.xlu0 %4865
        %4867 = vrot.lane.b32.xlu0 %v4552, 16
        %v4868 = vpop.permute.xlu0 %4867
        %4869 = vrot.lane.b32.xlu0 %v4553, 16
        %v4870 = vpop.permute.xlu0 %4869
        %4871 = vrot.lane.b32.xlu0 %v4554, 16
        %v4872 = vpop.permute.xlu0 %4871
        %4873 = vrot.lane.b32.xlu0 %v4555, 16
        %v4874 = vpop.permute.xlu0 %4873
        %4875 = vrot.lane.b32.xlu0 %v4556, 16
        %v4876 = vpop.permute.xlu0 %4875
        %4877 = vrot.lane.b32.xlu0 %v4557, 16
        %v4878 = vpop.permute.xlu0 %4877
        %4943 = vrot.lane.b32.xlu0 %v4558, 32
        %v4944 = vpop.permute.xlu0 %4943
        %4945 = vrot.lane.b32.xlu0 %v4559, 32
        %v4946 = vpop.permute.xlu0 %4945
        %4947 = vrot.lane.b32.xlu0 %v4560, 32
        %v4948 = vpop.permute.xlu0 %4947
        %4949 = vrot.lane.b32.xlu0 %v4561, 32
        %v4950 = vpop.permute.xlu0 %4949
        %4951 = vrot.lane.b32.xlu0 %v4562, 32
        %v4952 = vpop.permute.xlu0 %4951
        %4953 = vrot.lane.b32.xlu0 %v4563, 32
        %v4954 = vpop.permute.xlu0 %4953
        %4955 = vrot.lane.b32.xlu0 %v4564, 32
        %v4956 = vpop.permute.xlu0 %4955
        %4957 = vrot.lane.b32.xlu0 %v4565, 32
        %v4958 = vpop.permute.xlu0 %4957
        %4959 = vrot.lane.b32.xlu0 %v4566, 32
        %v4960 = vpop.permute.xlu0 %4959
        %4961 = vrot.lane.b32.xlu0 %v4567, 32
        %v4962 = vpop.permute.xlu0 %4961
        %4963 = vrot.lane.b32.xlu0 %v4568, 32
        %v4964 = vpop.permute.xlu0 %4963
        %4965 = vrot.lane.b32.xlu0 %v4569, 32
        %v4966 = vpop.permute.xlu0 %4965
        %4967 = vrot.lane.b32.xlu0 %v4570, 32
        %v4968 = vpop.permute.xlu0 %4967
        %4969 = vrot.lane.b32.xlu0 %v4571, 32
        %v4970 = vpop.permute.xlu0 %4969
        %4971 = vrot.lane.b32.xlu0 %v4572, 32
        %v4972 = vpop.permute.xlu0 %4971
        %4973 = vrot.lane.b32.xlu0 %v4573, 32
        %v4974 = vpop.permute.xlu0 %4973
        %4975 = vrot.lane.b32.xlu0 %v4574, 32
        %v4976 = vpop.permute.xlu0 %4975
        %4977 = vrot.lane.b32.xlu0 %v4575, 32
        %v4978 = vpop.permute.xlu0 %4977
        %4979 = vrot.lane.b32.xlu0 %v4576, 32
        %v4980 = vpop.permute.xlu0 %4979
        %4981 = vrot.lane.b32.xlu0 %v4577, 32
        %v4982 = vpop.permute.xlu0 %4981
        %4983 = vrot.lane.b32.xlu0 %v4578, 32
        %v4984 = vpop.permute.xlu0 %4983
        %4985 = vrot.lane.b32.xlu0 %v4579, 32
        %v4986 = vpop.permute.xlu0 %4985
        %4987 = vrot.lane.b32.xlu0 %v4580, 32
        %v4988 = vpop.permute.xlu0 %4987
        %4989 = vrot.lane.b32.xlu0 %v4581, 32
        %v4990 = vpop.permute.xlu0 %4989
        %4991 = vrot.lane.b32.xlu0 %v4582, 32
        %v4992 = vpop.permute.xlu0 %4991
        %4993 = vrot.lane.b32.xlu0 %v4583, 32
        %v4994 = vpop.permute.xlu0 %4993
        %4995 = vrot.lane.b32.xlu0 %v4584, 32
        %v4996 = vpop.permute.xlu0 %4995
        %4997 = vrot.lane.b32.xlu0 %v4585, 32
        %v4998 = vpop.permute.xlu0 %4997
        %4999 = vrot.lane.b32.xlu0 %v4586, 32
        %v5000 = vpop.permute.xlu0 %4999
        %5001 = vrot.lane.b32.xlu0 %v4587, 32
        %v5002 = vpop.permute.xlu0 %5001
        %5003 = vrot.lane.b32.xlu0 %v4588, 32
        %v5004 = vpop.permute.xlu0 %5003
        %5005 = vrot.lane.b32.xlu0 %v4589, 32
        %v5006 = vpop.permute.xlu0 %5005
        %5071 = vrot.lane.b32.xlu0 %v4590, 48
        %v5072 = vpop.permute.xlu0 %5071
        %5073 = vrot.lane.b32.xlu0 %v4591, 48
        %v5074 = vpop.permute.xlu0 %5073
        %5075 = vrot.lane.b32.xlu0 %v4592, 48
        %v5076 = vpop.permute.xlu0 %5075
        %5077 = vrot.lane.b32.xlu0 %v4593, 48
        %v5078 = vpop.permute.xlu0 %5077
        %5079 = vrot.lane.b32.xlu0 %v4594, 48
        %v5080 = vpop.permute.xlu0 %5079
        %5081 = vrot.lane.b32.xlu0 %v4595, 48
        %v5082 = vpop.permute.xlu0 %5081
        %5083 = vrot.lane.b32.xlu0 %v4596, 48
        %v5084 = vpop.permute.xlu0 %5083
        %5085 = vrot.lane.b32.xlu0 %v4597, 48
        %v5086 = vpop.permute.xlu0 %5085
        %5087 = vrot.lane.b32.xlu0 %v4598, 48
        %v5088 = vpop.permute.xlu0 %5087
        %5089 = vrot.lane.b32.xlu0 %v4599, 48
        %v5090 = vpop.permute.xlu0 %5089
        %5091 = vrot.lane.b32.xlu0 %v4600, 48
        %v5092 = vpop.permute.xlu0 %5091
        %5093 = vrot.lane.b32.xlu0 %v4601, 48
        %v5094 = vpop.permute.xlu0 %5093
        %5095 = vrot.lane.b32.xlu0 %v4602, 48
        %v5096 = vpop.permute.xlu0 %5095
        %5097 = vrot.lane.b32.xlu0 %v4603, 48
        %v5098 = vpop.permute.xlu0 %5097
        %5099 = vrot.lane.b32.xlu0 %v4604, 48
        %v5100 = vpop.permute.xlu0 %5099
        %5101 = vrot.lane.b32.xlu0 %v4605, 48
        %v5102 = vpop.permute.xlu0 %5101
        %5103 = vrot.lane.b32.xlu0 %v4606, 48
        %v5104 = vpop.permute.xlu0 %5103
        %5105 = vrot.lane.b32.xlu0 %v4607, 48
        %v5106 = vpop.permute.xlu0 %5105
        %5107 = vrot.lane.b32.xlu0 %v4608, 48
        %v5108 = vpop.permute.xlu0 %5107
        %5109 = vrot.lane.b32.xlu0 %v4609, 48
        %v5110 = vpop.permute.xlu0 %5109
        %5111 = vrot.lane.b32.xlu0 %v4610, 48
        %v5112 = vpop.permute.xlu0 %5111
        %5113 = vrot.lane.b32.xlu0 %v4611, 48
        %v5114 = vpop.permute.xlu0 %5113
        %5115 = vrot.lane.b32.xlu0 %v4612, 48
        %v5116 = vpop.permute.xlu0 %5115
        %5117 = vrot.lane.b32.xlu0 %v4613, 48
        %v5118 = vpop.permute.xlu0 %5117
        %5119 = vrot.lane.b32.xlu0 %v4614, 48
        %v5120 = vpop.permute.xlu0 %5119
        %5121 = vrot.lane.b32.xlu0 %v4615, 48
        %v5122 = vpop.permute.xlu0 %5121
        %5123 = vrot.lane.b32.xlu0 %v4616, 48
        %v5124 = vpop.permute.xlu0 %5123
        %5125 = vrot.lane.b32.xlu0 %v4617, 48
        %v5126 = vpop.permute.xlu0 %5125
        %5127 = vrot.lane.b32.xlu0 %v4618, 48
        %v5128 = vpop.permute.xlu0 %5127
        %5129 = vrot.lane.b32.xlu0 %v4619, 48
        %v5130 = vpop.permute.xlu0 %5129
        %5131 = vrot.lane.b32.xlu0 %v4620, 48
        %v5132 = vpop.permute.xlu0 %5131
        %5133 = vrot.lane.b32.xlu0 %v4621, 48
        %v5134 = vpop.permute.xlu0 %5133
        %5199 = vrot.lane.b32.xlu0 %v4622, 64
        %v5200 = vpop.permute.xlu0 %5199
        %5201 = vrot.lane.b32.xlu0 %v4623, 64
        %v5202 = vpop.permute.xlu0 %5201
        %5203 = vrot.lane.b32.xlu0 %v4624, 64
        %v5204 = vpop.permute.xlu0 %5203
        %5205 = vrot.lane.b32.xlu0 %v4625, 64
        %v5206 = vpop.permute.xlu0 %5205
        %5207 = vrot.lane.b32.xlu0 %v4626, 64
        %v5208 = vpop.permute.xlu0 %5207
        %5209 = vrot.lane.b32.xlu0 %v4627, 64
        %v5210 = vpop.permute.xlu0 %5209
        %5211 = vrot.lane.b32.xlu0 %v4628, 64
        %v5212 = vpop.permute.xlu0 %5211
        %5213 = vrot.lane.b32.xlu0 %v4629, 64
        %v5214 = vpop.permute.xlu0 %5213
        %5215 = vrot.lane.b32.xlu0 %v4630, 64
        %v5216 = vpop.permute.xlu0 %5215
        %5217 = vrot.lane.b32.xlu0 %v4631, 64
        %v5218 = vpop.permute.xlu0 %5217
        %5219 = vrot.lane.b32.xlu0 %v4632, 64
        %v5220 = vpop.permute.xlu0 %5219
        %5221 = vrot.lane.b32.xlu0 %v4633, 64
        %v5222 = vpop.permute.xlu0 %5221
        %5223 = vrot.lane.b32.xlu0 %v4634, 64
        %v5224 = vpop.permute.xlu0 %5223
        %5225 = vrot.lane.b32.xlu0 %v4635, 64
        %v5226 = vpop.permute.xlu0 %5225
        %5227 = vrot.lane.b32.xlu0 %v4636, 64
        %v5228 = vpop.permute.xlu0 %5227
        %5229 = vrot.lane.b32.xlu0 %v4637, 64
        %v5230 = vpop.permute.xlu0 %5229
        %5231 = vrot.lane.b32.xlu0 %v4638, 64
        %v5232 = vpop.permute.xlu0 %5231
        %5233 = vrot.lane.b32.xlu0 %v4639, 64
        %v5234 = vpop.permute.xlu0 %5233
        %5235 = vrot.lane.b32.xlu0 %v4640, 64
        %v5236 = vpop.permute.xlu0 %5235
        %5237 = vrot.lane.b32.xlu0 %v4641, 64
        %v5238 = vpop.permute.xlu0 %5237
        %5239 = vrot.lane.b32.xlu0 %v4642, 64
        %v5240 = vpop.permute.xlu0 %5239
        %5241 = vrot.lane.b32.xlu0 %v4643, 64
        %v5242 = vpop.permute.xlu0 %5241
        %5243 = vrot.lane.b32.xlu0 %v4644, 64
        %v5244 = vpop.permute.xlu0 %5243
        %5245 = vrot.lane.b32.xlu0 %v4645, 64
        %v5246 = vpop.permute.xlu0 %5245
        %5247 = vrot.lane.b32.xlu0 %v4646, 64
        %v5248 = vpop.permute.xlu0 %5247
        %5249 = vrot.lane.b32.xlu0 %v4647, 64
        %v5250 = vpop.permute.xlu0 %5249
        %5251 = vrot.lane.b32.xlu0 %v4648, 64
        %v5252 = vpop.permute.xlu0 %5251
        %5253 = vrot.lane.b32.xlu0 %v4649, 64
        %v5254 = vpop.permute.xlu0 %5253
        %5255 = vrot.lane.b32.xlu0 %v4650, 64
        %v5256 = vpop.permute.xlu0 %5255
        %5257 = vrot.lane.b32.xlu0 %v4651, 64
        %v5258 = vpop.permute.xlu0 %5257
        %5259 = vrot.lane.b32.xlu0 %v4652, 64
        %v5260 = vpop.permute.xlu0 %5259
        %5261 = vrot.lane.b32.xlu0 %v4653, 64
        %v5262 = vpop.permute.xlu0 %5261
        %5327 = vrot.lane.b32.xlu0 %v4654, 80
        %v5328 = vpop.permute.xlu0 %5327
        %5329 = vrot.lane.b32.xlu0 %v4655, 80
        %v5330 = vpop.permute.xlu0 %5329
        %5331 = vrot.lane.b32.xlu0 %v4656, 80
        %v5332 = vpop.permute.xlu0 %5331
        %5333 = vrot.lane.b32.xlu0 %v4657, 80
        %v5334 = vpop.permute.xlu0 %5333
        %5335 = vrot.lane.b32.xlu0 %v4658, 80
        %v5336 = vpop.permute.xlu0 %5335
        %5337 = vrot.lane.b32.xlu0 %v4659, 80
        %v5338 = vpop.permute.xlu0 %5337
        %5339 = vrot.lane.b32.xlu0 %v4660, 80
        %v5340 = vpop.permute.xlu0 %5339
        %5341 = vrot.lane.b32.xlu0 %v4661, 80
        %v5342 = vpop.permute.xlu0 %5341
        %5343 = vrot.lane.b32.xlu0 %v4662, 80
        %v5344 = vpop.permute.xlu0 %5343
        %5345 = vrot.lane.b32.xlu0 %v4663, 80
        %v5346 = vpop.permute.xlu0 %5345
        %5347 = vrot.lane.b32.xlu0 %v4664, 80
        %v5348 = vpop.permute.xlu0 %5347
        %5349 = vrot.lane.b32.xlu0 %v4665, 80
        %v5350 = vpop.permute.xlu0 %5349
        %5351 = vrot.lane.b32.xlu0 %v4666, 80
        %v5352 = vpop.permute.xlu0 %5351
        %5353 = vrot.lane.b32.xlu0 %v4667, 80
        %v5354 = vpop.permute.xlu0 %5353
        %5355 = vrot.lane.b32.xlu0 %v4668, 80
        %v5356 = vpop.permute.xlu0 %5355
        %5357 = vrot.lane.b32.xlu0 %v4669, 80
        %v5358 = vpop.permute.xlu0 %5357
        %5359 = vrot.lane.b32.xlu0 %v4670, 80
        %v5360 = vpop.permute.xlu0 %5359
        %5361 = vrot.lane.b32.xlu0 %v4671, 80
        %v5362 = vpop.permute.xlu0 %5361
        %5363 = vrot.lane.b32.xlu0 %v4672, 80
        %v5364 = vpop.permute.xlu0 %5363
        %5365 = vrot.lane.b32.xlu0 %v4673, 80
        %v5366 = vpop.permute.xlu0 %5365
        %5367 = vrot.lane.b32.xlu0 %v4674, 80
        %v5368 = vpop.permute.xlu0 %5367
        %5369 = vrot.lane.b32.xlu0 %v4675, 80
        %v5370 = vpop.permute.xlu0 %5369
        %5371 = vrot.lane.b32.xlu0 %v4676, 80
        %v5372 = vpop.permute.xlu0 %5371
        %5373 = vrot.lane.b32.xlu0 %v4677, 80
        %v5374 = vpop.permute.xlu0 %5373
        %5375 = vrot.lane.b32.xlu0 %v4678, 80
        %v5376 = vpop.permute.xlu0 %5375
        %5377 = vrot.lane.b32.xlu0 %v4679, 80
        %v5378 = vpop.permute.xlu0 %5377
        %5379 = vrot.lane.b32.xlu0 %v4680, 80
        %v5380 = vpop.permute.xlu0 %5379
        %5381 = vrot.lane.b32.xlu0 %v4681, 80
        %v5382 = vpop.permute.xlu0 %5381
        %5383 = vrot.lane.b32.xlu0 %v4682, 80
        %v5384 = vpop.permute.xlu0 %5383
        %5385 = vrot.lane.b32.xlu0 %v4683, 80
        %v5386 = vpop.permute.xlu0 %5385
        %5387 = vrot.lane.b32.xlu0 %v4684, 80
        %v5388 = vpop.permute.xlu0 %5387
        %5389 = vrot.lane.b32.xlu0 %v4685, 80
        %v5390 = vpop.permute.xlu0 %5389
        %5455 = vrot.lane.b32.xlu0 %v4687, 96
        %v5456 = vpop.permute.xlu0 %5455
        %5457 = vrot.lane.b32.xlu0 %v4688, 96
        %v5458 = vpop.permute.xlu0 %5457
        %5459 = vrot.lane.b32.xlu0 %v4689, 96
        %v5460 = vpop.permute.xlu0 %5459
        %5461 = vrot.lane.b32.xlu0 %v4690, 96
        %v5462 = vpop.permute.xlu0 %5461
        %5463 = vrot.lane.b32.xlu0 %v4691, 96
        %v5464 = vpop.permute.xlu0 %5463
        %5465 = vrot.lane.b32.xlu0 %v4692, 96
        %v5466 = vpop.permute.xlu0 %5465
        %5467 = vrot.lane.b32.xlu0 %v4693, 96
        %v5468 = vpop.permute.xlu0 %5467
        %5469 = vrot.lane.b32.xlu0 %v4694, 96
        %v5470 = vpop.permute.xlu0 %5469
        %5471 = vrot.lane.b32.xlu0 %v4695, 96
        %v5472 = vpop.permute.xlu0 %5471
        %5473 = vrot.lane.b32.xlu0 %v4696, 96
        %v5474 = vpop.permute.xlu0 %5473
        %5475 = vrot.lane.b32.xlu0 %v4697, 96
        %v5476 = vpop.permute.xlu0 %5475
        %5477 = vrot.lane.b32.xlu0 %v4698, 96
        %v5478 = vpop.permute.xlu0 %5477
        %5479 = vrot.lane.b32.xlu0 %v4699, 96
        %v5480 = vpop.permute.xlu0 %5479
        %5481 = vrot.lane.b32.xlu0 %v4700, 96
        %v5482 = vpop.permute.xlu0 %5481
        %5483 = vrot.lane.b32.xlu0 %v4701, 96
        %v5484 = vpop.permute.xlu0 %5483
        %5485 = vrot.lane.b32.xlu0 %v4702, 96
        %v5486 = vpop.permute.xlu0 %5485
        %5487 = vrot.lane.b32.xlu0 %v4703, 96
        %v5488 = vpop.permute.xlu0 %5487
        %5489 = vrot.lane.b32.xlu0 %v4704, 96
        %v5490 = vpop.permute.xlu0 %5489
        %5491 = vrot.lane.b32.xlu0 %v4705, 96
        %v5492 = vpop.permute.xlu0 %5491
        %5493 = vrot.lane.b32.xlu0 %v4706, 96
        %v5494 = vpop.permute.xlu0 %5493
        %5495 = vrot.lane.b32.xlu0 %v4707, 96
        %v5496 = vpop.permute.xlu0 %5495
        %5497 = vrot.lane.b32.xlu0 %v4708, 96
        %v5498 = vpop.permute.xlu0 %5497
        %5499 = vrot.lane.b32.xlu0 %v4709, 96
        %v5500 = vpop.permute.xlu0 %5499
        %5501 = vrot.lane.b32.xlu0 %v4710, 96
        %v5502 = vpop.permute.xlu0 %5501
        %5503 = vrot.lane.b32.xlu0 %v4711, 96
        %v5504 = vpop.permute.xlu0 %5503
        %5505 = vrot.lane.b32.xlu0 %v4712, 96
        %v5506 = vpop.permute.xlu0 %5505
        %5507 = vrot.lane.b32.xlu0 %v4713, 96
        %v5508 = vpop.permute.xlu0 %5507
        %5509 = vrot.lane.b32.xlu0 %v4714, 96
        %v5510 = vpop.permute.xlu0 %5509
        %5511 = vrot.lane.b32.xlu0 %v4715, 96
        %v5512 = vpop.permute.xlu0 %5511
        %5513 = vrot.lane.b32.xlu0 %v4716, 96
        %v5514 = vpop.permute.xlu0 %5513
        %5515 = vrot.lane.b32.xlu0 %v4717, 96
        %v5516 = vpop.permute.xlu0 %5515
        %5517 = vrot.lane.b32.xlu0 %v4718, 96
        %v5518 = vpop.permute.xlu0 %5517
        %5583 = vrot.lane.b32.xlu0 %v4719, 112
        %v5584 = vpop.permute.xlu0 %5583
        %5585 = vrot.lane.b32.xlu0 %v4720, 112
        %v5586 = vpop.permute.xlu0 %5585
        %5587 = vrot.lane.b32.xlu0 %v4721, 112
        %v5588 = vpop.permute.xlu0 %5587
        %5589 = vrot.lane.b32.xlu0 %v4722, 112
        %v5590 = vpop.permute.xlu0 %5589
        %5591 = vrot.lane.b32.xlu0 %v4723, 112
        %v5592 = vpop.permute.xlu0 %5591
        %5593 = vrot.lane.b32.xlu0 %v4724, 112
        %v5594 = vpop.permute.xlu0 %5593
        %5595 = vrot.lane.b32.xlu0 %v4725, 112
        %v5596 = vpop.permute.xlu0 %5595
        %5597 = vrot.lane.b32.xlu0 %v4726, 112
        %v5598 = vpop.permute.xlu0 %5597
        %5599 = vrot.lane.b32.xlu0 %v4727, 112
        %v5600 = vpop.permute.xlu0 %5599
        %5601 = vrot.lane.b32.xlu0 %v4728, 112
        %v5602 = vpop.permute.xlu0 %5601
        %5603 = vrot.lane.b32.xlu0 %v4729, 112
        %v5604 = vpop.permute.xlu0 %5603
        %5605 = vrot.lane.b32.xlu0 %v4730, 112
        %v5606 = vpop.permute.xlu0 %5605
        %5607 = vrot.lane.b32.xlu0 %v4731, 112
        %v5608 = vpop.permute.xlu0 %5607
        %5609 = vrot.lane.b32.xlu0 %v4732, 112
        %v5610 = vpop.permute.xlu0 %5609
        %5611 = vrot.lane.b32.xlu0 %v4733, 112
        %v5612 = vpop.permute.xlu0 %5611
        %5613 = vrot.lane.b32.xlu0 %v4734, 112
        %v5614 = vpop.permute.xlu0 %5613
        %5615 = vrot.lane.b32.xlu0 %v4735, 112
        %v5616 = vpop.permute.xlu0 %5615
        %5617 = vrot.lane.b32.xlu0 %v4736, 112
        %v5618 = vpop.permute.xlu0 %5617
        %5619 = vrot.lane.b32.xlu0 %v4737, 112
        %v5620 = vpop.permute.xlu0 %5619
        %5621 = vrot.lane.b32.xlu0 %v4738, 112
        %v5622 = vpop.permute.xlu0 %5621
        %5623 = vrot.lane.b32.xlu0 %v4739, 112
        %v5624 = vpop.permute.xlu0 %5623
        %5625 = vrot.lane.b32.xlu0 %v4740, 112
        %v5626 = vpop.permute.xlu0 %5625
        %5627 = vrot.lane.b32.xlu0 %v4741, 112
        %v5628 = vpop.permute.xlu0 %5627
        %5629 = vrot.lane.b32.xlu0 %v4742, 112
        %v5630 = vpop.permute.xlu0 %5629
        %5631 = vrot.lane.b32.xlu0 %v4743, 112
        %v5632 = vpop.permute.xlu0 %5631
        %5633 = vrot.lane.b32.xlu0 %v4744, 112
        %v5634 = vpop.permute.xlu0 %5633
        %5635 = vrot.lane.b32.xlu0 %v4745, 112
        %v5636 = vpop.permute.xlu0 %5635
        %5637 = vrot.lane.b32.xlu0 %v4746, 112
        %v5638 = vpop.permute.xlu0 %5637
        %5639 = vrot.lane.b32.xlu0 %v4747, 112
        %v5640 = vpop.permute.xlu0 %5639
        %5641 = vrot.lane.b32.xlu0 %v4748, 112
        %v5642 = vpop.permute.xlu0 %5641
        %5643 = vrot.lane.b32.xlu0 %v4749, 112
        %v5644 = vpop.permute.xlu0 %5643
        %5645 = vrot.lane.b32.xlu0 %v4750, 112
        %v5646 = vpop.permute.xlu0 %5645
        %v5679 = vsel %vm513, %v4494, %v4816
        %v5680 = vsel %vm513, %v4495, %v4818
        %v5681 = vsel %vm513, %v4496, %v4820
        %v5682 = vsel %vm513, %v4497, %v4822
        %v5683 = vsel %vm513, %v4498, %v4824
        %v5684 = vsel %vm513, %v4499, %v4826
        %v5685 = vsel %vm513, %v4500, %v4828
        %v5686 = vsel %vm513, %v4501, %v4830
        %v5687 = vsel %vm513, %v4502, %v4832
        %v5688 = vsel %vm513, %v4503, %v4834
        %v5689 = vsel %vm513, %v4504, %v4836
        %v5690 = vsel %vm513, %v4505, %v4838
        %v5691 = vsel %vm513, %v4506, %v4840
        %v5692 = vsel %vm513, %v4507, %v4842
        %v5693 = vsel %vm513, %v4508, %v4844
        %v5694 = vsel %vm513, %v4509, %v4846
        %v5695 = vsel %vm513, %v4510, %v4848
        %v5696 = vsel %vm513, %v4511, %v4850
        %v5697 = vsel %vm513, %v4512, %v4852
        %v5698 = vsel %vm513, %v4513, %v4854
        %v5699 = vsel %vm513, %v4514, %v4856
        %v5700 = vsel %vm513, %v4515, %v4858
        %v5701 = vsel %vm513, %v4516, %v4860
        %v5702 = vsel %vm513, %v4517, %v4862
        %v5703 = vsel %vm513, %v4518, %v4864
        %v5704 = vsel %vm513, %v4519, %v4866
        %v5705 = vsel %vm513, %v4520, %v4868
        %v5706 = vsel %vm513, %v4521, %v4870
        %v5707 = vsel %vm513, %v4522, %v4872
        %v5708 = vsel %vm513, %v4523, %v4874
        %v5709 = vsel %vm513, %v4524, %v4876
        %v5710 = vsel %vm513, %v4525, %v4878
        %v5711 = vsel %vm3067, %v5679, %v4944
        %v5712 = vsel %vm3067, %v5680, %v4946
        %v5713 = vsel %vm3067, %v5681, %v4948
        %v5714 = vsel %vm3067, %v5682, %v4950
        %v5715 = vsel %vm3067, %v5683, %v4952
        %v5716 = vsel %vm3067, %v5684, %v4954
        %v5717 = vsel %vm3067, %v5685, %v4956
        %v5718 = vsel %vm3067, %v5686, %v4958
        %v5719 = vsel %vm3067, %v5687, %v4960
        %v5720 = vsel %vm3067, %v5688, %v4962
        %v5721 = vsel %vm3067, %v5689, %v4964
        %v5722 = vsel %vm3067, %v5690, %v4966
        %v5723 = vsel %vm3067, %v5691, %v4968
        %v5724 = vsel %vm3067, %v5692, %v4970
        %v5725 = vsel %vm3067, %v5693, %v4972
        %v5726 = vsel %vm3067, %v5694, %v4974
        %v5727 = vsel %vm3067, %v5695, %v4976
        %v5728 = vsel %vm3067, %v5696, %v4978
        %v5729 = vsel %vm3067, %v5697, %v4980
        %v5730 = vsel %vm3067, %v5698, %v4982
        %v5731 = vsel %vm3067, %v5699, %v4984
        %v5732 = vsel %vm3067, %v5700, %v4986
        %v5733 = vsel %vm3067, %v5701, %v4988
        %v5734 = vsel %vm3067, %v5702, %v4990
        %v5735 = vsel %vm3067, %v5703, %v4992
        %v5736 = vsel %vm3067, %v5704, %v4994
        %v5737 = vsel %vm3067, %v5705, %v4996
        %v5738 = vsel %vm3067, %v5706, %v4998
        %v5739 = vsel %vm3067, %v5707, %v5000
        %v5740 = vsel %vm3067, %v5708, %v5002
        %v5741 = vsel %vm3067, %v5709, %v5004
        %v5742 = vsel %vm3067, %v5710, %v5006
        %v5743 = vsel %vm3133, %v5711, %v5072
        %v5744 = vsel %vm3133, %v5712, %v5074
        %v5745 = vsel %vm3133, %v5713, %v5076
        %v5746 = vsel %vm3133, %v5714, %v5078
        %v5747 = vsel %vm3133, %v5715, %v5080
        %v5748 = vsel %vm3133, %v5716, %v5082
        %v5749 = vsel %vm3133, %v5717, %v5084
        %v5750 = vsel %vm3133, %v5718, %v5086
        %v5751 = vsel %vm3133, %v5719, %v5088
        %v5752 = vsel %vm3133, %v5720, %v5090
        %v5753 = vsel %vm3133, %v5721, %v5092
        %v5754 = vsel %vm3133, %v5722, %v5094
        %v5755 = vsel %vm3133, %v5723, %v5096
        %v5756 = vsel %vm3133, %v5724, %v5098
        %v5757 = vsel %vm3133, %v5725, %v5100
        %v5758 = vsel %vm3133, %v5726, %v5102
        %v5759 = vsel %vm3133, %v5727, %v5104
        %v5760 = vsel %vm3133, %v5728, %v5106
        %v5761 = vsel %vm3133, %v5729, %v5108
        %v5762 = vsel %vm3133, %v5730, %v5110
        %v5763 = vsel %vm3133, %v5731, %v5112
        %v5764 = vsel %vm3133, %v5732, %v5114
        %v5765 = vsel %vm3133, %v5733, %v5116
        %v5766 = vsel %vm3133, %v5734, %v5118
        %v5767 = vsel %vm3133, %v5735, %v5120
        %v5768 = vsel %vm3133, %v5736, %v5122
        %v5769 = vsel %vm3133, %v5737, %v5124
        %v5770 = vsel %vm3133, %v5738, %v5126
        %v5771 = vsel %vm3133, %v5739, %v5128
        %v5772 = vsel %vm3133, %v5740, %v5130
        %v5773 = vsel %vm3133, %v5741, %v5132
        %v5774 = vsel %vm3133, %v5742, %v5134
        %v5775 = vsel %vm3199, %v5743, %v5200
        %v5776 = vsel %vm3199, %v5744, %v5202
        %v5777 = vsel %vm3199, %v5745, %v5204
        %v5778 = vsel %vm3199, %v5746, %v5206
        %v5779 = vsel %vm3199, %v5747, %v5208
        %v5780 = vsel %vm3199, %v5748, %v5210
        %v5781 = vsel %vm3199, %v5749, %v5212
        %v5782 = vsel %vm3199, %v5750, %v5214
        %v5783 = vsel %vm3199, %v5751, %v5216
        %v5784 = vsel %vm3199, %v5752, %v5218
        %v5785 = vsel %vm3199, %v5753, %v5220
        %v5786 = vsel %vm3199, %v5754, %v5222
        %v5787 = vsel %vm3199, %v5755, %v5224
        %v5788 = vsel %vm3199, %v5756, %v5226
        %v5789 = vsel %vm3199, %v5757, %v5228
        %v5790 = vsel %vm3199, %v5758, %v5230
        %v5791 = vsel %vm3199, %v5759, %v5232
        %v5792 = vsel %vm3199, %v5760, %v5234
        %v5793 = vsel %vm3199, %v5761, %v5236
        %v5794 = vsel %vm3199, %v5762, %v5238
        %v5795 = vsel %vm3199, %v5763, %v5240
        %v5796 = vsel %vm3199, %v5764, %v5242
        %v5797 = vsel %vm3199, %v5765, %v5244
        %v5798 = vsel %vm3199, %v5766, %v5246
        %v5799 = vsel %vm3199, %v5767, %v5248
        %v5800 = vsel %vm3199, %v5768, %v5250
        %v5801 = vsel %vm3199, %v5769, %v5252
        %v5802 = vsel %vm3199, %v5770, %v5254
        %v5803 = vsel %vm3199, %v5771, %v5256
        %v5804 = vsel %vm3199, %v5772, %v5258
        %v5805 = vsel %vm3199, %v5773, %v5260
        %v5806 = vsel %vm3199, %v5774, %v5262
        %vm5807 = vcmask 654336
        %v5808 = vsel %vm5807, %v5775, %v5328
        %v5809 = vsel %vm5807, %v5776, %v5330
        %v5810 = vsel %vm5807, %v5777, %v5332
        %v5811 = vsel %vm5807, %v5778, %v5334
        %v5812 = vsel %vm5807, %v5779, %v5336
        %v5813 = vsel %vm5807, %v5780, %v5338
        %v5814 = vsel %vm5807, %v5781, %v5340
        %v5815 = vsel %vm5807, %v5782, %v5342
        %v5816 = vsel %vm5807, %v5783, %v5344
        %v5817 = vsel %vm5807, %v5784, %v5346
        %v5818 = vsel %vm5807, %v5785, %v5348
        %v5819 = vsel %vm5807, %v5786, %v5350
        %v5820 = vsel %vm5807, %v5787, %v5352
        %v5821 = vsel %vm5807, %v5788, %v5354
        %v5822 = vsel %vm5807, %v5789, %v5356
        %v5823 = vsel %vm5807, %v5790, %v5358
        %v5824 = vsel %vm5807, %v5791, %v5360
        %v5825 = vsel %vm5807, %v5792, %v5362
        %v5826 = vsel %vm5807, %v5793, %v5364
        %v5827 = vsel %vm5807, %v5794, %v5366
        %v5828 = vsel %vm5807, %v5795, %v5368
        %v5829 = vsel %vm5807, %v5796, %v5370
        %v5830 = vsel %vm5807, %v5797, %v5372
        %v5831 = vsel %vm5807, %v5798, %v5374
        %v5832 = vsel %vm5807, %v5799, %v5376
        %v5833 = vsel %vm5807, %v5800, %v5378
        %v5834 = vsel %vm5807, %v5801, %v5380
        %v5835 = vsel %vm5807, %v5802, %v5382
        %v5836 = vsel %vm5807, %v5803, %v5384
        %v5837 = vsel %vm5807, %v5804, %v5386
        %v5838 = vsel %vm5807, %v5805, %v5388
        %v5839 = vsel %vm5807, %v5806, %v5390
        %vm5840 = vcmask 785408
        %v5841 = vsel %vm5840, %v5808, %v5456
        %v5842 = vsel %vm5840, %v5809, %v5458
        %v5843 = vsel %vm5840, %v5810, %v5460
        %v5844 = vsel %vm5840, %v5811, %v5462
        %v5845 = vsel %vm5840, %v5812, %v5464
        %v5846 = vsel %vm5840, %v5813, %v5466
        %v5847 = vsel %vm5840, %v5814, %v5468
        %v5848 = vsel %vm5840, %v5815, %v5470
        %v5849 = vsel %vm5840, %v5816, %v5472
        %v5850 = vsel %vm5840, %v5817, %v5474
        %v5851 = vsel %vm5840, %v5818, %v5476
        %v5852 = vsel %vm5840, %v5819, %v5478
        %v5853 = vsel %vm5840, %v5820, %v5480
        %v5854 = vsel %vm5840, %v5821, %v5482
        %v5855 = vsel %vm5840, %v5822, %v5484
        %v5856 = vsel %vm5840, %v5823, %v5486
        %v5857 = vsel %vm5840, %v5824, %v5488
        %v5858 = vsel %vm5840, %v5825, %v5490
        %v5859 = vsel %vm5840, %v5826, %v5492
        %v5860 = vsel %vm5840, %v5827, %v5494
        %v5861 = vsel %vm5840, %v5828, %v5496
        %v5862 = vsel %vm5840, %v5829, %v5498
        %v5863 = vsel %vm5840, %v5830, %v5500
        %v5864 = vsel %vm5840, %v5831, %v5502
        %v5865 = vsel %vm5840, %v5832, %v5504
        %v5866 = vsel %vm5840, %v5833, %v5506
        %v5867 = vsel %vm5840, %v5834, %v5508
        %v5868 = vsel %vm5840, %v5835, %v5510
        %v5869 = vsel %vm5840, %v5836, %v5512
        %v5870 = vsel %vm5840, %v5837, %v5514
        %v5871 = vsel %vm5840, %v5838, %v5516
        %v5872 = vsel %vm5840, %v5839, %v5518
        %vm5873 = vcmask 916480
        %v5874 = vsel %vm5873, %v5841, %v5584
        %v5875 = vsel %vm5873, %v5842, %v5586
        %v5876 = vsel %vm5873, %v5843, %v5588
        %v5877 = vsel %vm5873, %v5844, %v5590
        %v5878 = vsel %vm5873, %v5845, %v5592
        %v5879 = vsel %vm5873, %v5846, %v5594
        %v5880 = vsel %vm5873, %v5847, %v5596
        %v5881 = vsel %vm5873, %v5848, %v5598
        %v5882 = vsel %vm5873, %v5849, %v5600
        %v5883 = vsel %vm5873, %v5850, %v5602
        %v5884 = vsel %vm5873, %v5851, %v5604
        %v5885 = vsel %vm5873, %v5852, %v5606
        %v5886 = vsel %vm5873, %v5853, %v5608
        %v5887 = vsel %vm5873, %v5854, %v5610
        %v5888 = vsel %vm5873, %v5855, %v5612
        %v5889 = vsel %vm5873, %v5856, %v5614
        %v5890 = vsel %vm5873, %v5857, %v5616
        %v5891 = vsel %vm5873, %v5858, %v5618
        %v5892 = vsel %vm5873, %v5859, %v5620
        %v5893 = vsel %vm5873, %v5860, %v5622
        %v5894 = vsel %vm5873, %v5861, %v5624
        %v5895 = vsel %vm5873, %v5862, %v5626
        %v5896 = vsel %vm5873, %v5863, %v5628
        %v5897 = vsel %vm5873, %v5864, %v5630
        %v5898 = vsel %vm5873, %v5865, %v5632
        %v5899 = vsel %vm5873, %v5866, %v5634
        %v5900 = vsel %vm5873, %v5867, %v5636
        %v5901 = vsel %vm5873, %v5868, %v5638
        %v5902 = vsel %vm5873, %v5869, %v5640
        %v5903 = vsel %vm5873, %v5870, %v5642
        %v5904 = vsel %vm5873, %v5871, %v5644
        %v5905 = vsel %vm5873, %v5872, %v5646
        %v5906 = vld [vmem:[%s9] sm:$0xff]
        %v5907 = vld [vmem:[%s9 + $0x8] sm:$0xff]
        %v5908 = vld [vmem:[%s9 + $0x10] sm:$0xff]
        %v5909 = vld [vmem:[%s9 + $0x18] sm:$0xff]
        %v5910 = vld [vmem:[%s9 + $0x20] sm:$0xff]
        %v5911 = vld [vmem:[%s9 + $0x28] sm:$0xff]
        %v5912 = vld [vmem:[%s9 + $0x30] sm:$0xff]
        %v5913 = vld [vmem:[%s9 + $0x38] sm:$0xff]
        %v5914 = vld [vmem:[%s9 + $0x40] sm:$0xff]
        %v5915 = vld [vmem:[%s9 + $0x48] sm:$0xff]
        %v5916 = vld [vmem:[%s9 + $0x50] sm:$0xff]
        %v5917 = vld [vmem:[%s9 + $0x58] sm:$0xff]
        %v5918 = vld [vmem:[%s9 + $0x60] sm:$0xff]
        %v5919 = vld [vmem:[%s9 + $0x68] sm:$0xff]
        %v5920 = vld [vmem:[%s9 + $0x70] sm:$0xff]
        %v5921 = vld [vmem:[%s9 + $0x78] sm:$0xff]
        %v5922 = vld [vmem:[%s9 + $0x80] sm:$0xff]
        %v5923 = vld [vmem:[%s9 + $0x88] sm:$0xff]
        %v5924 = vld [vmem:[%s10] sm:$0x1]
        %v5926 = vperm.slane %v5924, 0
        %v5929 = vsel %vm513, %v4751, 0
        %v5932 = vsel %vm513, %v4752, 0
        %v5935 = vsel %vm513, %v4753, 0
        %v5938 = vsel %vm513, %v4754, 0
        %v5941 = vsel %vm513, %v4755, 0
        %v5944 = vsel %vm513, %v4756, 0
        %v5947 = vsel %vm513, %v4757, 0
        %v5950 = vsel %vm513, %v4758, 0
        %v5953 = vsel %vm513, %v4759, 0
        %v5956 = vsel %vm513, %v4760, 0
        %v5959 = vsel %vm513, %v4761, 0
        %v5962 = vsel %vm513, %v4762, 0
        %v5965 = vsel %vm513, %v4763, 0
        %v5968 = vsel %vm513, %v4764, 0
        %v5971 = vsel %vm513, %v4765, 0
        %v5974 = vsel %vm513, %v4766, 0
        %v5977 = vsel %vm513, %v4767, 0
        %v5980 = vsel %vm513, %v4768, 0
        %v5983 = vsel %vm513, %v4769, 0
        %v5986 = vsel %vm513, %v4770, 0
        %v5989 = vsel %vm513, %v4771, 0
        %v5992 = vsel %vm513, %v4772, 0
        %v5995 = vsel %vm513, %v4773, 0
        %v5998 = vsel %vm513, %v4774, 0
        %v6001 = vsel %vm513, %v4775, 0
        %v6004 = vsel %vm513, %v4776, 0
        %v6007 = vsel %vm513, %v4777, 0
        %v6010 = vsel %vm513, %v4778, 0
        %v6013 = vsel %vm513, %v4779, 0
        %v6016 = vsel %vm513, %v4780, 0
        %v6019 = vsel %vm513, %v4781, 0
        %v6022 = vsel %vm513, %v4782, 0
        %6024 = vmatpush.msra.mxu0 %v5921
        %6025 = vmatpush.msra.mxu0 %v5920
        %6026 = vmatpush.msra.mxu0 %v5919
        %6027 = vmatpush.msra.mxu0 %v5918
        %6028 = vmatpush.msra.mxu0 %v5917
        %6029 = vmatpush.msra.mxu0 %v5916
        %6030 = vmatpush.msra.mxu0 %v5915
        %6031 = vmatpush.msra.mxu0 %v5914
        %6032 = vmatpush.msra.mxu0 %v5913
        %6033 = vmatpush.msra.mxu0 %v5912
        %6034 = vmatpush.msra.mxu0 %v5911
        %6035 = vmatpush.msra.mxu0 %v5910
        %6036 = vmatpush.msra.mxu0 %v5909
        %6037 = vmatpush.msra.mxu0 %v5908
        %6038 = vmatpush.msra.mxu0 %v5907
        %6039 = vmatpush.msra.mxu0 %v5906
        %6040 = vmatmul.f32.gmra.mxu0 %v5874
        %v6041 = vpop.f32.mrf.mxu0
        %v6042 = vadd.f32 %v5926, %v6041
        %6043 = vmatmul.f32.gmra.mxu0 %v5875
        %v6044 = vpop.f32.mrf.mxu0
        %v6045 = vadd.f32 %v5926, %v6044
        %6046 = vmatmul.f32.gmra.mxu0 %v5876
        %v6047 = vpop.f32.mrf.mxu0
        %v6048 = vadd.f32 %v5926, %v6047
        %6049 = vmatmul.f32.gmra.mxu0 %v5877
        %v6050 = vpop.f32.mrf.mxu0
        %v6051 = vadd.f32 %v5926, %v6050
        %6052 = vmatmul.f32.gmra.mxu0 %v5878
        %v6053 = vpop.f32.mrf.mxu0
        %v6054 = vadd.f32 %v5926, %v6053
        %6055 = vmatmul.f32.gmra.mxu0 %v5879
        %v6056 = vpop.f32.mrf.mxu0
        %v6057 = vadd.f32 %v5926, %v6056
        %6058 = vmatmul.f32.gmra.mxu0 %v5880
        %v6059 = vpop.f32.mrf.mxu0
        %v6060 = vadd.f32 %v5926, %v6059
        %6061 = vmatmul.f32.gmra.mxu0 %v5881
        %v6062 = vpop.f32.mrf.mxu0
        %v6063 = vadd.f32 %v5926, %v6062
        %6064 = vmatmul.f32.gmra.mxu0 %v5882
        %v6065 = vpop.f32.mrf.mxu0
        %v6066 = vadd.f32 %v5926, %v6065
        %6067 = vmatmul.f32.gmra.mxu0 %v5883
        %v6068 = vpop.f32.mrf.mxu0
        %v6069 = vadd.f32 %v5926, %v6068
        %6070 = vmatmul.f32.gmra.mxu0 %v5884
        %v6071 = vpop.f32.mrf.mxu0
        %v6072 = vadd.f32 %v5926, %v6071
        %6073 = vmatmul.f32.gmra.mxu0 %v5885
        %v6074 = vpop.f32.mrf.mxu0
        %v6075 = vadd.f32 %v5926, %v6074
        %6076 = vmatmul.f32.gmra.mxu0 %v5886
        %v6077 = vpop.f32.mrf.mxu0
        %v6078 = vadd.f32 %v5926, %v6077
        %6079 = vmatmul.f32.gmra.mxu0 %v5887
        %v6080 = vpop.f32.mrf.mxu0
        %v6081 = vadd.f32 %v5926, %v6080
        %6082 = vmatmul.f32.gmra.mxu0 %v5888
        %v6083 = vpop.f32.mrf.mxu0
        %v6084 = vadd.f32 %v5926, %v6083
        %6085 = vmatmul.f32.gmra.mxu0 %v5889
        %v6086 = vpop.f32.mrf.mxu0
        %v6087 = vadd.f32 %v5926, %v6086
        %6088 = vmatmul.f32.gmra.mxu0 %v5890
        %v6089 = vpop.f32.mrf.mxu0
        %v6090 = vadd.f32 %v5926, %v6089
        %6091 = vmatmul.f32.gmra.mxu0 %v5891
        %v6092 = vpop.f32.mrf.mxu0
        %v6093 = vadd.f32 %v5926, %v6092
        %6094 = vmatmul.f32.gmra.mxu0 %v5892
        %v6095 = vpop.f32.mrf.mxu0
        %v6096 = vadd.f32 %v5926, %v6095
        %6097 = vmatmul.f32.gmra.mxu0 %v5893
        %v6098 = vpop.f32.mrf.mxu0
        %v6099 = vadd.f32 %v5926, %v6098
        %6100 = vmatmul.f32.gmra.mxu0 %v5894
        %v6101 = vpop.f32.mrf.mxu0
        %v6102 = vadd.f32 %v5926, %v6101
        %6103 = vmatmul.f32.gmra.mxu0 %v5895
        %v6104 = vpop.f32.mrf.mxu0
        %v6105 = vadd.f32 %v5926, %v6104
        %6106 = vmatmul.f32.gmra.mxu0 %v5896
        %v6107 = vpop.f32.mrf.mxu0
        %v6108 = vadd.f32 %v5926, %v6107
        %6109 = vmatmul.f32.gmra.mxu0 %v5897
        %v6110 = vpop.f32.mrf.mxu0
        %v6111 = vadd.f32 %v5926, %v6110
        %6112 = vmatmul.f32.gmra.mxu0 %v5898
        %v6113 = vpop.f32.mrf.mxu0
        %v6114 = vadd.f32 %v5926, %v6113
        %6115 = vmatmul.f32.gmra.mxu0 %v5899
        %v6116 = vpop.f32.mrf.mxu0
        %v6117 = vadd.f32 %v5926, %v6116
        %6118 = vmatmul.f32.gmra.mxu0 %v5900
        %v6119 = vpop.f32.mrf.mxu0
        %v6120 = vadd.f32 %v5926, %v6119
        %6121 = vmatmul.f32.gmra.mxu0 %v5901
        %v6122 = vpop.f32.mrf.mxu0
        %v6123 = vadd.f32 %v5926, %v6122
        %6124 = vmatmul.f32.gmra.mxu0 %v5902
        %v6125 = vpop.f32.mrf.mxu0
        %v6126 = vadd.f32 %v5926, %v6125
        %6127 = vmatmul.f32.gmra.mxu0 %v5903
        %v6128 = vpop.f32.mrf.mxu0
        %v6129 = vadd.f32 %v5926, %v6128
        %6130 = vmatmul.f32.gmra.mxu0 %v5904
        %v6131 = vpop.f32.mrf.mxu0
        %v6132 = vadd.f32 %v5926, %v6131
        %6133 = vmatmul.f32.gmra.mxu0 %v5905
        %v6134 = vpop.f32.mrf.mxu0
        %v6135 = vadd.f32 %v5926, %v6134
        %6136 = vdwg.mxu0
        %6137 = vmatpush.msra.mxu0 0.0
        %6138 = vmatpush.msra.mxu0 0.0
        %6139 = vmatpush.msra.mxu0 0.0
        %6140 = vmatpush.msra.mxu0 0.0
        %6141 = vmatpush.msra.mxu0 0.0
        %6142 = vmatpush.msra.mxu0 0.0
        %6143 = vmatpush.msra.mxu0 0.0
        %6144 = vmatpush.msra.mxu0 0.0
        %6145 = vmatpush.msra.mxu0 0.0
        %6146 = vmatpush.msra.mxu0 0.0
        %6147 = vmatpush.msra.mxu0 0.0
        %6148 = vmatpush.msra.mxu0 0.0
        %6149 = vmatpush.msra.mxu0 0.0
        %6150 = vmatpush.msra.mxu0 0.0
        %6151 = vmatpush.msra.mxu0 %v5923
        %6152 = vmatpush.msra.mxu0 %v5922
        %6153 = vmatmul.f32.gmra.mxu0 %v5929
        %v6154 = vpop.f32.mrf.mxu0
        %v6155 = vadd.f32 %v6042, %v6154
        %6156 = vmatmul.f32.gmra.mxu0 %v5932
        %v6157 = vpop.f32.mrf.mxu0
        %v6158 = vadd.f32 %v6045, %v6157
        %6159 = vmatmul.f32.gmra.mxu0 %v5935
        %v6160 = vpop.f32.mrf.mxu0
        %v6161 = vadd.f32 %v6048, %v6160
        %6162 = vmatmul.f32.gmra.mxu0 %v5938
        %v6163 = vpop.f32.mrf.mxu0
        %v6164 = vadd.f32 %v6051, %v6163
        %6165 = vmatmul.f32.gmra.mxu0 %v5941
        %v6166 = vpop.f32.mrf.mxu0
        %v6167 = vadd.f32 %v6054, %v6166
        %6168 = vmatmul.f32.gmra.mxu0 %v5944
        %v6169 = vpop.f32.mrf.mxu0
        %v6170 = vadd.f32 %v6057, %v6169
        %6171 = vmatmul.f32.gmra.mxu0 %v5947
        %v6172 = vpop.f32.mrf.mxu0
        %v6173 = vadd.f32 %v6060, %v6172
        %6174 = vmatmul.f32.gmra.mxu0 %v5950
        %v6175 = vpop.f32.mrf.mxu0
        %v6176 = vadd.f32 %v6063, %v6175
        %6177 = vmatmul.f32.gmra.mxu0 %v5953
        %v6178 = vpop.f32.mrf.mxu0
        %v6179 = vadd.f32 %v6066, %v6178
        %6180 = vmatmul.f32.gmra.mxu0 %v5956
        %v6181 = vpop.f32.mrf.mxu0
        %v6182 = vadd.f32 %v6069, %v6181
        %6183 = vmatmul.f32.gmra.mxu0 %v5959
        %v6184 = vpop.f32.mrf.mxu0
        %v6185 = vadd.f32 %v6072, %v6184
        %6186 = vmatmul.f32.gmra.mxu0 %v5962
        %v6187 = vpop.f32.mrf.mxu0
        %v6188 = vadd.f32 %v6075, %v6187
        %6189 = vmatmul.f32.gmra.mxu0 %v5965
        %v6190 = vpop.f32.mrf.mxu0
        %v6191 = vadd.f32 %v6078, %v6190
        %6192 = vmatmul.f32.gmra.mxu0 %v5968
        %v6193 = vpop.f32.mrf.mxu0
        %v6194 = vadd.f32 %v6081, %v6193
        %6195 = vmatmul.f32.gmra.mxu0 %v5971
        %v6196 = vpop.f32.mrf.mxu0
        %v6197 = vadd.f32 %v6084, %v6196
        %6198 = vmatmul.f32.gmra.mxu0 %v5974
        %v6199 = vpop.f32.mrf.mxu0
        %v6200 = vadd.f32 %v6087, %v6199
        %6201 = vmatmul.f32.gmra.mxu0 %v5977
        %v6202 = vpop.f32.mrf.mxu0
        %v6203 = vadd.f32 %v6090, %v6202
        %6204 = vmatmul.f32.gmra.mxu0 %v5980
        %v6205 = vpop.f32.mrf.mxu0
        %v6206 = vadd.f32 %v6093, %v6205
        %6207 = vmatmul.f32.gmra.mxu0 %v5983
        %v6208 = vpop.f32.mrf.mxu0
        %v6209 = vadd.f32 %v6096, %v6208
        %6210 = vmatmul.f32.gmra.mxu0 %v5986
        %v6211 = vpop.f32.mrf.mxu0
        %v6212 = vadd.f32 %v6099, %v6211
        %6213 = vmatmul.f32.gmra.mxu0 %v5989
        %v6214 = vpop.f32.mrf.mxu0
        %v6215 = vadd.f32 %v6102, %v6214
        %6216 = vmatmul.f32.gmra.mxu0 %v5992
        %v6217 = vpop.f32.mrf.mxu0
        %v6218 = vadd.f32 %v6105, %v6217
        %6219 = vmatmul.f32.gmra.mxu0 %v5995
        %v6220 = vpop.f32.mrf.mxu0
        %v6221 = vadd.f32 %v6108, %v6220
        %6222 = vmatmul.f32.gmra.mxu0 %v5998
        %v6223 = vpop.f32.mrf.mxu0
        %v6224 = vadd.f32 %v6111, %v6223
        %6225 = vmatmul.f32.gmra.mxu0 %v6001
        %v6226 = vpop.f32.mrf.mxu0
        %v6227 = vadd.f32 %v6114, %v6226
        %6228 = vmatmul.f32.gmra.mxu0 %v6004
        %v6229 = vpop.f32.mrf.mxu0
        %v6230 = vadd.f32 %v6117, %v6229
        %6231 = vmatmul.f32.gmra.mxu0 %v6007
        %v6232 = vpop.f32.mrf.mxu0
        %v6233 = vadd.f32 %v6120, %v6232
        %6234 = vmatmul.f32.gmra.mxu0 %v6010
        %v6235 = vpop.f32.mrf.mxu0
        %v6236 = vadd.f32 %v6123, %v6235
        %6237 = vmatmul.f32.gmra.mxu0 %v6013
        %v6238 = vpop.f32.mrf.mxu0
        %v6239 = vadd.f32 %v6126, %v6238
        %6240 = vmatmul.f32.gmra.mxu0 %v6016
        %v6241 = vpop.f32.mrf.mxu0
        %v6242 = vadd.f32 %v6129, %v6241
        %6243 = vmatmul.f32.gmra.mxu0 %v6019
        %v6244 = vpop.f32.mrf.mxu0
        %v6245 = vadd.f32 %v6132, %v6244
        %6246 = vmatmul.f32.gmra.mxu0 %v6022
        %v6247 = vpop.f32.mrf.mxu0
        %v6248 = vadd.f32 %v6135, %v6247
        %6249 = vdwg.mxu0
        %v6250 = vld [vmem:[%s11] sm:$0xff]
        %v6251 = vld [vmem:[%s12] sm:$0x1]
        %v6253 = vperm.slane %v6251, 0
        %v6256 = vsel %vm439, %v587, 0
        %v6259 = vsel %vm439, %v588, 0
        %v6262 = vsel %vm439, %v589, 0
        %v6265 = vsel %vm439, %v590, 0
        %v6268 = vsel %vm439, %v591, 0
        %v6271 = vsel %vm439, %v592, 0
        %v6274 = vsel %vm439, %v593, 0
        %v6277 = vsel %vm439, %v594, 0
        %v6280 = vsel %vm439, %v595, 0
        %v6283 = vsel %vm439, %v596, 0
        %v6286 = vsel %vm439, %v597, 0
        %v6289 = vsel %vm439, %v598, 0
        %v6292 = vsel %vm439, %v599, 0
        %v6295 = vsel %vm439, %v600, 0
        %v6298 = vsel %vm439, %v601, 0
        %v6301 = vsel %vm439, %v602, 0
        %v6304 = vsel %vm439, %v603, 0
        %v6307 = vsel %vm439, %v604, 0
        %v6310 = vsel %vm439, %v605, 0
        %v6313 = vsel %vm439, %v606, 0
        %v6316 = vsel %vm439, %v607, 0
        %v6319 = vsel %vm439, %v608, 0
        %v6322 = vsel %vm439, %v609, 0
        %v6325 = vsel %vm439, %v610, 0
        %v6328 = vsel %vm439, %v611, 0
        %v6331 = vsel %vm439, %v612, 0
        %v6334 = vsel %vm439, %v613, 0
        %v6337 = vsel %vm439, %v614, 0
        %v6340 = vsel %vm439, %v615, 0
        %v6343 = vsel %vm439, %v616, 0
        %v6346 = vsel %vm439, %v617, 0
        %v6349 = vsel %vm439, %v618, 0
        %6351 = vmatpush.msra.mxu0 0.0
        %6352 = vmatpush.msra.mxu0 0.0
        %6353 = vmatpush.msra.mxu0 0.0
        %6354 = vmatpush.msra.mxu0 0.0
        %6355 = vmatpush.msra.mxu0 0.0
        %6356 = vmatpush.msra.mxu0 0.0
        %6357 = vmatpush.msra.mxu0 0.0
        %6358 = vmatpush.msra.mxu0 0.0
        %6359 = vmatpush.msra.mxu0 0.0
        %6360 = vmatpush.msra.mxu0 0.0
        %6361 = vmatpush.msra.mxu0 0.0
        %6362 = vmatpush.msra.mxu0 0.0
        %6363 = vmatpush.msra.mxu0 0.0
        %6364 = vmatpush.msra.mxu0 0.0
        %6365 = vmatpush.msra.mxu0 0.0
        %6366 = vmatpush.msra.mxu0 %v6250
        %6367 = vmatmul.f32.gmra.mxu0 %v6256
        %v6368 = vpop.f32.mrf.mxu0
        %v6369 = vadd.f32 %v6253, %v6368
        %6370 = vmatmul.f32.gmra.mxu0 %v6259
        %v6371 = vpop.f32.mrf.mxu0
        %v6372 = vadd.f32 %v6253, %v6371
        %6373 = vmatmul.f32.gmra.mxu0 %v6262
        %v6374 = vpop.f32.mrf.mxu0
        %v6375 = vadd.f32 %v6253, %v6374
        %6376 = vmatmul.f32.gmra.mxu0 %v6265
        %v6377 = vpop.f32.mrf.mxu0
        %v6378 = vadd.f32 %v6253, %v6377
        %6379 = vmatmul.f32.gmra.mxu0 %v6268
        %v6380 = vpop.f32.mrf.mxu0
        %v6381 = vadd.f32 %v6253, %v6380
        %6382 = vmatmul.f32.gmra.mxu0 %v6271
        %v6383 = vpop.f32.mrf.mxu0
        %v6384 = vadd.f32 %v6253, %v6383
        %6385 = vmatmul.f32.gmra.mxu0 %v6274
        %v6386 = vpop.f32.mrf.mxu0
        %v6387 = vadd.f32 %v6253, %v6386
        %6388 = vmatmul.f32.gmra.mxu0 %v6277
        %v6389 = vpop.f32.mrf.mxu0
        %v6390 = vadd.f32 %v6253, %v6389
        %6391 = vmatmul.f32.gmra.mxu0 %v6280
        %v6392 = vpop.f32.mrf.mxu0
        %v6393 = vadd.f32 %v6253, %v6392
        %6394 = vmatmul.f32.gmra.mxu0 %v6283
        %v6395 = vpop.f32.mrf.mxu0
        %v6396 = vadd.f32 %v6253, %v6395
        %6397 = vmatmul.f32.gmra.mxu0 %v6286
        %v6398 = vpop.f32.mrf.mxu0
        %v6399 = vadd.f32 %v6253, %v6398
        %6400 = vmatmul.f32.gmra.mxu0 %v6289
        %v6401 = vpop.f32.mrf.mxu0
        %v6402 = vadd.f32 %v6253, %v6401
        %6403 = vmatmul.f32.gmra.mxu0 %v6292
        %v6404 = vpop.f32.mrf.mxu0
        %v6405 = vadd.f32 %v6253, %v6404
        %6406 = vmatmul.f32.gmra.mxu0 %v6295
        %v6407 = vpop.f32.mrf.mxu0
        %v6408 = vadd.f32 %v6253, %v6407
        %6409 = vmatmul.f32.gmra.mxu0 %v6298
        %v6410 = vpop.f32.mrf.mxu0
        %v6411 = vadd.f32 %v6253, %v6410
        %6412 = vmatmul.f32.gmra.mxu0 %v6301
        %v6413 = vpop.f32.mrf.mxu0
        %v6414 = vadd.f32 %v6253, %v6413
        %6415 = vmatmul.f32.gmra.mxu0 %v6304
        %v6416 = vpop.f32.mrf.mxu0
        %v6417 = vadd.f32 %v6253, %v6416
        %6418 = vmatmul.f32.gmra.mxu0 %v6307
        %v6419 = vpop.f32.mrf.mxu0
        %v6420 = vadd.f32 %v6253, %v6419
        %6421 = vmatmul.f32.gmra.mxu0 %v6310
        %v6422 = vpop.f32.mrf.mxu0
        %v6423 = vadd.f32 %v6253, %v6422
        %6424 = vmatmul.f32.gmra.mxu0 %v6313
        %v6425 = vpop.f32.mrf.mxu0
        %v6426 = vadd.f32 %v6253, %v6425
        %6427 = vmatmul.f32.gmra.mxu0 %v6316
        %v6428 = vpop.f32.mrf.mxu0
        %v6429 = vadd.f32 %v6253, %v6428
        %6430 = vmatmul.f32.gmra.mxu0 %v6319
        %v6431 = vpop.f32.mrf.mxu0
        %v6432 = vadd.f32 %v6253, %v6431
        %6433 = vmatmul.f32.gmra.mxu0 %v6322
        %v6434 = vpop.f32.mrf.mxu0
        %v6435 = vadd.f32 %v6253, %v6434
        %6436 = vmatmul.f32.gmra.mxu0 %v6325
        %v6437 = vpop.f32.mrf.mxu0
        %v6438 = vadd.f32 %v6253, %v6437
        %6439 = vmatmul.f32.gmra.mxu0 %v6328
        %v6440 = vpop.f32.mrf.mxu0
        %v6441 = vadd.f32 %v6253, %v6440
        %6442 = vmatmul.f32.gmra.mxu0 %v6331
        %v6443 = vpop.f32.mrf.mxu0
        %v6444 = vadd.f32 %v6253, %v6443
        %6445 = vmatmul.f32.gmra.mxu0 %v6334
        %v6446 = vpop.f32.mrf.mxu0
        %v6447 = vadd.f32 %v6253, %v6446
        %6448 = vmatmul.f32.gmra.mxu0 %v6337
        %v6449 = vpop.f32.mrf.mxu0
        %v6450 = vadd.f32 %v6253, %v6449
        %6451 = vmatmul.f32.gmra.mxu0 %v6340
        %v6452 = vpop.f32.mrf.mxu0
        %v6453 = vadd.f32 %v6253, %v6452
        %6454 = vmatmul.f32.gmra.mxu0 %v6343
        %v6455 = vpop.f32.mrf.mxu0
        %v6456 = vadd.f32 %v6253, %v6455
        %6457 = vmatmul.f32.gmra.mxu0 %v6346
        %v6458 = vpop.f32.mrf.mxu0
        %v6459 = vadd.f32 %v6253, %v6458
        %6460 = vmatmul.f32.gmra.mxu0 %v6349
        %v6461 = vpop.f32.mrf.mxu0
        %v6462 = vadd.f32 %v6253, %v6461
        %6463 = vdwg.mxu0
        %v6464 = vadd.f32 %v6369, %v6155
        %v6465 = vadd.f32 %v6372, %v6158
        %v6466 = vadd.f32 %v6375, %v6161
        %v6467 = vadd.f32 %v6378, %v6164
        %v6468 = vadd.f32 %v6381, %v6167
        %v6469 = vadd.f32 %v6384, %v6170
        %v6470 = vadd.f32 %v6387, %v6173
        %v6471 = vadd.f32 %v6390, %v6176
        %v6472 = vadd.f32 %v6393, %v6179
        %v6473 = vadd.f32 %v6396, %v6182
        %v6474 = vadd.f32 %v6399, %v6185
        %v6475 = vadd.f32 %v6402, %v6188
        %v6476 = vadd.f32 %v6405, %v6191
        %v6477 = vadd.f32 %v6408, %v6194
        %v6478 = vadd.f32 %v6411, %v6197
        %v6479 = vadd.f32 %v6414, %v6200
        %v6480 = vadd.f32 %v6417, %v6203
        %v6481 = vadd.f32 %v6420, %v6206
        %v6482 = vadd.f32 %v6423, %v6209
        %v6483 = vadd.f32 %v6426, %v6212
        %v6484 = vadd.f32 %v6429, %v6215
        %v6485 = vadd.f32 %v6432, %v6218
        %v6486 = vadd.f32 %v6435, %v6221
        %v6487 = vadd.f32 %v6438, %v6224
        %v6488 = vadd.f32 %v6441, %v6227
        %v6489 = vadd.f32 %v6444, %v6230
        %v6490 = vadd.f32 %v6447, %v6233
        %v6491 = vadd.f32 %v6450, %v6236
        %v6492 = vadd.f32 %v6453, %v6239
        %v6493 = vadd.f32 %v6456, %v6242
        %v6494 = vadd.f32 %v6459, %v6245
        %v6495 = vadd.f32 %v6462, %v6248
        %6496 = vst.msk [vmem:[%s433] sm:$0xff] %vm513, %v6464
        %6497 = vst.msk [vmem:[%s433 + $0x8] sm:$0xff] %vm513, %v6465
        %6498 = vst.msk [vmem:[%s433 + $0x10] sm:$0xff] %vm513, %v6466
        %6499 = vst.msk [vmem:[%s433 + $0x18] sm:$0xff] %vm513, %v6467
        %6500 = vst.msk [vmem:[%s433 + $0x20] sm:$0xff] %vm513, %v6468
        %6501 = vst.msk [vmem:[%s433 + $0x28] sm:$0xff] %vm513, %v6469
        %6502 = vst.msk [vmem:[%s433 + $0x30] sm:$0xff] %vm513, %v6470
        %6503 = vst.msk [vmem:[%s433 + $0x38] sm:$0xff] %vm513, %v6471
        %6504 = vst.msk [vmem:[%s433 + $0x40] sm:$0xff] %vm513, %v6472
        %6505 = vst.msk [vmem:[%s433 + $0x48] sm:$0xff] %vm513, %v6473
        %6506 = vst.msk [vmem:[%s433 + $0x50] sm:$0xff] %vm513, %v6474
        %6507 = vst.msk [vmem:[%s433 + $0x58] sm:$0xff] %vm513, %v6475
        %6508 = vst.msk [vmem:[%s433 + $0x60] sm:$0xff] %vm513, %v6476
        %6509 = vst.msk [vmem:[%s433 + $0x68] sm:$0xff] %vm513, %v6477
        %6510 = vst.msk [vmem:[%s433 + $0x70] sm:$0xff] %vm513, %v6478
        %6511 = vst.msk [vmem:[%s433 + $0x78] sm:$0xff] %vm513, %v6479
        %6512 = vst.msk [vmem:[%s433 + $0x80] sm:$0xff] %vm513, %v6480
        %6513 = vst.msk [vmem:[%s433 + $0x88] sm:$0xff] %vm513, %v6481
        %6514 = vst.msk [vmem:[%s433 + $0x90] sm:$0xff] %vm513, %v6482
        %6515 = vst.msk [vmem:[%s433 + $0x98] sm:$0xff] %vm513, %v6483
        %6516 = vst.msk [vmem:[%s433 + $0xa0] sm:$0xff] %vm513, %v6484
        %6517 = vst.msk [vmem:[%s433 + $0xa8] sm:$0xff] %vm513, %v6485
        %6518 = vst.msk [vmem:[%s433 + $0xb0] sm:$0xff] %vm513, %v6486
        %6519 = vst.msk [vmem:[%s433 + $0xb8] sm:$0xff] %vm513, %v6487
        %6520 = vst.msk [vmem:[%s433 + $0xc0] sm:$0xff] %vm513, %v6488
        %6521 = vst.msk [vmem:[%s433 + $0xc8] sm:$0xff] %vm513, %v6489
        %6522 = vst.msk [vmem:[%s433 + $0xd0] sm:$0xff] %vm513, %v6490
        %6523 = vst.msk [vmem:[%s433 + $0xd8] sm:$0xff] %vm513, %v6491
        %6524 = vst.msk [vmem:[%s433 + $0xe0] sm:$0xff] %vm513, %v6492
        %6525 = vst.msk [vmem:[%s433 + $0xe8] sm:$0xff] %vm513, %v6493
        %6526 = vst.msk [vmem:[%s433 + $0xf0] sm:$0xff] %vm513, %v6494
        %6527 = vst.msk [vmem:[%s433 + $0xf8] sm:$0xff] %vm513, %v6495
        %s6528 = sand.u32 %s313, 1
        %s6529 = scalar_lea.sflag [#allocation5], %s6528
        %s6530 = sand.u32 %s313, 1
        %s6531 = smul.addr %s6530, 256
        %s6532 = scalar_lea.vmem [#allocation4], %s6531
        // Predicated region
        $region73: #{tpu_custom_call.1} parent=71 // pred_check
          %p6533 = pneg %p323
        $region74: #{tpu_custom_call.1} parent=71 // pred_check_branch
          %6535 = sbr.rel (%p6533) target = $region76
        $region75: #{tpu_custom_call.1} parent=71 // pred_region
          %6537 = vsyncadd %s6529, 0
          %s6538 = smul.addr %s27, 32
          %s6539 = smul.addr %s6538, 8
          %s6540 = scalar_lea.hbm %s13, %s6539
          %s6541 = sshll.u32 %s6532, 4
          %s6542 = int_to_ptr.vmem [resolvable:$true] %s6541
          %s6543 = sshll.u32 %s6540, 4
          %s6544 = int_to_ptr.hbm [resolvable:$true] %s6543
          %6549 = dma.vmem_to_hbm [thread:$0]  %s6542, 4096, %s6544, %s6529, 128, 128, 8
        $region76: #{tpu_custom_call.1} parent=71 // pred_fallthru
          _
      $region72: #{tpu_custom_call.1} parent=5 // pred_fallthru
        _
      %p6550 = scmp.le.s32.totalorder 2, %s22
      // Predicated region
      $region77: #{tpu_custom_call.1} parent=5 // pred_check
        %p6551 = pneg %p6550
      $region78: #{tpu_custom_call.1} parent=5 // pred_check_branch
        %6553 = sbr.rel (%p6551) target = $region80
      $region79: #{tpu_custom_call.1} parent=5 // pred_region
        %s6554 = ssub.s32 %s22, 2
        // Predicated region
        $region81: #{tpu_custom_call.1} parent=79 // pred_check
          %p6555 = pneg %p329
        $region82: #{tpu_custom_call.1} parent=79 // pred_check_branch
          %6557 = sbr.rel (%p6555) target = $region84
        $region83: #{tpu_custom_call.1} parent=79 // pred_region
          %s6558 = sand.u32 %s314, 1
          %s6559 = scalar_lea.sflag [#allocation5], %s6558
          %s6560 = sand.u32 %s314, 1
          %s6561 = smul.addr %s6560, 256
          %s6562 = scalar_lea.vmem [#allocation4], %s6561
          %6564 = dma.done %s6559, 4096
        $region84: #{tpu_custom_call.1} parent=79 // pred_fallthru
          _
      $region80: #{tpu_custom_call.1} parent=5 // pred_fallthru
        _
    $region6: #{tpu_custom_call.1} parent=1 // loop_footer
      %s26 = sadd.s32 1, %s22
    $region7: #{tpu_custom_call.1} parent=1 // loop_footer_branch
      %21 = sbr.rel target = $region3
    $region8: #{tpu_custom_call.1} parent=1 // loop_exit
      _
    %6565 = vsyncpa [#allocation5], 1
    %s6566 = scalar_lea.sflag [#allocation5], 1
    %6567 = vsyncpa %s6566, 1

</llo_original>
